<compile_context>
chip_gen: v7x
topology: tpu7x:2x2x1
jax: 0.10.0
libtpu: 0.0.40
codegen_flags: <defaults>
</compile_context>

<pallas_src>
import numpy as np
import jax
import jax.numpy as jnp
from jax.experimental import pallas as pl
from jax.experimental.pallas import tpu as pltpu

# ------------------------- static configuration -----------------------------
DIM = 32                       # embedding dim C
NUM_HEADS = 4
HEAD_DIM = DIM // NUM_HEADS
WINDOW_SIZE = 4
SHIFT_SIZE = 2                 # SW-MSA (shifted window)
MLP_RATIO = 4.0
MLP_HIDDEN = int(DIM * MLP_RATIO)
SCALE = HEAD_DIM ** -0.5       # qk_scale = head_dim ** -0.5
EPS = 1e-5                     # nn.LayerNorm default eps
NEG_INF = -1e9                 # cross-window additive mask


# --------------------------- exact GELU helper --------------------------------
_A1, _A2, _A3, _A4, _A5 = (0.254829592, -0.284496736, 1.421413741,
                           -1.453152027, 1.061405429)
_P = 0.3275911
_INV_SQRT2 = 0.7071067811865476


def _gelu_exact(x):
    """GELU with erf from Abramowitz & Stegun 7.1.26 (|err| <= 1.5e-7).

    Matches PyTorch's default (exact) nn.GELU to far below the test tolerance
    while using only mul/add/div/exp/where (robust Mosaic lowering)."""
    z = x * _INV_SQRT2
    az = jnp.abs(z)
    t = 1.0 / (1.0 + _P * az)
    poly = ((((_A5 * t + _A4) * t + _A3) * t + _A2) * t + _A1) * t
    erf_abs = 1.0 - poly * jnp.exp(-az * az)
    erf = jnp.where(z >= 0.0, erf_abs, -erf_abs)
    return 0.5 * x * (1.0 + erf)


# ----------------------------- fused Pallas kernel ---------------------------
def make_swin_kernel(Bt, L, M):
    """Kernel closure over static sizes: Bt images per grid step, L tokens and
    M = nW*N windowed tokens per image."""
    C, nh = DIM, NUM_HEADS
    f32, bf16 = jnp.float32, jnp.bfloat16

    def kernel(x_ref, pfwd_ref, prev_ref, bias_ref, hmask_ref,
               g1_ref, b1_ref, wq_ref, wk_ref, wv_ref,
               bq_ref, bk_ref, bv_ref, wp_ref, bp_ref,
               g2_ref, b2_ref, w1_ref, fb1_ref, w2_ref, fb2_ref, o_ref):
        x = x_ref[...].astype(f32)                              # (Bt*L, C)

        # ---- LayerNorm 1 (f32 VPU) ------------------------------------------
        mu = jnp.mean(x, axis=-1, keepdims=True)
        var = jnp.mean((x - mu) ** 2, axis=-1, keepdims=True)
        xn = (x - mu) * jax.lax.rsqrt(var + EPS) * g1_ref[...] + b1_ref[...]

        # ---- pad + cyclic shift + window partition for all Bt images --------
        # block-diagonal 0/1 selection matmul (bf16 operands, f32 accum)
        xw = jnp.dot(pfwd_ref[...], xn.astype(bf16),
                     preferred_element_type=f32)                # (Bt*M, C)
        xw_b = xw.astype(bf16)

        # ---- QKV projections (bf16 MXU); qk-scale folded into Wq/bq ----------
        q = jnp.dot(xw_b, wq_ref[...], preferred_element_type=f32) + bq_ref[...]
        k = jnp.dot(xw_b, wk_ref[...], preferred_element_type=f32) + bk_ref[...]
        v = jnp.dot(xw_b, wv_ref[...], preferred_element_type=f32) + bv_ref[...]

        hmask = hmask_ref[...]                                  # (nh*M, C) f32 0/1
        hmask_b = hmask.astype(bf16)
        bias = bias_ref[...]                                    # (M, nh*M) f32

        # ---- per-image attention, heads packed along lanes -------------------
        outs = []
        for i in range(Bt):                                     # tiny static loop
            q_i = q[i * M:(i + 1) * M].astype(bf16)             # (M, C)
            k_i = k[i * M:(i + 1) * M]                          # (M, C) f32
            v_i = v[i * M:(i + 1) * M]
            # per-head replicas of k/v masked to their hd-channel slice; gives a
            # single (M, nh*M) scores matmul and contraction-(nh*M) PV / denom
            # matmuls - no per-head loop, no 8-lane slices, no transposes.
            k_rep = (jnp.concatenate([k_i] * nh, axis=0) * hmask).astype(bf16)
            v_rep = (jnp.concatenate([v_i] * nh, axis=0) * hmask).astype(bf16)
            s = jax.lax.dot_general(q_i, k_rep, (((1,), (1,)), ((), ())),
                                    preferred_element_type=f32)  # (M, nh*M)
            s = s + bias                                         # bias+mask in f32
            # one shared row max (over all heads) is a valid per-head shift
            m_row = jnp.max(s, axis=-1, keepdims=True)
            e = jnp.exp(s - m_row)                               # f32 softmax numer
            e_b = e.astype(bf16)
            num = jnp.dot(e_b, v_rep, preferred_element_type=f32)    # (M, C)
            den = jnp.dot(e_b, hmask_b, preferred_element_type=f32)  # (M, C)
            outs.append(num * pl.reciprocal(den, approx=True))
        attn = jnp.concatenate(outs, axis=0) if Bt > 1 else outs[0]  # (Bt*M, C)

        # ---- output projection -----------------------------------------------
        attn = jnp.dot(attn.astype(bf16), wp_ref[...],
                       preferred_element_type=f32) + bp_ref[...]

        # ---- window reverse + un-shift + crop (selection matmul) + residual --
        x2 = x + jnp.dot(prev_ref[...], attn.astype(bf16),
                         preferred_element_type=f32)             # (Bt*L, C)

        # ---- LayerNorm 2 + MLP (exact GELU) + residual ------------------------
        mu2 = jnp.mean(x2, axis=-1, keepdims=True)
        var2 = jnp.mean((x2 - mu2) ** 2, axis=-1, keepdims=True)
        yn = (x2 - mu2) * jax.lax.rsqrt(var2 + EPS) * g2_ref[...] + b2_ref[...]
        hmid = jnp.dot(yn.astype(bf16), w1_ref[...],
                       preferred_element_type=f32) + fb1_ref[...]
        hmid = _gelu_exact(hmid)
        z = jnp.dot(hmid.astype(bf16), w2_ref[...],
                    preferred_element_type=f32) + fb2_ref[...]
        o_ref[...] = (x2 + z).astype(o_ref.dtype)

    return kernel


# ----------------------- static host-side constructions ----------------------
def build_permutations(H, W, ws, shift):
    """0/1 selection matrices implementing pad + cyclic shift + window partition
    (p_fwd: (M, L)) and its reverse + un-shift + crop (p_rev: (L, M)).
    Padded positions are zero rows (pad happens after LN, so padded tokens are
    exactly zero, matching F.pad)."""
    Hp = H + (ws - H % ws) % ws
    Wp = W + (ws - W % ws) % ws
    N = ws * ws
    nW = (Hp // ws) * (Wp // ws)
    M = nW * N
    L = H * W

    src = np.full((Hp, Wp), -1, np.int64)
    for hp in range(Hp):
        for wp in range(Wp):
            h0 = (hp + shift) % Hp
            w0 = (wp + shift) % Wp
            if h0 < H and w0 < W:
                src[hp, wp] = h0 * W + w0

    m_of = np.zeros((Hp, Wp), np.int64)
    m = 0
    for wh in range(Hp // ws):
        for ww in range(Wp // ws):
            for th in range(ws):
                for tw in range(ws):
                    m_of[wh * ws + th, ww * ws + tw] = m
                    m += 1

    p_fwd = np.zeros((M, L), np.float32)
    for hp in range(Hp):
        for wp in range(Wp):
            if src[hp, wp] >= 0:
                p_fwd[m_of[hp, wp], src[hp, wp]] = 1.0

    p_rev = np.zeros((L, M), np.float32)
    for h0 in range(H):
        for w0 in range(W):
            hp = (h0 - shift) % Hp
            wp = (w0 - shift) % Wp
            p_rev[h0 * W + w0, m_of[hp, wp]] = 1.0
    return p_fwd, p_rev


def make_mask_matrix(Hp, Wp, ws, shift):
    """Standard Swin SW-MSA mask, built for the PADDED grid (Hp, Wp)."""
    img_mask = np.zeros((Hp, Wp), np.float32)
    cnt = 0
    for hs in (slice(0, -ws), slice(-ws, -shift), slice(-shift, None)):
        for wsl in (slice(0, -ws), slice(-ws, -shift), slice(-shift, None)):
            img_mask[hs, wsl] = cnt
            cnt += 1
    mw = img_mask.reshape(Hp // ws, ws, Wp // ws, ws)
    mw = mw.transpose(0, 2, 1, 3).reshape(-1, ws * ws)
    attn_mask = mw[:, None, :] - mw[:, :, None]
    return np.where(attn_mask != 0, -100.0, 0.0).astype(np.float32)  # (nW, N, N)


def make_relative_position_bias(table, ws, num_heads):
    coords = np.stack(np.meshgrid(np.arange(ws), np.arange(ws), indexing="ij"))
    coords_flat = coords.reshape(2, -1)
    rel = coords_flat[:, :, None] - coords_flat[:, None, :]
    rel = rel.transpose(1, 2, 0)
    rel[:, :, 0] += ws - 1
    rel[:, :, 1] += ws - 1
    rel[:, :, 0] *= 2 * ws - 1
    idx = rel.sum(-1)
    N = ws * ws
    bias = table[idx.reshape(-1)].reshape(N, N, num_heads)
    return jnp.transpose(bias, (2, 0, 1))                          # (nh, N, N)


def pick_block_batch(B):
    """Images per grid step: prefer >= 2 grid steps (megacore) and as large a
    row stack as divides B (MXU-shaped matmuls, amortised step overhead)."""
    for bt in (4, 2, 1):
        if B % bt == 0 and B // bt >= 2:
            return bt
    for bt in (4, 2, 1):
        if B % bt == 0:
            return bt
    return 1


def build_constants(H, W, Bt, params, mask_matrix):
    """Precompute (once per config) every static operand fed to the kernel."""
    ws, shift = WINDOW_SIZE, SHIFT_SIZE
    C, nh, hd = DIM, NUM_HEADS, HEAD_DIM
    Hp = H + (ws - H % ws) % ws
    Wp = W + (ws - W % ws) % ws
    N = ws * ws
    nW = (Hp // ws) * (Wp // ws)
    M = nW * N

    p_fwd, p_rev = build_permutations(H, W, ws, shift)          # (M,L), (L,M)
    p_fwd_big = np.kron(np.eye(Bt, dtype=np.float32), p_fwd)    # (Bt*M, Bt*L)
    p_rev_big = np.kron(np.eye(Bt, dtype=np.float32), p_rev)    # (Bt*L, Bt*M)

    if shift > 0:
        attn_mask = np.asarray(mask_matrix, np.float32)
    else:
        attn_mask = np.zeros((nW, N, N), np.float32)
    assert attn_mask.shape == (nW, N, N)

    # heads-along-lanes additive bias: (M, nh*M) with rel-pos bias + shift mask
    # inside each window's diagonal block, -1e9 for cross-window pairs.
    rel_bias = np.asarray(params["rel_bias"], np.float32)       # (nh, N, N)
    bias_full = np.full((nh, M, M), NEG_INF, np.float32)
    for w in range(nW):
        bias_full[:, w * N:(w + 1) * N, w * N:(w + 1) * N] = \
            rel_bias + attn_mask[w][None]
    bias_lanes = np.ascontiguousarray(
        np.transpose(bias_full, (1, 0, 2)).reshape(M, nh * M))

    # 0/1 head mask: row block h keeps only channels [h*hd, (h+1)*hd)
    headmask = np.zeros((nh * M, C), np.float32)
    for h in range(nh):
        headmask[h * M:(h + 1) * M, h * hd:(h + 1) * hd] = 1.0

    wqkv = np.asarray(params["wqkv"], np.float32)               # (C, 3C)
    bqkv = np.asarray(params["bqkv"], np.float32)               # (3C,)
    wq, wk, wv = wqkv[:, :C], wqkv[:, C:2 * C], wqkv[:, 2 * C:]
    bq, bk, bv = bqkv[:C], bqkv[C:2 * C], bqkv[2 * C:]

    bf16, f32 = jnp.bfloat16, jnp.float32
    return {
        "p_fwd": jnp.asarray(p_fwd_big, bf16),     # 0/1 exact in bf16
        "p_rev": jnp.asarray(p_rev_big, bf16),
        "bias": jnp.asarray(bias_lanes, f32),
        "headmask": jnp.asarray(headmask, f32),
        "g1": jnp.asarray(params["g1"], f32).reshape(1, C),
        "b1": jnp.asarray(params["beta1"], f32).reshape(1, C),
        "wq": jnp.asarray(wq * SCALE, bf16),       # qk scale folded into Wq/bq
        "wk": jnp.asarray(wk, bf16),
        "wv": jnp.asarray(wv, bf16),
        "bq": jnp.asarray(bq * SCALE, f32).reshape(1, C),
        "bk": jnp.asarray(bk, f32).reshape(1, C),
        "bv": jnp.asarray(bv, f32).reshape(1, C),
        "wproj": jnp.asarray(params["wproj"], bf16),
        "bproj": jnp.asarray(params["bproj"], f32).reshape(1, C),
        "g2": jnp.asarray(params["g2"], f32).reshape(1, C),
        "b2": jnp.asarray(params["beta2"], f32).reshape(1, C),
        "w1": jnp.asarray(params["w1"], bf16),
        "fb1": jnp.asarray(params["fc1_b"], f32).reshape(1, MLP_HIDDEN),
        "w2": jnp.asarray(params["w2"], bf16),
        "fb2": jnp.asarray(params["fc2_b"], f32).reshape(1, C),
    }


# ------------------------------ wrapper ---------------------------------------
def make_forward(B, H, W, Bt):
    ws, C = WINDOW_SIZE, DIM
    L = H * W
    Hp = H + (ws - H % ws) % ws
    Wp = W + (ws - W % ws) % ws
    M = (Hp // ws) * (Wp // ws) * ws * ws
    assert B % Bt == 0
    R = Bt * L
    kernel = make_swin_kernel(Bt, L, M)
    full = lambda b: (0, 0)

    def forward(x, c):
        x2d = x.reshape(B * L, C)
        out = pl.pallas_call(
            kernel,
            out_shape=jax.ShapeDtypeStruct((B * L, C), x.dtype),
            grid=(B // Bt,),
            in_specs=[
                pl.BlockSpec((R, C), lambda b: (b, 0)),              # x
                pl.BlockSpec((Bt * M, Bt * L), full),                # p_fwd
                pl.BlockSpec((Bt * L, Bt * M), full),                # p_rev
                pl.BlockSpec((M, NUM_HEADS * M), full),              # bias+mask
                pl.BlockSpec((NUM_HEADS * M, C), full),              # head mask
                pl.BlockSpec((1, C), full),                          # g1
                pl.BlockSpec((1, C), full),                          # beta1
                pl.BlockSpec((C, C), full),                          # wq
                pl.BlockSpec((C, C), full),                          # wk
                pl.BlockSpec((C, C), full),                          # wv
                pl.BlockSpec((1, C), full),                          # bq
                pl.BlockSpec((1, C), full),                          # bk
                pl.BlockSpec((1, C), full),                          # bv
                pl.BlockSpec((C, C), full),                          # wproj
                pl.BlockSpec((1, C), full),                          # bproj
                pl.BlockSpec((1, C), full),                          # g2
                pl.BlockSpec((1, C), full),                          # beta2
                pl.BlockSpec((C, MLP_HIDDEN), full),                 # w1
                pl.BlockSpec((1, MLP_HIDDEN), full),                 # fc1_b
                pl.BlockSpec((MLP_HIDDEN, C), full),                 # w2
                pl.BlockSpec((1, C), full),                          # fc2_b
            ],
            out_specs=pl.BlockSpec((R, C), lambda b: (b, 0)),
            compiler_params=pltpu.CompilerParams(
                dimension_semantics=("parallel",)),                  # megacore
        )(x2d, c["p_fwd"], c["p_rev"], c["bias"], c["headmask"],
          c["g1"], c["b1"], c["wq"], c["wk"], c["wv"],
          c["bq"], c["bk"], c["bv"], c["wproj"], c["bproj"],
          c["g2"], c["b2"], c["w1"], c["fb1"], c["w2"], c["fb2"])
        return out.reshape(B, L, C)

    return forward


# --------------------------- pure-JAX reference ------------------------------
def window_partition(x, ws):
    B, H, W, C = x.shape
    x = x.reshape(B, H // ws, ws, W // ws, ws, C)
    return x.transpose(0, 1, 3, 2, 4, 5).reshape(-1, ws, ws, C)


def window_reverse(windows, ws, H, W):
    B = windows.shape[0] // (H * W // ws // ws)
    x = windows.reshape(B, H // ws, W // ws, ws, ws, -1)
    return x.transpose(0, 1, 3, 2, 4, 5).reshape(B, H, W, -1)


def reference_forward(x, H, W, mask_matrix, p):
    B, L, C = x.shape
    ws, shift, nh, hd = WINDOW_SIZE, SHIFT_SIZE, NUM_HEADS, HEAD_DIM

    def ln(t, g, b):
        mean = t.mean(-1, keepdims=True)
        var = ((t - mean) ** 2).mean(-1, keepdims=True)
        return (t - mean) / jnp.sqrt(var + EPS) * g + b

    shortcut = x
    xn = ln(x, p["g1"], p["beta1"]).reshape(B, H, W, C)
    if shift > 0:
        shifted = jnp.roll(xn, shift=(-shift, -shift), axis=(1, 2))
        attn_mask = jnp.asarray(mask_matrix)
    else:
        shifted, attn_mask = xn, None
    xw = window_partition(shifted, ws).reshape(-1, ws * ws, C)
    B_, N, _ = xw.shape
    qkv = (xw @ p["wqkv"] + p["bqkv"]).reshape(B_, N, 3, nh, hd)
    qkv = qkv.transpose(2, 0, 3, 1, 4)
    q, k, v = qkv[0] * SCALE, qkv[1], qkv[2]
    attn = jnp.einsum("bhnd,bhmd->bhnm", q, k) + p["rel_bias"][None]
    if attn_mask is not None:
        nW = attn_mask.shape[0]
        attn = attn.reshape(B_ // nW, nW, nh, N, N) + attn_mask[None, :, None]
        attn = attn.reshape(-1, nh, N, N)
    attn = jax.nn.softmax(attn, axis=-1)
    o = jnp.einsum("bhnm,bhmd->bhnd", attn, v).transpose(0, 2, 1, 3).reshape(B_, N, C)
    o = (o @ p["wproj"] + p["bproj"]).reshape(-1, ws, ws, C)
    shifted = window_reverse(o, ws, H, W)
    x2 = jnp.roll(shifted, shift=(shift, shift), axis=(1, 2)) if shift > 0 else shifted
    x2 = shortcut + x2.reshape(B, H * W, C)
    y = ln(x2, p["g2"], p["beta2"])
    h = jax.nn.gelu(y @ p["w1"] + p["fc1_b"], approximate=False)
    return x2 + (h @ p["w2"] + p["fc2_b"])


# --------------------------------- main --------------------------------------
if __name__ == "__main__":
    B, H, W, C = 4, 8, 8, DIM
    L = H * W

    key = jax.random.PRNGKey(0)
    keys = jax.random.split(key, 12)

    rel_table = 0.02 * jax.random.normal(
        keys[0], ((2 * WINDOW_SIZE - 1) ** 2, NUM_HEADS), jnp.float32)

    params = {
        "g1": jnp.ones((C,), jnp.float32),
        "beta1": jnp.zeros((C,), jnp.float32),
        "wqkv": 0.05 * jax.random.normal(keys[1], (C, 3 * C), jnp.float32),
        "bqkv": 0.01 * jax.random.normal(keys[2], (3 * C,), jnp.float32),
        "rel_bias": make_relative_position_bias(rel_table, WINDOW_SIZE, NUM_HEADS),
        "wproj": 0.05 * jax.random.normal(keys[3], (C, C), jnp.float32),
        "bproj": 0.01 * jax.random.normal(keys[4], (C,), jnp.float32),
        "g2": jnp.ones((C,), jnp.float32),
        "beta2": jnp.zeros((C,), jnp.float32),
        "w1": 0.05 * jax.random.normal(keys[5], (C, MLP_HIDDEN), jnp.float32),
        "fc1_b": 0.01 * jax.random.normal(keys[6], (MLP_HIDDEN,), jnp.float32),
        "w2": 0.05 * jax.random.normal(keys[7], (MLP_HIDDEN, C), jnp.float32),
        "fc2_b": 0.01 * jax.random.normal(keys[8], (C,), jnp.float32),
    }

    x = jax.random.normal(keys[9], (B, L, C), jnp.float32)

    # SW-MSA mask built for the PADDED grid (here Hp=H, Wp=W since 8 % 4 == 0)
    Hp = H + (WINDOW_SIZE - H % WINDOW_SIZE) % WINDOW_SIZE
    Wp = W + (WINDOW_SIZE - W % WINDOW_SIZE) % WINDOW_SIZE
    mask_matrix = make_mask_matrix(Hp, Wp, WINDOW_SIZE, SHIFT_SIZE)  # (nW, N, N)

    # host-side constants built once; forward is a jitted pallas_call wrapper
    Bt = pick_block_batch(B)                       # 2 images per grid step here
    consts = build_constants(H, W, Bt, params, mask_matrix)
    forward = jax.jit(make_forward(B, H, W, Bt))

    out = jax.block_until_ready(forward(x, consts))

    ref = jax.block_until_ready(reference_forward(x, H, W, mask_matrix, params))
    # tolerance covers bf16 MXU operands (f32 accumulation) and the EUP
    # approximate reciprocal in the softmax denominator
    np.testing.assert_allclose(np.asarray(out), np.asarray(ref),
                               rtol=2e-2, atol=2e-2)
    print("KERNEL_OK")
</pallas_src>

<mosaic_0001>
module attributes {stable_mosaic.version = 11 : i64} {
  func.func @kernel(%arg0: i32, %arg1: memref<128x32xf32, #tpu.memory_space<vmem>>, %arg2: memref<128x128xbf16, #tpu.memory_space<vmem>>, %arg3: memref<128x128xbf16, #tpu.memory_space<vmem>>, %arg4: memref<64x256xf32, #tpu.memory_space<vmem>>, %arg5: memref<256x32xf32, #tpu.memory_space<vmem>>, %arg6: memref<1x32xf32, #tpu.memory_space<vmem>>, %arg7: memref<1x32xf32, #tpu.memory_space<vmem>>, %arg8: memref<32x32xbf16, #tpu.memory_space<vmem>>, %arg9: memref<32x32xbf16, #tpu.memory_space<vmem>>, %arg10: memref<32x32xbf16, #tpu.memory_space<vmem>>, %arg11: memref<1x32xf32, #tpu.memory_space<vmem>>, %arg12: memref<1x32xf32, #tpu.memory_space<vmem>>, %arg13: memref<1x32xf32, #tpu.memory_space<vmem>>, %arg14: memref<32x32xbf16, #tpu.memory_space<vmem>>, %arg15: memref<1x32xf32, #tpu.memory_space<vmem>>, %arg16: memref<1x32xf32, #tpu.memory_space<vmem>>, %arg17: memref<1x32xf32, #tpu.memory_space<vmem>>, %arg18: memref<32x128xbf16, #tpu.memory_space<vmem>>, %arg19: memref<1x128xf32, #tpu.memory_space<vmem>>, %arg20: memref<128x32xbf16, #tpu.memory_space<vmem>>, %arg21: memref<1x32xf32, #tpu.memory_space<vmem>>, %arg22: memref<128x32xf32, #tpu.memory_space<vmem>>) attributes {dimension_semantics = [#tpu.dimension_semantics<parallel>], iteration_bounds = array<i64: 2>, scalar_prefetch = 0 : i64, scratch_operands = 0 : i64, tpu.core_type = #tpu.core_type<tc>, window_params = [{transform_indices = @transform_0, window_bounds = array<i64: 128, 32>}, {pipeline_mode = #tpu.pipeline_mode<synchronous>, transform_indices = @transform_1, window_bounds = array<i64: 128, 128>}, {pipeline_mode = #tpu.pipeline_mode<synchronous>, transform_indices = @transform_2, window_bounds = array<i64: 128, 128>}, {pipeline_mode = #tpu.pipeline_mode<synchronous>, transform_indices = @transform_3, window_bounds = array<i64: 64, 256>}, {pipeline_mode = #tpu.pipeline_mode<synchronous>, transform_indices = @transform_4, window_bounds = array<i64: 256, 32>}, {pipeline_mode = #tpu.pipeline_mode<synchronous>, transform_indices = @transform_5, window_bounds = array<i64: 1, 32>}, {pipeline_mode = #tpu.pipeline_mode<synchronous>, transform_indices = @transform_6, window_bounds = array<i64: 1, 32>}, {pipeline_mode = #tpu.pipeline_mode<synchronous>, transform_indices = @transform_7, window_bounds = array<i64: 32, 32>}, {pipeline_mode = #tpu.pipeline_mode<synchronous>, transform_indices = @transform_8, window_bounds = array<i64: 32, 32>}, {pipeline_mode = #tpu.pipeline_mode<synchronous>, transform_indices = @transform_9, window_bounds = array<i64: 32, 32>}, {pipeline_mode = #tpu.pipeline_mode<synchronous>, transform_indices = @transform_10, window_bounds = array<i64: 1, 32>}, {pipeline_mode = #tpu.pipeline_mode<synchronous>, transform_indices = @transform_11, window_bounds = array<i64: 1, 32>}, {pipeline_mode = #tpu.pipeline_mode<synchronous>, transform_indices = @transform_12, window_bounds = array<i64: 1, 32>}, {pipeline_mode = #tpu.pipeline_mode<synchronous>, transform_indices = @transform_13, window_bounds = array<i64: 32, 32>}, {pipeline_mode = #tpu.pipeline_mode<synchronous>, transform_indices = @transform_14, window_bounds = array<i64: 1, 32>}, {pipeline_mode = #tpu.pipeline_mode<synchronous>, transform_indices = @transform_15, window_bounds = array<i64: 1, 32>}, {pipeline_mode = #tpu.pipeline_mode<synchronous>, transform_indices = @transform_16, window_bounds = array<i64: 1, 32>}, {pipeline_mode = #tpu.pipeline_mode<synchronous>, transform_indices = @transform_17, window_bounds = array<i64: 32, 128>}, {pipeline_mode = #tpu.pipeline_mode<synchronous>, transform_indices = @transform_18, window_bounds = array<i64: 1, 128>}, {pipeline_mode = #tpu.pipeline_mode<synchronous>, transform_indices = @transform_19, window_bounds = array<i64: 128, 32>}, {pipeline_mode = #tpu.pipeline_mode<synchronous>, transform_indices = @transform_20, window_bounds = array<i64: 1, 32>}, {transform_indices = @transform_21, window_bounds = array<i64: 128, 32>}]} {
    %c0 = arith.constant 0 : index
    %c0_0 = arith.constant 0 : index
    %0 = vector.load %arg1[%c0, %c0_0] : memref<128x32xf32, #tpu.memory_space<vmem>>, vector<128x32xf32>
    %cst = arith.constant dense<0.000000e+00> : vector<128xf32>
    %1 = vector.multi_reduction <add>, %0, %cst [1] : vector<128x32xf32> to vector<128xf32>
    %2 = vector.shape_cast %1 : vector<128xf32> to vector<128x1xf32>
    %cst_1 = arith.constant 3.200000e+01 : f32
    %3 = vector.broadcast %cst_1 : f32 to vector<128x1xf32>
    %4 = arith.divf %2, %3 : vector<128x1xf32>
    %5 = vector.broadcast %4 : vector<128x1xf32> to vector<128x32xf32>
    %6 = arith.subf %0, %5 : vector<128x32xf32>
    %7 = arith.mulf %6, %6 : vector<128x32xf32>
    %cst_2 = arith.constant dense<0.000000e+00> : vector<128xf32>
    %8 = vector.multi_reduction <add>, %7, %cst_2 [1] : vector<128x32xf32> to vector<128xf32>
    %9 = vector.shape_cast %8 : vector<128xf32> to vector<128x1xf32>
    %cst_3 = arith.constant 3.200000e+01 : f32
    %10 = vector.broadcast %cst_3 : f32 to vector<128x1xf32>
    %11 = arith.divf %9, %10 : vector<128x1xf32>
    %12 = vector.broadcast %4 : vector<128x1xf32> to vector<128x32xf32>
    %13 = arith.subf %0, %12 : vector<128x32xf32>
    %cst_4 = arith.constant 9.99999974E-6 : f32
    %14 = vector.broadcast %cst_4 : f32 to vector<128x1xf32>
    %15 = arith.addf %11, %14 : vector<128x1xf32>
    %16 = math.rsqrt %15 : vector<128x1xf32>
    %17 = vector.broadcast %16 : vector<128x1xf32> to vector<128x32xf32>
    %18 = arith.mulf %13, %17 : vector<128x32xf32>
    %c0_5 = arith.constant 0 : index
    %c0_6 = arith.constant 0 : index
    %19 = vector.load %arg6[%c0_5, %c0_6] : memref<1x32xf32, #tpu.memory_space<vmem>>, vector<1x32xf32>
    %20 = vector.broadcast %19 : vector<1x32xf32> to vector<128x32xf32>
    %21 = arith.mulf %18, %20 : vector<128x32xf32>
    %c0_7 = arith.constant 0 : index
    %c0_8 = arith.constant 0 : index
    %22 = vector.load %arg7[%c0_7, %c0_8] : memref<1x32xf32, #tpu.memory_space<vmem>>, vector<1x32xf32>
    %23 = vector.broadcast %22 : vector<1x32xf32> to vector<128x32xf32>
    %24 = arith.addf %21, %23 : vector<128x32xf32>
    %c0_9 = arith.constant 0 : index
    %c0_10 = arith.constant 0 : index
    %25 = vector.load %arg2[%c0_9, %c0_10] : memref<128x128xbf16, #tpu.memory_space<vmem>>, vector<128x128xbf16>
    %26 = arith.truncf %24 : vector<128x32xf32> to vector<128x32xbf16>
    %cst_11 = arith.constant dense<0.000000e+00> : vector<128x32xf32>
    %27 = tpu.matmul %25, %26, %cst_11 {dimension_numbers = #tpu.dot_dimension_numbers<[1], [0], [0], [1], [0, 0, 1, 1], [], []>} : vector<128x128xbf16>, vector<128x32xbf16>, vector<128x32xf32> -> vector<128x32xf32>
    %28 = arith.truncf %27 : vector<128x32xf32> to vector<128x32xbf16>
    %c0_12 = arith.constant 0 : index
    %c0_13 = arith.constant 0 : index
    %29 = vector.load %arg8[%c0_12, %c0_13] : memref<32x32xbf16, #tpu.memory_space<vmem>>, vector<32x32xbf16>
    %cst_14 = arith.constant dense<0.000000e+00> : vector<128x32xf32>
    %30 = tpu.matmul %28, %29, %cst_14 {dimension_numbers = #tpu.dot_dimension_numbers<[1], [0], [0], [1], [0, 0, 1, 1], [], []>} : vector<128x32xbf16>, vector<32x32xbf16>, vector<128x32xf32> -> vector<128x32xf32>
    %c0_15 = arith.constant 0 : index
    %c0_16 = arith.constant 0 : index
    %31 = vector.load %arg11[%c0_15, %c0_16] : memref<1x32xf32, #tpu.memory_space<vmem>>, vector<1x32xf32>
    %32 = vector.broadcast %31 : vector<1x32xf32> to vector<128x32xf32>
    %33 = arith.addf %30, %32 : vector<128x32xf32>
    %c0_17 = arith.constant 0 : index
    %c0_18 = arith.constant 0 : index
    %34 = vector.load %arg9[%c0_17, %c0_18] : memref<32x32xbf16, #tpu.memory_space<vmem>>, vector<32x32xbf16>
    %cst_19 = arith.constant dense<0.000000e+00> : vector<128x32xf32>
    %35 = tpu.matmul %28, %34, %cst_19 {dimension_numbers = #tpu.dot_dimension_numbers<[1], [0], [0], [1], [0, 0, 1, 1], [], []>} : vector<128x32xbf16>, vector<32x32xbf16>, vector<128x32xf32> -> vector<128x32xf32>
    %c0_20 = arith.constant 0 : index
    %c0_21 = arith.constant 0 : index
    %36 = vector.load %arg12[%c0_20, %c0_21] : memref<1x32xf32, #tpu.memory_space<vmem>>, vector<1x32xf32>
    %37 = vector.broadcast %36 : vector<1x32xf32> to vector<128x32xf32>
    %38 = arith.addf %35, %37 : vector<128x32xf32>
    %c0_22 = arith.constant 0 : index
    %c0_23 = arith.constant 0 : index
    %39 = vector.load %arg10[%c0_22, %c0_23] : memref<32x32xbf16, #tpu.memory_space<vmem>>, vector<32x32xbf16>
    %cst_24 = arith.constant dense<0.000000e+00> : vector<128x32xf32>
    %40 = tpu.matmul %28, %39, %cst_24 {dimension_numbers = #tpu.dot_dimension_numbers<[1], [0], [0], [1], [0, 0, 1, 1], [], []>} : vector<128x32xbf16>, vector<32x32xbf16>, vector<128x32xf32> -> vector<128x32xf32>
    %c0_25 = arith.constant 0 : index
    %c0_26 = arith.constant 0 : index
    %41 = vector.load %arg13[%c0_25, %c0_26] : memref<1x32xf32, #tpu.memory_space<vmem>>, vector<1x32xf32>
    %42 = vector.broadcast %41 : vector<1x32xf32> to vector<128x32xf32>
    %43 = arith.addf %40, %42 : vector<128x32xf32>
    %c0_27 = arith.constant 0 : index
    %c0_28 = arith.constant 0 : index
    %44 = vector.load %arg5[%c0_27, %c0_28] : memref<256x32xf32, #tpu.memory_space<vmem>>, vector<256x32xf32>
    %45 = arith.truncf %44 : vector<256x32xf32> to vector<256x32xbf16>
    %c0_29 = arith.constant 0 : index
    %c0_30 = arith.constant 0 : index
    %46 = vector.load %arg4[%c0_29, %c0_30] : memref<64x256xf32, #tpu.memory_space<vmem>>, vector<64x256xf32>
    %47 = vector.extract_strided_slice %33 {offsets = [0, 0], sizes = [64, 32], strides = [1, 1]} : vector<128x32xf32> to vector<64x32xf32>
    %48 = arith.truncf %47 : vector<64x32xf32> to vector<64x32xbf16>
    %49 = vector.extract_strided_slice %38 {offsets = [0, 0], sizes = [64, 32], strides = [1, 1]} : vector<128x32xf32> to vector<64x32xf32>
    %50 = vector.extract_strided_slice %43 {offsets = [0, 0], sizes = [64, 32], strides = [1, 1]} : vector<128x32xf32> to vector<64x32xf32>
    %51 = tpu.concatenate %49, %49, %49, %49 in 0 : vector<64x32xf32>, vector<64x32xf32>, vector<64x32xf32>, vector<64x32xf32> -> vector<256x32xf32>
    %52 = arith.mulf %51, %44 : vector<256x32xf32>
    %53 = arith.truncf %52 : vector<256x32xf32> to vector<256x32xbf16>
    %54 = tpu.concatenate %50, %50, %50, %50 in 0 : vector<64x32xf32>, vector<64x32xf32>, vector<64x32xf32>, vector<64x32xf32> -> vector<256x32xf32>
    %55 = arith.mulf %54, %44 : vector<256x32xf32>
    %56 = arith.truncf %55 : vector<256x32xf32> to vector<256x32xbf16>
    %cst_31 = arith.constant dense<0.000000e+00> : vector<64x256xf32>
    %57 = tpu.matmul %48, %53, %cst_31 {dimension_numbers = #tpu.dot_dimension_numbers<[1], [1], [0], [0], [0, 0, 1, 0], [], []>} : vector<64x32xbf16>, vector<256x32xbf16>, vector<64x256xf32> -> vector<64x256xf32>
    %58 = arith.addf %57, %46 : vector<64x256xf32>
    %cst_32 = arith.constant dense<0xFF800000> : vector<64xf32>
    %59 = vector.multi_reduction <maximumf>, %58, %cst_32 [1] : vector<64x256xf32> to vector<64xf32>
    %60 = vector.shape_cast %59 : vector<64xf32> to vector<64x1xf32>
    %61 = vector.broadcast %60 : vector<64x1xf32> to vector<64x256xf32>
    %62 = arith.subf %58, %61 : vector<64x256xf32>
    %63 = math.exp %62 : vector<64x256xf32>
    %64 = arith.truncf %63 : vector<64x256xf32> to vector<64x256xbf16>
    %cst_33 = arith.constant dense<0.000000e+00> : vector<64x32xf32>
    %65 = tpu.matmul %64, %56, %cst_33 {dimension_numbers = #tpu.dot_dimension_numbers<[1], [0], [0], [1], [0, 0, 1, 1], [], []>} : vector<64x256xbf16>, vector<256x32xbf16>, vector<64x32xf32> -> vector<64x32xf32>
    %cst_34 = arith.constant dense<0.000000e+00> : vector<64x32xf32>
    %66 = tpu.matmul %64, %45, %cst_34 {dimension_numbers = #tpu.dot_dimension_numbers<[1], [0], [0], [1], [0, 0, 1, 1], [], []>} : vector<64x256xbf16>, vector<256x32xbf16>, vector<64x32xf32> -> vector<64x32xf32>
    %67 = tpu.reciprocal %66 {approx = true} : vector<64x32xf32> -> vector<64x32xf32>
    %68 = arith.mulf %65, %67 : vector<64x32xf32>
    %69 = vector.extract_strided_slice %33 {offsets = [64, 0], sizes = [64, 32], strides = [1, 1]} : vector<128x32xf32> to vector<64x32xf32>
    %70 = arith.truncf %69 : vector<64x32xf32> to vector<64x32xbf16>
    %71 = vector.extract_strided_slice %38 {offsets = [64, 0], sizes = [64, 32], strides = [1, 1]} : vector<128x32xf32> to vector<64x32xf32>
    %72 = vector.extract_strided_slice %43 {offsets = [64, 0], sizes = [64, 32], strides = [1, 1]} : vector<128x32xf32> to vector<64x32xf32>
    %73 = tpu.concatenate %71, %71, %71, %71 in 0 : vector<64x32xf32>, vector<64x32xf32>, vector<64x32xf32>, vector<64x32xf32> -> vector<256x32xf32>
    %74 = arith.mulf %73, %44 : vector<256x32xf32>
    %75 = arith.truncf %74 : vector<256x32xf32> to vector<256x32xbf16>
    %76 = tpu.concatenate %72, %72, %72, %72 in 0 : vector<64x32xf32>, vector<64x32xf32>, vector<64x32xf32>, vector<64x32xf32> -> vector<256x32xf32>
    %77 = arith.mulf %76, %44 : vector<256x32xf32>
    %78 = arith.truncf %77 : vector<256x32xf32> to vector<256x32xbf16>
    %cst_35 = arith.constant dense<0.000000e+00> : vector<64x256xf32>
    %79 = tpu.matmul %70, %75, %cst_35 {dimension_numbers = #tpu.dot_dimension_numbers<[1], [1], [0], [0], [0, 0, 1, 0], [], []>} : vector<64x32xbf16>, vector<256x32xbf16>, vector<64x256xf32> -> vector<64x256xf32>
    %80 = arith.addf %79, %46 : vector<64x256xf32>
    %cst_36 = arith.constant dense<0xFF800000> : vector<64xf32>
    %81 = vector.multi_reduction <maximumf>, %80, %cst_36 [1] : vector<64x256xf32> to vector<64xf32>
    %82 = vector.shape_cast %81 : vector<64xf32> to vector<64x1xf32>
    %83 = vector.broadcast %82 : vector<64x1xf32> to vector<64x256xf32>
    %84 = arith.subf %80, %83 : vector<64x256xf32>
    %85 = math.exp %84 : vector<64x256xf32>
    %86 = arith.truncf %85 : vector<64x256xf32> to vector<64x256xbf16>
    %cst_37 = arith.constant dense<0.000000e+00> : vector<64x32xf32>
    %87 = tpu.matmul %86, %78, %cst_37 {dimension_numbers = #tpu.dot_dimension_numbers<[1], [0], [0], [1], [0, 0, 1, 1], [], []>} : vector<64x256xbf16>, vector<256x32xbf16>, vector<64x32xf32> -> vector<64x32xf32>
    %cst_38 = arith.constant dense<0.000000e+00> : vector<64x32xf32>
    %88 = tpu.matmul %86, %45, %cst_38 {dimension_numbers = #tpu.dot_dimension_numbers<[1], [0], [0], [1], [0, 0, 1, 1], [], []>} : vector<64x256xbf16>, vector<256x32xbf16>, vector<64x32xf32> -> vector<64x32xf32>
    %89 = tpu.reciprocal %88 {approx = true} : vector<64x32xf32> -> vector<64x32xf32>
    %90 = arith.mulf %87, %89 : vector<64x32xf32>
    %91 = tpu.concatenate %68, %90 in 0 : vector<64x32xf32>, vector<64x32xf32> -> vector<128x32xf32>
    %92 = arith.truncf %91 : vector<128x32xf32> to vector<128x32xbf16>
    %c0_39 = arith.constant 0 : index
    %c0_40 = arith.constant 0 : index
    %93 = vector.load %arg14[%c0_39, %c0_40] : memref<32x32xbf16, #tpu.memory_space<vmem>>, vector<32x32xbf16>
    %cst_41 = arith.constant dense<0.000000e+00> : vector<128x32xf32>
    %94 = tpu.matmul %92, %93, %cst_41 {dimension_numbers = #tpu.dot_dimension_numbers<[1], [0], [0], [1], [0, 0, 1, 1], [], []>} : vector<128x32xbf16>, vector<32x32xbf16>, vector<128x32xf32> -> vector<128x32xf32>
    %c0_42 = arith.constant 0 : index
    %c0_43 = arith.constant 0 : index
    %95 = vector.load %arg15[%c0_42, %c0_43] : memref<1x32xf32, #tpu.memory_space<vmem>>, vector<1x32xf32>
    %96 = vector.broadcast %95 : vector<1x32xf32> to vector<128x32xf32>
    %97 = arith.addf %94, %96 : vector<128x32xf32>
    %c0_44 = arith.constant 0 : index
    %c0_45 = arith.constant 0 : index
    %98 = vector.load %arg3[%c0_44, %c0_45] : memref<128x128xbf16, #tpu.memory_space<vmem>>, vector<128x128xbf16>
    %99 = arith.truncf %97 : vector<128x32xf32> to vector<128x32xbf16>
    %cst_46 = arith.constant dense<0.000000e+00> : vector<128x32xf32>
    %100 = tpu.matmul %98, %99, %cst_46 {dimension_numbers = #tpu.dot_dimension_numbers<[1], [0], [0], [1], [0, 0, 1, 1], [], []>} : vector<128x128xbf16>, vector<128x32xbf16>, vector<128x32xf32> -> vector<128x32xf32>
    %101 = arith.addf %0, %100 : vector<128x32xf32>
    %cst_47 = arith.constant dense<0.000000e+00> : vector<128xf32>
    %102 = vector.multi_reduction <add>, %101, %cst_47 [1] : vector<128x32xf32> to vector<128xf32>
    %103 = vector.shape_cast %102 : vector<128xf32> to vector<128x1xf32>
    %cst_48 = arith.constant 3.200000e+01 : f32
    %104 = vector.broadcast %cst_48 : f32 to vector<128x1xf32>
    %105 = arith.divf %103, %104 : vector<128x1xf32>
    %106 = vector.broadcast %105 : vector<128x1xf32> to vector<128x32xf32>
    %107 = arith.subf %101, %106 : vector<128x32xf32>
    %108 = arith.mulf %107, %107 : vector<128x32xf32>
    %cst_49 = arith.constant dense<0.000000e+00> : vector<128xf32>
    %109 = vector.multi_reduction <add>, %108, %cst_49 [1] : vector<128x32xf32> to vector<128xf32>
    %110 = vector.shape_cast %109 : vector<128xf32> to vector<128x1xf32>
    %cst_50 = arith.constant 3.200000e+01 : f32
    %111 = vector.broadcast %cst_50 : f32 to vector<128x1xf32>
    %112 = arith.divf %110, %111 : vector<128x1xf32>
    %113 = vector.broadcast %105 : vector<128x1xf32> to vector<128x32xf32>
    %114 = arith.subf %101, %113 : vector<128x32xf32>
    %cst_51 = arith.constant 9.99999974E-6 : f32
    %115 = vector.broadcast %cst_51 : f32 to vector<128x1xf32>
    %116 = arith.addf %112, %115 : vector<128x1xf32>
    %117 = math.rsqrt %116 : vector<128x1xf32>
    %118 = vector.broadcast %117 : vector<128x1xf32> to vector<128x32xf32>
    %119 = arith.mulf %114, %118 : vector<128x32xf32>
    %c0_52 = arith.constant 0 : index
    %c0_53 = arith.constant 0 : index
    %120 = vector.load %arg16[%c0_52, %c0_53] : memref<1x32xf32, #tpu.memory_space<vmem>>, vector<1x32xf32>
    %121 = vector.broadcast %120 : vector<1x32xf32> to vector<128x32xf32>
    %122 = arith.mulf %119, %121 : vector<128x32xf32>
    %c0_54 = arith.constant 0 : index
    %c0_55 = arith.constant 0 : index
    %123 = vector.load %arg17[%c0_54, %c0_55] : memref<1x32xf32, #tpu.memory_space<vmem>>, vector<1x32xf32>
    %124 = vector.broadcast %123 : vector<1x32xf32> to vector<128x32xf32>
    %125 = arith.addf %122, %124 : vector<128x32xf32>
    %126 = arith.truncf %125 : vector<128x32xf32> to vector<128x32xbf16>
    %c0_56 = arith.constant 0 : index
    %c0_57 = arith.constant 0 : index
    %127 = vector.load %arg18[%c0_56, %c0_57] : memref<32x128xbf16, #tpu.memory_space<vmem>>, vector<32x128xbf16>
    %cst_58 = arith.constant dense<0.000000e+00> : vector<128x128xf32>
    %128 = tpu.matmul %126, %127, %cst_58 {dimension_numbers = #tpu.dot_dimension_numbers<[1], [0], [0], [1], [0, 0, 1, 1], [], []>} : vector<128x32xbf16>, vector<32x128xbf16>, vector<128x128xf32> -> vector<128x128xf32>
    %c0_59 = arith.constant 0 : index
    %c0_60 = arith.constant 0 : index
    %129 = vector.load %arg19[%c0_59, %c0_60] : memref<1x128xf32, #tpu.memory_space<vmem>>, vector<1x128xf32>
    %130 = vector.broadcast %129 : vector<1x128xf32> to vector<128x128xf32>
    %131 = arith.addf %128, %130 : vector<128x128xf32>
    %cst_61 = arith.constant 0.707106769 : f32
    %132 = vector.broadcast %cst_61 : f32 to vector<128x128xf32>
    %133 = arith.mulf %131, %132 : vector<128x128xf32>
    %134 = math.absf %133 : vector<128x128xf32>
    %cst_62 = arith.constant 0.327591091 : f32
    %135 = vector.broadcast %cst_62 : f32 to vector<128x128xf32>
    %136 = arith.mulf %135, %134 : vector<128x128xf32>
    %cst_63 = arith.constant 1.000000e+00 : f32
    %137 = vector.broadcast %cst_63 : f32 to vector<128x128xf32>
    %138 = arith.addf %137, %136 : vector<128x128xf32>
    %cst_64 = arith.constant 1.000000e+00 : f32
    %139 = vector.broadcast %cst_64 : f32 to vector<128x128xf32>
    %140 = arith.divf %139, %138 : vector<128x128xf32>
    %cst_65 = arith.constant 1.06140542 : f32
    %141 = vector.broadcast %cst_65 : f32 to vector<128x128xf32>
    %142 = arith.mulf %141, %140 : vector<128x128xf32>
    %cst_66 = arith.constant -1.45315206 : f32
    %143 = vector.broadcast %cst_66 : f32 to vector<128x128xf32>
    %144 = arith.addf %142, %143 : vector<128x128xf32>
    %145 = arith.mulf %144, %140 : vector<128x128xf32>
    %cst_67 = arith.constant 1.42141378 : f32
    %146 = vector.broadcast %cst_67 : f32 to vector<128x128xf32>
    %147 = arith.addf %145, %146 : vector<128x128xf32>
    %148 = arith.mulf %147, %140 : vector<128x128xf32>
    %cst_68 = arith.constant -0.284496725 : f32
    %149 = vector.broadcast %cst_68 : f32 to vector<128x128xf32>
    %150 = arith.addf %148, %149 : vector<128x128xf32>
    %151 = arith.mulf %150, %140 : vector<128x128xf32>
    %cst_69 = arith.constant 0.254829586 : f32
    %152 = vector.broadcast %cst_69 : f32 to vector<128x128xf32>
    %153 = arith.addf %151, %152 : vector<128x128xf32>
    %154 = arith.mulf %153, %140 : vector<128x128xf32>
    %cst_70 = arith.constant 0.000000e+00 : f32
    %155 = vector.broadcast %cst_70 : f32 to vector<128x128xf32>
    %156 = arith.subf %155, %134 : vector<128x128xf32>
    %157 = arith.mulf %156, %134 : vector<128x128xf32>
    %158 = math.exp %157 : vector<128x128xf32>
    %159 = arith.mulf %154, %158 : vector<128x128xf32>
    %cst_71 = arith.constant 1.000000e+00 : f32
    %160 = vector.broadcast %cst_71 : f32 to vector<128x128xf32>
    %161 = arith.subf %160, %159 : vector<128x128xf32>
    %cst_72 = arith.constant 0.000000e+00 : f32
    %162 = vector.broadcast %cst_72 : f32 to vector<128x128xf32>
    %163 = arith.cmpf oge, %133, %162 : vector<128x128xf32>
    %cst_73 = arith.constant 0.000000e+00 : f32
    %164 = vector.broadcast %cst_73 : f32 to vector<128x128xf32>
    %165 = arith.subf %164, %161 : vector<128x128xf32>
    %166 = arith.select %163, %161, %165 : vector<128x128xi1>, vector<128x128xf32>
    %cst_74 = arith.constant 5.000000e-01 : f32
    %167 = vector.broadcast %cst_74 : f32 to vector<128x128xf32>
    %168 = arith.mulf %167, %131 : vector<128x128xf32>
    %cst_75 = arith.constant 1.000000e+00 : f32
    %169 = vector.broadcast %cst_75 : f32 to vector<128x128xf32>
    %170 = arith.addf %169, %166 : vector<128x128xf32>
    %171 = arith.mulf %168, %170 : vector<128x128xf32>
    %172 = arith.truncf %171 : vector<128x128xf32> to vector<128x128xbf16>
    %c0_76 = arith.constant 0 : index
    %c0_77 = arith.constant 0 : index
    %173 = vector.load %arg20[%c0_76, %c0_77] : memref<128x32xbf16, #tpu.memory_space<vmem>>, vector<128x32xbf16>
    %cst_78 = arith.constant dense<0.000000e+00> : vector<128x32xf32>
    %174 = tpu.matmul %172, %173, %cst_78 {dimension_numbers = #tpu.dot_dimension_numbers<[1], [0], [0], [1], [0, 0, 1, 1], [], []>} : vector<128x128xbf16>, vector<128x32xbf16>, vector<128x32xf32> -> vector<128x32xf32>
    %c0_79 = arith.constant 0 : index
    %c0_80 = arith.constant 0 : index
    %175 = vector.load %arg21[%c0_79, %c0_80] : memref<1x32xf32, #tpu.memory_space<vmem>>, vector<1x32xf32>
    %176 = vector.broadcast %175 : vector<1x32xf32> to vector<128x32xf32>
    %177 = arith.addf %174, %176 : vector<128x32xf32>
    %178 = arith.addf %101, %177 : vector<128x32xf32>
    %c0_81 = arith.constant 0 : index
    %c0_82 = arith.constant 0 : index
    %179 = vector.load %arg22[%c0_81, %c0_82] : memref<128x32xf32, #tpu.memory_space<vmem>>, vector<128x32xf32>
    tpu.vector_store %arg22[%c0_81, %c0_82], %178 {strides = array<i32>} : memref<128x32xf32, #tpu.memory_space<vmem>>, vector<128x32xf32>,
    return
  }
  func.func @transform_0(%arg0: i32) -> (i32, i32) {
    %c0_i32 = arith.constant 0 : i32
    %c0_i32_0 = arith.constant 0 : i32
    return %arg0, %c0_i32 : i32, i32
  }
  func.func @transform_1(%arg0: i32) -> (i32, i32) {
    %c0_i32 = arith.constant 0 : i32
    %c0_i32_0 = arith.constant 0 : i32
    %c0_i32_1 = arith.constant 0 : i32
    return %c0_i32, %c0_i32_0 : i32, i32
  }
  func.func @transform_2(%arg0: i32) -> (i32, i32) {
    %c0_i32 = arith.constant 0 : i32
    %c0_i32_0 = arith.constant 0 : i32
    %c0_i32_1 = arith.constant 0 : i32
    return %c0_i32, %c0_i32_0 : i32, i32
  }
  func.func @transform_3(%arg0: i32) -> (i32, i32) {
    %c0_i32 = arith.constant 0 : i32
    %c0_i32_0 = arith.constant 0 : i32
    %c0_i32_1 = arith.constant 0 : i32
    return %c0_i32, %c0_i32_0 : i32, i32
  }
  func.func @transform_4(%arg0: i32) -> (i32, i32) {
    %c0_i32 = arith.constant 0 : i32
    %c0_i32_0 = arith.constant 0 : i32
    %c0_i32_1 = arith.constant 0 : i32
    return %c0_i32, %c0_i32_0 : i32, i32
  }
  func.func @transform_5(%arg0: i32) -> (i32, i32) {
    %c0_i32 = arith.constant 0 : i32
    %c0_i32_0 = arith.constant 0 : i32
    %c0_i32_1 = arith.constant 0 : i32
    return %c0_i32, %c0_i32_0 : i32, i32
  }
  func.func @transform_6(%arg0: i32) -> (i32, i32) {
    %c0_i32 = arith.constant 0 : i32
    %c0_i32_0 = arith.constant 0 : i32
    %c0_i32_1 = arith.constant 0 : i32
    return %c0_i32, %c0_i32_0 : i32, i32
  }
  func.func @transform_7(%arg0: i32) -> (i32, i32) {
    %c0_i32 = arith.constant 0 : i32
    %c0_i32_0 = arith.constant 0 : i32
    %c0_i32_1 = arith.constant 0 : i32
    return %c0_i32, %c0_i32_0 : i32, i32
  }
  func.func @transform_8(%arg0: i32) -> (i32, i32) {
    %c0_i32 = arith.constant 0 : i32
    %c0_i32_0 = arith.constant 0 : i32
    %c0_i32_1 = arith.constant 0 : i32
    return %c0_i32, %c0_i32_0 : i32, i32
  }
  func.func @transform_9(%arg0: i32) -> (i32, i32) {
    %c0_i32 = arith.constant 0 : i32
    %c0_i32_0 = arith.constant 0 : i32
    %c0_i32_1 = arith.constant 0 : i32
    return %c0_i32, %c0_i32_0 : i32, i32
  }
  func.func @transform_10(%arg0: i32) -> (i32, i32) {
    %c0_i32 = arith.constant 0 : i32
    %c0_i32_0 = arith.constant 0 : i32
    %c0_i32_1 = arith.constant 0 : i32
    return %c0_i32, %c0_i32_0 : i32, i32
  }
  func.func @transform_11(%arg0: i32) -> (i32, i32) {
    %c0_i32 = arith.constant 0 : i32
    %c0_i32_0 = arith.constant 0 : i32
    %c0_i32_1 = arith.constant 0 : i32
    return %c0_i32, %c0_i32_0 : i32, i32
  }
  func.func @transform_12(%arg0: i32) -> (i32, i32) {
    %c0_i32 = arith.constant 0 : i32
    %c0_i32_0 = arith.constant 0 : i32
    %c0_i32_1 = arith.constant 0 : i32
    return %c0_i32, %c0_i32_0 : i32, i32
  }
  func.func @transform_13(%arg0: i32) -> (i32, i32) {
    %c0_i32 = arith.constant 0 : i32
    %c0_i32_0 = arith.constant 0 : i32
    %c0_i32_1 = arith.constant 0 : i32
    return %c0_i32, %c0_i32_0 : i32, i32
  }
  func.func @transform_14(%arg0: i32) -> (i32, i32) {
    %c0_i32 = arith.constant 0 : i32
    %c0_i32_0 = arith.constant 0 : i32
    %c0_i32_1 = arith.constant 0 : i32
    return %c0_i32, %c0_i32_0 : i32, i32
  }
  func.func @transform_15(%arg0: i32) -> (i32, i32) {
    %c0_i32 = arith.constant 0 : i32
    %c0_i32_0 = arith.constant 0 : i32
    %c0_i32_1 = arith.constant 0 : i32
    return %c0_i32, %c0_i32_0 : i32, i32
  }
  func.func @transform_16(%arg0: i32) -> (i32, i32) {
    %c0_i32 = arith.constant 0 : i32
    %c0_i32_0 = arith.constant 0 : i32
    %c0_i32_1 = arith.constant 0 : i32
    return %c0_i32, %c0_i32_0 : i32, i32
  }
  func.func @transform_17(%arg0: i32) -> (i32, i32) {
    %c0_i32 = arith.constant 0 : i32
    %c0_i32_0 = arith.constant 0 : i32
    %c0_i32_1 = arith.constant 0 : i32
    return %c0_i32, %c0_i32_0 : i32, i32
  }
  func.func @transform_18(%arg0: i32) -> (i32, i32) {
    %c0_i32 = arith.constant 0 : i32
    %c0_i32_0 = arith.constant 0 : i32
    %c0_i32_1 = arith.constant 0 : i32
    return %c0_i32, %c0_i32_0 : i32, i32
  }
  func.func @transform_19(%arg0: i32) -> (i32, i32) {
    %c0_i32 = arith.constant 0 : i32
    %c0_i32_0 = arith.constant 0 : i32
    %c0_i32_1 = arith.constant 0 : i32
    return %c0_i32, %c0_i32_0 : i32, i32
  }
  func.func @transform_20(%arg0: i32) -> (i32, i32) {
    %c0_i32 = arith.constant 0 : i32
    %c0_i32_0 = arith.constant 0 : i32
    %c0_i32_1 = arith.constant 0 : i32
    return %c0_i32, %c0_i32_0 : i32, i32
  }
  func.func @transform_21(%arg0: i32) -> (i32, i32) {
    %c0_i32 = arith.constant 0 : i32
    %c0_i32_0 = arith.constant 0 : i32
    return %arg0, %c0_i32 : i32, i32
  }
}

</mosaic_0001>

<llo_original>
// kernel: forward.1
$region0: #{forward.1}
  #allocation0 [shape = 'u32[]', space=smem, size = 0x4, offset = 0x4, fixed_abs, tag = 'smem constant byte address 0x4 - core index']
  #allocation1 [shape = 'u32[144,128]{1,0:T(1,128)}', space=vmem, size = 0x12000, scoped, tag = 'internal scratch']
  %s0 = inlined_call_operand.vmem [shape: f32[256,32], index: 0, kind: input, shape index: {}]
  %s1 = inlined_call_operand.vmem [shape: bf16[128,128], index: 1, kind: input, shape index: {}]
  %s2 = inlined_call_operand.vmem [shape: bf16[128,128], index: 2, kind: input, shape index: {}]
  %s3 = inlined_call_operand.vmem [shape: f32[64,256], index: 3, kind: input, shape index: {}]
  %s4 = inlined_call_operand.vmem [shape: f32[256,32], index: 4, kind: input, shape index: {}]
  %s5 = inlined_call_operand.vmem [shape: f32[1,32], index: 5, kind: input, shape index: {}]
  %s6 = inlined_call_operand.vmem [shape: f32[1,32], index: 6, kind: input, shape index: {}]
  %s7 = inlined_call_operand.vmem [shape: bf16[32,32], index: 7, kind: input, shape index: {}]
  %s8 = inlined_call_operand.vmem [shape: bf16[32,32], index: 8, kind: input, shape index: {}]
  %s9 = inlined_call_operand.vmem [shape: bf16[32,32], index: 9, kind: input, shape index: {}]
  %s10 = inlined_call_operand.vmem [shape: f32[1,32], index: 10, kind: input, shape index: {}]
  %s11 = inlined_call_operand.vmem [shape: f32[1,32], index: 11, kind: input, shape index: {}]
  %s12 = inlined_call_operand.vmem [shape: f32[1,32], index: 12, kind: input, shape index: {}]
  %s13 = inlined_call_operand.vmem [shape: bf16[32,32], index: 13, kind: input, shape index: {}]
  %s14 = inlined_call_operand.vmem [shape: f32[1,32], index: 14, kind: input, shape index: {}]
  %s15 = inlined_call_operand.vmem [shape: f32[1,32], index: 15, kind: input, shape index: {}]
  %s16 = inlined_call_operand.vmem [shape: f32[1,32], index: 16, kind: input, shape index: {}]
  %s17 = inlined_call_operand.vmem [shape: bf16[32,128], index: 17, kind: input, shape index: {}]
  %s18 = inlined_call_operand.vmem [shape: f32[1,128], index: 18, kind: input, shape index: {}]
  %s19 = inlined_call_operand.vmem [shape: bf16[128,32], index: 19, kind: input, shape index: {}]
  %s20 = inlined_call_operand.vmem [shape: f32[1,32], index: 20, kind: input, shape index: {}]
  %s21 = inlined_call_operand.vmem [shape: f32[256,32], index: 21, kind: output, shape index: {}]
  %s22 = sld [smem:[#allocation0]]
  $region117: #{forward.1} parent=0
    _
  %s24 = ssub.s32 1, %s22
  %s25 = scalar_select 0, %s24, %s22
  loop: start=0, step=1, limit=4
  $region2: #{forward.1} parent=0 // loop_pre_header
    _
  $region3: #{forward.1} parent=0 // loop_header
    %s27 = sphi 0, %s31
    %p28 = scmp.ge.s32.totalorder %s27, 4
    %s37 = sphi 0, %s39
    %s40 = sphi 0, %s37
    %s41 = sphi 0, %s40
    %s57 = sphi 0, %s41
    %s61 = sphi 0, %s61
    %s63 = sphi 0, %s61
    %s64 = sphi 0, %s63
    %s78 = sphi 0, %s64
    %s82 = sphi 0, %s82
    %s84 = sphi 0, %s82
    %s85 = sphi 0, %s84
    %s99 = sphi 0, %s85
    %s103 = sphi 0, %s103
    %s105 = sphi 0, %s103
    %s106 = sphi 0, %s105
    %s120 = sphi 0, %s106
    %s124 = sphi 0, %s124
    %s126 = sphi 0, %s124
    %s127 = sphi 0, %s126
    %s141 = sphi 0, %s127
    %s145 = sphi 0, %s145
    %s147 = sphi 0, %s145
    %s148 = sphi 0, %s147
    %s162 = sphi 0, %s148
    %s166 = sphi 0, %s166
    %s168 = sphi 0, %s166
    %s169 = sphi 0, %s168
    %s183 = sphi 0, %s169
    %s187 = sphi 0, %s187
    %s189 = sphi 0, %s187
    %s190 = sphi 0, %s189
    %s204 = sphi 0, %s190
    %s208 = sphi 0, %s208
    %s210 = sphi 0, %s208
    %s211 = sphi 0, %s210
    %s225 = sphi 0, %s211
    %s229 = sphi 0, %s229
    %s231 = sphi 0, %s229
    %s232 = sphi 0, %s231
    %s246 = sphi 0, %s232
    %s250 = sphi 0, %s250
    %s252 = sphi 0, %s250
    %s253 = sphi 0, %s252
    %s267 = sphi 0, %s253
    %s271 = sphi 0, %s271
    %s273 = sphi 0, %s271
    %s274 = sphi 0, %s273
    %s288 = sphi 0, %s274
    %s292 = sphi 0, %s292
    %s294 = sphi 0, %s292
    %s295 = sphi 0, %s294
    %s309 = sphi 0, %s295
    %s313 = sphi 0, %s313
    %s315 = sphi 0, %s313
    %s316 = sphi 0, %s315
    %s330 = sphi 0, %s316
    %s334 = sphi 0, %s334
    %s336 = sphi 0, %s334
    %s337 = sphi 0, %s336
    %s351 = sphi 0, %s337
    %s355 = sphi 0, %s355
    %s357 = sphi 0, %s355
    %s358 = sphi 0, %s357
    %s372 = sphi 0, %s358
    %s376 = sphi 0, %s376
    %s378 = sphi 0, %s376
    %s379 = sphi 0, %s378
    %s393 = sphi 0, %s379
    %s397 = sphi 0, %s397
    %s399 = sphi 0, %s397
    %s400 = sphi 0, %s399
    %s414 = sphi 0, %s400
    %s418 = sphi 0, %s418
    %s420 = sphi 0, %s418
    %s421 = sphi 0, %s420
    %s435 = sphi 0, %s421
    %s439 = sphi 0, %s439
    %s441 = sphi 0, %s439
    %s442 = sphi 0, %s441
    %s456 = sphi 0, %s442
    %s460 = sphi 0, %s460
    %s462 = sphi 0, %s460
    %s463 = sphi 0, %s462
    %s477 = sphi 0, %s463
    %s483 = sphi 0, %s485
    %s486 = sphi 0, %s483
    %s487 = sphi 0, %s486
    %s503 = sphi 0, %s487
  $region4: #{forward.1} parent=0 // loop_header_branch
    %30 = sbr.rel (%p28) target = $region8
  $region5: #{forward.1} parent=0 // loop_body
    %s32 = ssub.s32 %s27, 1
    %s33 = ssub.s32 %s27, 2
    %s34 = sadd.s32 %s27, 1
    %s35 = ssub.s32 %s27, %s34
    %p36 = scmp.eq.s32.totalorder %s35, 0
    %s38 = sadd.s32 %s37, 1
    %s39 = scalar_select %p36, %s37, %s38
    %p42 = pneg %p36
    %p43 = scmp.eq.s32.totalorder %s27, 1
    %p44 = por %p42, %p43
    %p45 = scmp.ne.s32.totalorder %s37, %s40
    %p46 = scmp.eq.s32.totalorder %s27, 0
    %p47 = por %p45, %p46
    %p48 = scmp.ne.s32.totalorder %s37, %s40
    %p49 = scmp.eq.s32.totalorder %s32, 1
    %p50 = por %p48, %p49
    %p51 = scmp.ne.s32.totalorder %s40, %s41
    %p52 = scmp.eq.s32.totalorder %s32, 0
    %p53 = por %p51, %p52
    %p54 = scmp.ne.s32.totalorder %s40, %s41
    %p55 = scmp.eq.s32.totalorder %s33, 1
    %p56 = por %p54, %p55
    %p58 = scmp.ne.s32.totalorder %s41, %s57
    %p59 = scmp.eq.s32.totalorder %s33, 0
    %p60 = por %p58, %p59
    %s62 = sadd.s32 %s61, 1
    %p65 = scmp.eq.s32.totalorder %s27, 1
    %p66 = scmp.ne.s32.totalorder %s61, %s63
    %p67 = scmp.eq.s32.totalorder %s27, 0
    %p68 = por %p66, %p67
    %p69 = scmp.ne.s32.totalorder %s61, %s63
    %p70 = scmp.eq.s32.totalorder %s32, 1
    %p71 = por %p69, %p70
    %p72 = scmp.ne.s32.totalorder %s63, %s64
    %p73 = scmp.eq.s32.totalorder %s32, 0
    %p74 = por %p72, %p73
    %p75 = scmp.ne.s32.totalorder %s63, %s64
    %p76 = scmp.eq.s32.totalorder %s33, 1
    %p77 = por %p75, %p76
    %p79 = scmp.ne.s32.totalorder %s64, %s78
    %p80 = scmp.eq.s32.totalorder %s33, 0
    %p81 = por %p79, %p80
    %s83 = sadd.s32 %s82, 1
    %p86 = scmp.eq.s32.totalorder %s27, 1
    %p87 = scmp.ne.s32.totalorder %s82, %s84
    %p88 = scmp.eq.s32.totalorder %s27, 0
    %p89 = por %p87, %p88
    %p90 = scmp.ne.s32.totalorder %s82, %s84
    %p91 = scmp.eq.s32.totalorder %s32, 1
    %p92 = por %p90, %p91
    %p93 = scmp.ne.s32.totalorder %s84, %s85
    %p94 = scmp.eq.s32.totalorder %s32, 0
    %p95 = por %p93, %p94
    %p96 = scmp.ne.s32.totalorder %s84, %s85
    %p97 = scmp.eq.s32.totalorder %s33, 1
    %p98 = por %p96, %p97
    %p100 = scmp.ne.s32.totalorder %s85, %s99
    %p101 = scmp.eq.s32.totalorder %s33, 0
    %p102 = por %p100, %p101
    %s104 = sadd.s32 %s103, 1
    %p107 = scmp.eq.s32.totalorder %s27, 1
    %p108 = scmp.ne.s32.totalorder %s103, %s105
    %p109 = scmp.eq.s32.totalorder %s27, 0
    %p110 = por %p108, %p109
    %p111 = scmp.ne.s32.totalorder %s103, %s105
    %p112 = scmp.eq.s32.totalorder %s32, 1
    %p113 = por %p111, %p112
    %p114 = scmp.ne.s32.totalorder %s105, %s106
    %p115 = scmp.eq.s32.totalorder %s32, 0
    %p116 = por %p114, %p115
    %p117 = scmp.ne.s32.totalorder %s105, %s106
    %p118 = scmp.eq.s32.totalorder %s33, 1
    %p119 = por %p117, %p118
    %p121 = scmp.ne.s32.totalorder %s106, %s120
    %p122 = scmp.eq.s32.totalorder %s33, 0
    %p123 = por %p121, %p122
    %s125 = sadd.s32 %s124, 1
    %p128 = scmp.eq.s32.totalorder %s27, 1
    %p129 = scmp.ne.s32.totalorder %s124, %s126
    %p130 = scmp.eq.s32.totalorder %s27, 0
    %p131 = por %p129, %p130
    %p132 = scmp.ne.s32.totalorder %s124, %s126
    %p133 = scmp.eq.s32.totalorder %s32, 1
    %p134 = por %p132, %p133
    %p135 = scmp.ne.s32.totalorder %s126, %s127
    %p136 = scmp.eq.s32.totalorder %s32, 0
    %p137 = por %p135, %p136
    %p138 = scmp.ne.s32.totalorder %s126, %s127
    %p139 = scmp.eq.s32.totalorder %s33, 1
    %p140 = por %p138, %p139
    %p142 = scmp.ne.s32.totalorder %s127, %s141
    %p143 = scmp.eq.s32.totalorder %s33, 0
    %p144 = por %p142, %p143
    %s146 = sadd.s32 %s145, 1
    %p149 = scmp.eq.s32.totalorder %s27, 1
    %p150 = scmp.ne.s32.totalorder %s145, %s147
    %p151 = scmp.eq.s32.totalorder %s27, 0
    %p152 = por %p150, %p151
    %p153 = scmp.ne.s32.totalorder %s145, %s147
    %p154 = scmp.eq.s32.totalorder %s32, 1
    %p155 = por %p153, %p154
    %p156 = scmp.ne.s32.totalorder %s147, %s148
    %p157 = scmp.eq.s32.totalorder %s32, 0
    %p158 = por %p156, %p157
    %p159 = scmp.ne.s32.totalorder %s147, %s148
    %p160 = scmp.eq.s32.totalorder %s33, 1
    %p161 = por %p159, %p160
    %p163 = scmp.ne.s32.totalorder %s148, %s162
    %p164 = scmp.eq.s32.totalorder %s33, 0
    %p165 = por %p163, %p164
    %s167 = sadd.s32 %s166, 1
    %p170 = scmp.eq.s32.totalorder %s27, 1
    %p171 = scmp.ne.s32.totalorder %s166, %s168
    %p172 = scmp.eq.s32.totalorder %s27, 0
    %p173 = por %p171, %p172
    %p174 = scmp.ne.s32.totalorder %s166, %s168
    %p175 = scmp.eq.s32.totalorder %s32, 1
    %p176 = por %p174, %p175
    %p177 = scmp.ne.s32.totalorder %s168, %s169
    %p178 = scmp.eq.s32.totalorder %s32, 0
    %p179 = por %p177, %p178
    %p180 = scmp.ne.s32.totalorder %s168, %s169
    %p181 = scmp.eq.s32.totalorder %s33, 1
    %p182 = por %p180, %p181
    %p184 = scmp.ne.s32.totalorder %s169, %s183
    %p185 = scmp.eq.s32.totalorder %s33, 0
    %p186 = por %p184, %p185
    %s188 = sadd.s32 %s187, 1
    %p191 = scmp.eq.s32.totalorder %s27, 1
    %p192 = scmp.ne.s32.totalorder %s187, %s189
    %p193 = scmp.eq.s32.totalorder %s27, 0
    %p194 = por %p192, %p193
    %p195 = scmp.ne.s32.totalorder %s187, %s189
    %p196 = scmp.eq.s32.totalorder %s32, 1
    %p197 = por %p195, %p196
    %p198 = scmp.ne.s32.totalorder %s189, %s190
    %p199 = scmp.eq.s32.totalorder %s32, 0
    %p200 = por %p198, %p199
    %p201 = scmp.ne.s32.totalorder %s189, %s190
    %p202 = scmp.eq.s32.totalorder %s33, 1
    %p203 = por %p201, %p202
    %p205 = scmp.ne.s32.totalorder %s190, %s204
    %p206 = scmp.eq.s32.totalorder %s33, 0
    %p207 = por %p205, %p206
    %s209 = sadd.s32 %s208, 1
    %p212 = scmp.eq.s32.totalorder %s27, 1
    %p213 = scmp.ne.s32.totalorder %s208, %s210
    %p214 = scmp.eq.s32.totalorder %s27, 0
    %p215 = por %p213, %p214
    %p216 = scmp.ne.s32.totalorder %s208, %s210
    %p217 = scmp.eq.s32.totalorder %s32, 1
    %p218 = por %p216, %p217
    %p219 = scmp.ne.s32.totalorder %s210, %s211
    %p220 = scmp.eq.s32.totalorder %s32, 0
    %p221 = por %p219, %p220
    %p222 = scmp.ne.s32.totalorder %s210, %s211
    %p223 = scmp.eq.s32.totalorder %s33, 1
    %p224 = por %p222, %p223
    %p226 = scmp.ne.s32.totalorder %s211, %s225
    %p227 = scmp.eq.s32.totalorder %s33, 0
    %p228 = por %p226, %p227
    %s230 = sadd.s32 %s229, 1
    %p233 = scmp.eq.s32.totalorder %s27, 1
    %p234 = scmp.ne.s32.totalorder %s229, %s231
    %p235 = scmp.eq.s32.totalorder %s27, 0
    %p236 = por %p234, %p235
    %p237 = scmp.ne.s32.totalorder %s229, %s231
    %p238 = scmp.eq.s32.totalorder %s32, 1
    %p239 = por %p237, %p238
    %p240 = scmp.ne.s32.totalorder %s231, %s232
    %p241 = scmp.eq.s32.totalorder %s32, 0
    %p242 = por %p240, %p241
    %p243 = scmp.ne.s32.totalorder %s231, %s232
    %p244 = scmp.eq.s32.totalorder %s33, 1
    %p245 = por %p243, %p244
    %p247 = scmp.ne.s32.totalorder %s232, %s246
    %p248 = scmp.eq.s32.totalorder %s33, 0
    %p249 = por %p247, %p248
    %s251 = sadd.s32 %s250, 1
    %p254 = scmp.eq.s32.totalorder %s27, 1
    %p255 = scmp.ne.s32.totalorder %s250, %s252
    %p256 = scmp.eq.s32.totalorder %s27, 0
    %p257 = por %p255, %p256
    %p258 = scmp.ne.s32.totalorder %s250, %s252
    %p259 = scmp.eq.s32.totalorder %s32, 1
    %p260 = por %p258, %p259
    %p261 = scmp.ne.s32.totalorder %s252, %s253
    %p262 = scmp.eq.s32.totalorder %s32, 0
    %p263 = por %p261, %p262
    %p264 = scmp.ne.s32.totalorder %s252, %s253
    %p265 = scmp.eq.s32.totalorder %s33, 1
    %p266 = por %p264, %p265
    %p268 = scmp.ne.s32.totalorder %s253, %s267
    %p269 = scmp.eq.s32.totalorder %s33, 0
    %p270 = por %p268, %p269
    %s272 = sadd.s32 %s271, 1
    %p275 = scmp.eq.s32.totalorder %s27, 1
    %p276 = scmp.ne.s32.totalorder %s271, %s273
    %p277 = scmp.eq.s32.totalorder %s27, 0
    %p278 = por %p276, %p277
    %p279 = scmp.ne.s32.totalorder %s271, %s273
    %p280 = scmp.eq.s32.totalorder %s32, 1
    %p281 = por %p279, %p280
    %p282 = scmp.ne.s32.totalorder %s273, %s274
    %p283 = scmp.eq.s32.totalorder %s32, 0
    %p284 = por %p282, %p283
    %p285 = scmp.ne.s32.totalorder %s273, %s274
    %p286 = scmp.eq.s32.totalorder %s33, 1
    %p287 = por %p285, %p286
    %p289 = scmp.ne.s32.totalorder %s274, %s288
    %p290 = scmp.eq.s32.totalorder %s33, 0
    %p291 = por %p289, %p290
    %s293 = sadd.s32 %s292, 1
    %p296 = scmp.eq.s32.totalorder %s27, 1
    %p297 = scmp.ne.s32.totalorder %s292, %s294
    %p298 = scmp.eq.s32.totalorder %s27, 0
    %p299 = por %p297, %p298
    %p300 = scmp.ne.s32.totalorder %s292, %s294
    %p301 = scmp.eq.s32.totalorder %s32, 1
    %p302 = por %p300, %p301
    %p303 = scmp.ne.s32.totalorder %s294, %s295
    %p304 = scmp.eq.s32.totalorder %s32, 0
    %p305 = por %p303, %p304
    %p306 = scmp.ne.s32.totalorder %s294, %s295
    %p307 = scmp.eq.s32.totalorder %s33, 1
    %p308 = por %p306, %p307
    %p310 = scmp.ne.s32.totalorder %s295, %s309
    %p311 = scmp.eq.s32.totalorder %s33, 0
    %p312 = por %p310, %p311
    %s314 = sadd.s32 %s313, 1
    %p317 = scmp.eq.s32.totalorder %s27, 1
    %p318 = scmp.ne.s32.totalorder %s313, %s315
    %p319 = scmp.eq.s32.totalorder %s27, 0
    %p320 = por %p318, %p319
    %p321 = scmp.ne.s32.totalorder %s313, %s315
    %p322 = scmp.eq.s32.totalorder %s32, 1
    %p323 = por %p321, %p322
    %p324 = scmp.ne.s32.totalorder %s315, %s316
    %p325 = scmp.eq.s32.totalorder %s32, 0
    %p326 = por %p324, %p325
    %p327 = scmp.ne.s32.totalorder %s315, %s316
    %p328 = scmp.eq.s32.totalorder %s33, 1
    %p329 = por %p327, %p328
    %p331 = scmp.ne.s32.totalorder %s316, %s330
    %p332 = scmp.eq.s32.totalorder %s33, 0
    %p333 = por %p331, %p332
    %s335 = sadd.s32 %s334, 1
    %p338 = scmp.eq.s32.totalorder %s27, 1
    %p339 = scmp.ne.s32.totalorder %s334, %s336
    %p340 = scmp.eq.s32.totalorder %s27, 0
    %p341 = por %p339, %p340
    %p342 = scmp.ne.s32.totalorder %s334, %s336
    %p343 = scmp.eq.s32.totalorder %s32, 1
    %p344 = por %p342, %p343
    %p345 = scmp.ne.s32.totalorder %s336, %s337
    %p346 = scmp.eq.s32.totalorder %s32, 0
    %p347 = por %p345, %p346
    %p348 = scmp.ne.s32.totalorder %s336, %s337
    %p349 = scmp.eq.s32.totalorder %s33, 1
    %p350 = por %p348, %p349
    %p352 = scmp.ne.s32.totalorder %s337, %s351
    %p353 = scmp.eq.s32.totalorder %s33, 0
    %p354 = por %p352, %p353
    %s356 = sadd.s32 %s355, 1
    %p359 = scmp.eq.s32.totalorder %s27, 1
    %p360 = scmp.ne.s32.totalorder %s355, %s357
    %p361 = scmp.eq.s32.totalorder %s27, 0
    %p362 = por %p360, %p361
    %p363 = scmp.ne.s32.totalorder %s355, %s357
    %p364 = scmp.eq.s32.totalorder %s32, 1
    %p365 = por %p363, %p364
    %p366 = scmp.ne.s32.totalorder %s357, %s358
    %p367 = scmp.eq.s32.totalorder %s32, 0
    %p368 = por %p366, %p367
    %p369 = scmp.ne.s32.totalorder %s357, %s358
    %p370 = scmp.eq.s32.totalorder %s33, 1
    %p371 = por %p369, %p370
    %p373 = scmp.ne.s32.totalorder %s358, %s372
    %p374 = scmp.eq.s32.totalorder %s33, 0
    %p375 = por %p373, %p374
    %s377 = sadd.s32 %s376, 1
    %p380 = scmp.eq.s32.totalorder %s27, 1
    %p381 = scmp.ne.s32.totalorder %s376, %s378
    %p382 = scmp.eq.s32.totalorder %s27, 0
    %p383 = por %p381, %p382
    %p384 = scmp.ne.s32.totalorder %s376, %s378
    %p385 = scmp.eq.s32.totalorder %s32, 1
    %p386 = por %p384, %p385
    %p387 = scmp.ne.s32.totalorder %s378, %s379
    %p388 = scmp.eq.s32.totalorder %s32, 0
    %p389 = por %p387, %p388
    %p390 = scmp.ne.s32.totalorder %s378, %s379
    %p391 = scmp.eq.s32.totalorder %s33, 1
    %p392 = por %p390, %p391
    %p394 = scmp.ne.s32.totalorder %s379, %s393
    %p395 = scmp.eq.s32.totalorder %s33, 0
    %p396 = por %p394, %p395
    %s398 = sadd.s32 %s397, 1
    %p401 = scmp.eq.s32.totalorder %s27, 1
    %p402 = scmp.ne.s32.totalorder %s397, %s399
    %p403 = scmp.eq.s32.totalorder %s27, 0
    %p404 = por %p402, %p403
    %p405 = scmp.ne.s32.totalorder %s397, %s399
    %p406 = scmp.eq.s32.totalorder %s32, 1
    %p407 = por %p405, %p406
    %p408 = scmp.ne.s32.totalorder %s399, %s400
    %p409 = scmp.eq.s32.totalorder %s32, 0
    %p410 = por %p408, %p409
    %p411 = scmp.ne.s32.totalorder %s399, %s400
    %p412 = scmp.eq.s32.totalorder %s33, 1
    %p413 = por %p411, %p412
    %p415 = scmp.ne.s32.totalorder %s400, %s414
    %p416 = scmp.eq.s32.totalorder %s33, 0
    %p417 = por %p415, %p416
    %s419 = sadd.s32 %s418, 1
    %p422 = scmp.eq.s32.totalorder %s27, 1
    %p423 = scmp.ne.s32.totalorder %s418, %s420
    %p424 = scmp.eq.s32.totalorder %s27, 0
    %p425 = por %p423, %p424
    %p426 = scmp.ne.s32.totalorder %s418, %s420
    %p427 = scmp.eq.s32.totalorder %s32, 1
    %p428 = por %p426, %p427
    %p429 = scmp.ne.s32.totalorder %s420, %s421
    %p430 = scmp.eq.s32.totalorder %s32, 0
    %p431 = por %p429, %p430
    %p432 = scmp.ne.s32.totalorder %s420, %s421
    %p433 = scmp.eq.s32.totalorder %s33, 1
    %p434 = por %p432, %p433
    %p436 = scmp.ne.s32.totalorder %s421, %s435
    %p437 = scmp.eq.s32.totalorder %s33, 0
    %p438 = por %p436, %p437
    %s440 = sadd.s32 %s439, 1
    %p443 = scmp.eq.s32.totalorder %s27, 1
    %p444 = scmp.ne.s32.totalorder %s439, %s441
    %p445 = scmp.eq.s32.totalorder %s27, 0
    %p446 = por %p444, %p445
    %p447 = scmp.ne.s32.totalorder %s439, %s441
    %p448 = scmp.eq.s32.totalorder %s32, 1
    %p449 = por %p447, %p448
    %p450 = scmp.ne.s32.totalorder %s441, %s442
    %p451 = scmp.eq.s32.totalorder %s32, 0
    %p452 = por %p450, %p451
    %p453 = scmp.ne.s32.totalorder %s441, %s442
    %p454 = scmp.eq.s32.totalorder %s33, 1
    %p455 = por %p453, %p454
    %p457 = scmp.ne.s32.totalorder %s442, %s456
    %p458 = scmp.eq.s32.totalorder %s33, 0
    %p459 = por %p457, %p458
    %s461 = sadd.s32 %s460, 1
    %p464 = scmp.eq.s32.totalorder %s27, 1
    %p465 = scmp.ne.s32.totalorder %s460, %s462
    %p466 = scmp.eq.s32.totalorder %s27, 0
    %p467 = por %p465, %p466
    %p468 = scmp.ne.s32.totalorder %s460, %s462
    %p469 = scmp.eq.s32.totalorder %s32, 1
    %p470 = por %p468, %p469
    %p471 = scmp.ne.s32.totalorder %s462, %s463
    %p472 = scmp.eq.s32.totalorder %s32, 0
    %p473 = por %p471, %p472
    %p474 = scmp.ne.s32.totalorder %s462, %s463
    %p475 = scmp.eq.s32.totalorder %s33, 1
    %p476 = por %p474, %p475
    %p478 = scmp.ne.s32.totalorder %s463, %s477
    %p479 = scmp.eq.s32.totalorder %s33, 0
    %p480 = por %p478, %p479
    %s481 = ssub.s32 %s27, %s34
    %p482 = scmp.eq.s32.totalorder %s481, 0
    %s484 = sadd.s32 %s483, 1
    %s485 = scalar_select %p482, %s483, %s484
    %p488 = pneg %p482
    %p489 = scmp.eq.s32.totalorder %s27, 1
    %p490 = por %p488, %p489
    %p491 = scmp.ne.s32.totalorder %s483, %s486
    %p492 = scmp.eq.s32.totalorder %s27, 0
    %p493 = por %p491, %p492
    %p494 = scmp.ne.s32.totalorder %s483, %s486
    %p495 = scmp.eq.s32.totalorder %s32, 1
    %p496 = por %p494, %p495
    %p497 = scmp.ne.s32.totalorder %s486, %s487
    %p498 = scmp.eq.s32.totalorder %s32, 0
    %p499 = por %p497, %p498
    %p500 = scmp.ne.s32.totalorder %s486, %s487
    %p501 = scmp.eq.s32.totalorder %s33, 1
    %p502 = por %p500, %p501
    %p504 = scmp.ne.s32.totalorder %s487, %s503
    %p505 = scmp.eq.s32.totalorder %s33, 0
    %p506 = por %p504, %p505
    %p507 = scmp.le.s32.totalorder 1, %s27
    %p508 = scmp.lt.s32.totalorder %s27, 3
    %p509 = pnand %p507, %p508
    %p510 = pneg %p509
    // Predicated region
    $region9: #{forward.1} parent=5 // pred_check
      _
    $region10: #{forward.1} parent=5 // pred_check_branch
      %512 = sbr.rel (%p509) target = $region12
    $region11: #{forward.1} parent=5 // pred_region
      %s513 = ssub.s32 %s27, 1
      // Predicated region
      $region13: #{forward.1} parent=11 // pred_check
        %p514 = pneg %p74
      $region14: #{forward.1} parent=11 // pred_check_branch
        %516 = sbr.rel (%p514) target = $region16
      $region15: #{forward.1} parent=11 // pred_region
        _
      $region16: #{forward.1} parent=11 // pred_fallthru
        _
      // Predicated region
      $region17: #{forward.1} parent=11 // pred_check
        %p517 = pneg %p95
      $region18: #{forward.1} parent=11 // pred_check_branch
        %519 = sbr.rel (%p517) target = $region20
      $region19: #{forward.1} parent=11 // pred_region
        _
      $region20: #{forward.1} parent=11 // pred_fallthru
        _
      // Predicated region
      $region21: #{forward.1} parent=11 // pred_check
        %p520 = pneg %p116
      $region22: #{forward.1} parent=11 // pred_check_branch
        %522 = sbr.rel (%p520) target = $region24
      $region23: #{forward.1} parent=11 // pred_region
        _
      $region24: #{forward.1} parent=11 // pred_fallthru
        _
      // Predicated region
      $region25: #{forward.1} parent=11 // pred_check
        %p523 = pneg %p137
      $region26: #{forward.1} parent=11 // pred_check_branch
        %525 = sbr.rel (%p523) target = $region28
      $region27: #{forward.1} parent=11 // pred_region
        _
      $region28: #{forward.1} parent=11 // pred_fallthru
        _
      // Predicated region
      $region29: #{forward.1} parent=11 // pred_check
        %p526 = pneg %p158
      $region30: #{forward.1} parent=11 // pred_check_branch
        %528 = sbr.rel (%p526) target = $region32
      $region31: #{forward.1} parent=11 // pred_region
        _
      $region32: #{forward.1} parent=11 // pred_fallthru
        _
      // Predicated region
      $region33: #{forward.1} parent=11 // pred_check
        %p529 = pneg %p179
      $region34: #{forward.1} parent=11 // pred_check_branch
        %531 = sbr.rel (%p529) target = $region36
      $region35: #{forward.1} parent=11 // pred_region
        _
      $region36: #{forward.1} parent=11 // pred_fallthru
        _
      // Predicated region
      $region37: #{forward.1} parent=11 // pred_check
        %p532 = pneg %p200
      $region38: #{forward.1} parent=11 // pred_check_branch
        %534 = sbr.rel (%p532) target = $region40
      $region39: #{forward.1} parent=11 // pred_region
        _
      $region40: #{forward.1} parent=11 // pred_fallthru
        _
      // Predicated region
      $region41: #{forward.1} parent=11 // pred_check
        %p535 = pneg %p221
      $region42: #{forward.1} parent=11 // pred_check_branch
        %537 = sbr.rel (%p535) target = $region44
      $region43: #{forward.1} parent=11 // pred_region
        _
      $region44: #{forward.1} parent=11 // pred_fallthru
        _
      // Predicated region
      $region45: #{forward.1} parent=11 // pred_check
        %p538 = pneg %p242
      $region46: #{forward.1} parent=11 // pred_check_branch
        %540 = sbr.rel (%p538) target = $region48
      $region47: #{forward.1} parent=11 // pred_region
        _
      $region48: #{forward.1} parent=11 // pred_fallthru
        _
      // Predicated region
      $region49: #{forward.1} parent=11 // pred_check
        %p541 = pneg %p263
      $region50: #{forward.1} parent=11 // pred_check_branch
        %543 = sbr.rel (%p541) target = $region52
      $region51: #{forward.1} parent=11 // pred_region
        _
      $region52: #{forward.1} parent=11 // pred_fallthru
        _
      // Predicated region
      $region53: #{forward.1} parent=11 // pred_check
        %p544 = pneg %p284
      $region54: #{forward.1} parent=11 // pred_check_branch
        %546 = sbr.rel (%p544) target = $region56
      $region55: #{forward.1} parent=11 // pred_region
        _
      $region56: #{forward.1} parent=11 // pred_fallthru
        _
      // Predicated region
      $region57: #{forward.1} parent=11 // pred_check
        %p547 = pneg %p305
      $region58: #{forward.1} parent=11 // pred_check_branch
        %549 = sbr.rel (%p547) target = $region60
      $region59: #{forward.1} parent=11 // pred_region
        _
      $region60: #{forward.1} parent=11 // pred_fallthru
        _
      // Predicated region
      $region61: #{forward.1} parent=11 // pred_check
        %p550 = pneg %p326
      $region62: #{forward.1} parent=11 // pred_check_branch
        %552 = sbr.rel (%p550) target = $region64
      $region63: #{forward.1} parent=11 // pred_region
        _
      $region64: #{forward.1} parent=11 // pred_fallthru
        _
      // Predicated region
      $region65: #{forward.1} parent=11 // pred_check
        %p553 = pneg %p347
      $region66: #{forward.1} parent=11 // pred_check_branch
        %555 = sbr.rel (%p553) target = $region68
      $region67: #{forward.1} parent=11 // pred_region
        _
      $region68: #{forward.1} parent=11 // pred_fallthru
        _
      // Predicated region
      $region69: #{forward.1} parent=11 // pred_check
        %p556 = pneg %p368
      $region70: #{forward.1} parent=11 // pred_check_branch
        %558 = sbr.rel (%p556) target = $region72
      $region71: #{forward.1} parent=11 // pred_region
        _
      $region72: #{forward.1} parent=11 // pred_fallthru
        _
      // Predicated region
      $region73: #{forward.1} parent=11 // pred_check
        %p559 = pneg %p389
      $region74: #{forward.1} parent=11 // pred_check_branch
        %561 = sbr.rel (%p559) target = $region76
      $region75: #{forward.1} parent=11 // pred_region
        _
      $region76: #{forward.1} parent=11 // pred_fallthru
        _
      // Predicated region
      $region77: #{forward.1} parent=11 // pred_check
        %p562 = pneg %p410
      $region78: #{forward.1} parent=11 // pred_check_branch
        %564 = sbr.rel (%p562) target = $region80
      $region79: #{forward.1} parent=11 // pred_region
        _
      $region80: #{forward.1} parent=11 // pred_fallthru
        _
      // Predicated region
      $region81: #{forward.1} parent=11 // pred_check
        %p565 = pneg %p431
      $region82: #{forward.1} parent=11 // pred_check_branch
        %567 = sbr.rel (%p565) target = $region84
      $region83: #{forward.1} parent=11 // pred_region
        _
      $region84: #{forward.1} parent=11 // pred_fallthru
        _
      // Predicated region
      $region85: #{forward.1} parent=11 // pred_check
        %p568 = pneg %p452
      $region86: #{forward.1} parent=11 // pred_check_branch
        %570 = sbr.rel (%p568) target = $region88
      $region87: #{forward.1} parent=11 // pred_region
        _
      $region88: #{forward.1} parent=11 // pred_fallthru
        _
      // Predicated region
      $region89: #{forward.1} parent=11 // pred_check
        %p571 = pneg %p473
      $region90: #{forward.1} parent=11 // pred_check_branch
        %573 = sbr.rel (%p571) target = $region92
      $region91: #{forward.1} parent=11 // pred_region
        _
      $region92: #{forward.1} parent=11 // pred_fallthru
        _
    $region12: #{forward.1} parent=5 // pred_fallthru
      _
    %p574 = scmp.lt.s32.totalorder %s27, 2
    // Predicated region
    $region93: #{forward.1} parent=5 // pred_check
      %p575 = pneg %p574
    $region94: #{forward.1} parent=5 // pred_check_branch
      %577 = sbr.rel (%p575) target = $region96
    $region95: #{forward.1} parent=5 // pred_region
      // Predicated region
      $region97: #{forward.1} parent=95 // pred_check
        %p578 = pneg %p47
      $region98: #{forward.1} parent=95 // pred_check_branch
        %580 = sbr.rel (%p578) target = $region100
      $region99: #{forward.1} parent=95 // pred_region
        %s581 = smul.u32 16, %s27
        %p582 = scmp.lt.s32.totalorder %s581, 31
        %s583 = scalar_select %p582, %s581, 31
        %s584 = smul.addr %s583, 8
        %s585 = scalar_lea.vmem %s0, %s584
        %s586 = smul.u32 16, %s27
      $region100: #{forward.1} parent=95 // pred_fallthru
        _
    $region96: #{forward.1} parent=5 // pred_fallthru
      _
    %p587 = scmp.le.s32.totalorder 1, %s27
    %p588 = scmp.lt.s32.totalorder %s27, 3
    %p589 = pnand %p587, %p588
    %p590 = pneg %p589
    // Predicated region
    $region101: #{forward.1} parent=5 // pred_check
      _
    $region102: #{forward.1} parent=5 // pred_check_branch
      %592 = sbr.rel (%p589) target = $region104
    $region103: #{forward.1} parent=5 // pred_region
      %s593 = ssub.s32 %s27, 1
      %s594 = smul.u32 16, %s32
      %p595 = scmp.lt.s32.totalorder %s594, 31
      %s596 = scalar_select %p595, %s594, 31
      %s597 = smul.addr %s596, 8
      %s598 = scalar_lea.vmem %s0, %s597
      %p599 = pneg %p53
      %p600 = pneg %p50
      %p601 = pneg %p74
      %p602 = pneg %p71
      %p603 = pneg %p95
      %p604 = pneg %p92
      %p605 = pneg %p116
      %p606 = pneg %p113
      %p607 = pneg %p137
      %p608 = pneg %p134
      %p609 = pneg %p158
      %p610 = pneg %p155
      %p611 = pneg %p179
      %p612 = pneg %p176
      %p613 = pneg %p200
      %p614 = pneg %p197
      %p615 = pneg %p221
      %p616 = pneg %p218
      %p617 = pneg %p242
      %p618 = pneg %p239
      %p619 = pneg %p263
      %p620 = pneg %p260
      %p621 = pneg %p284
      %p622 = pneg %p281
      %p623 = pneg %p305
      %p624 = pneg %p302
      %p625 = pneg %p326
      %p626 = pneg %p323
      %p627 = pneg %p347
      %p628 = pneg %p344
      %p629 = pneg %p368
      %p630 = pneg %p365
      %p631 = pneg %p389
      %p632 = pneg %p386
      %p633 = pneg %p410
      %p634 = pneg %p407
      %p635 = pneg %p431
      %p636 = pneg %p428
      %p637 = pneg %p452
      %p638 = pneg %p449
      %p639 = pneg %p473
      %p640 = pneg %p470
      %p641 = pneg %p499
      %p642 = pneg %p496
      %s643 = smul.u32 16, %s32
      %p644 = scmp.lt.s32.totalorder %s643, 31
      %s645 = scalar_select %p644, %s643, 31
      %s646 = smul.addr %s645, 8
      %s647 = scalar_lea.vmem %s21, %s646
      %s648 = smul.u32 16, %s32
      %p649 = scmp.lt.s32.totalorder %s648, 31
      %s650 = scalar_select %p649, %s648, 31
      %s651 = smul.addr %s650, 8
      %s652 = scalar_lea.vmem %s0, %s651
      %s653 = smul.u32 16, %s32
      %s654 = smul.u32 16, %s32
      %p655 = scmp.lt.s32.totalorder %s654, 31
      %s656 = scalar_select %p655, %s654, 31
      %s657 = smul.addr %s656, 8
      %s658 = scalar_lea.vmem %s21, %s657
      %s659 = smul.u32 16, %s32
      %v661 = vld [vmem:[%s652] sm:$0xff]
      %v662 = vld [vmem:[%s652 + $0x8] sm:$0xff]
      %v663 = vld [vmem:[%s652 + $0x10] sm:$0xff]
      %v664 = vld [vmem:[%s652 + $0x18] sm:$0xff]
      %v665 = vld [vmem:[%s652 + $0x20] sm:$0xff]
      %v666 = vld [vmem:[%s652 + $0x28] sm:$0xff]
      %v667 = vld [vmem:[%s652 + $0x30] sm:$0xff]
      %v668 = vld [vmem:[%s652 + $0x38] sm:$0xff]
      %v669 = vld [vmem:[%s652 + $0x40] sm:$0xff]
      %v670 = vld [vmem:[%s652 + $0x48] sm:$0xff]
      %v671 = vld [vmem:[%s652 + $0x50] sm:$0xff]
      %v672 = vld [vmem:[%s652 + $0x58] sm:$0xff]
      %v673 = vld [vmem:[%s652 + $0x60] sm:$0xff]
      %v674 = vld [vmem:[%s652 + $0x68] sm:$0xff]
      %v675 = vld [vmem:[%s652 + $0x70] sm:$0xff]
      %v676 = vld [vmem:[%s652 + $0x78] sm:$0xff]
      %vm677 = vcmask 261120
      %v678 = vsel %vm677, %v661, 0.0
      %679 = vadd.xlane.f32.xlu0 %v678
      %v680 = vpop.xlane.xlu0 %679
      %v681 = vsel %vm677, %v662, 0.0
      %682 = vadd.xlane.f32.xlu0 %v681
      %v683 = vpop.xlane.xlu0 %682
      %v684 = vsel %vm677, %v663, 0.0
      %685 = vadd.xlane.f32.xlu0 %v684
      %v686 = vpop.xlane.xlu0 %685
      %v687 = vsel %vm677, %v664, 0.0
      %688 = vadd.xlane.f32.xlu0 %v687
      %v689 = vpop.xlane.xlu0 %688
      %v690 = vsel %vm677, %v665, 0.0
      %691 = vadd.xlane.f32.xlu0 %v690
      %v692 = vpop.xlane.xlu0 %691
      %v693 = vsel %vm677, %v666, 0.0
      %694 = vadd.xlane.f32.xlu0 %v693
      %v695 = vpop.xlane.xlu0 %694
      %v696 = vsel %vm677, %v667, 0.0
      %697 = vadd.xlane.f32.xlu0 %v696
      %v698 = vpop.xlane.xlu0 %697
      %v699 = vsel %vm677, %v668, 0.0
      %700 = vadd.xlane.f32.xlu0 %v699
      %v701 = vpop.xlane.xlu0 %700
      %v702 = vsel %vm677, %v669, 0.0
      %703 = vadd.xlane.f32.xlu0 %v702
      %v704 = vpop.xlane.xlu0 %703
      %v705 = vsel %vm677, %v670, 0.0
      %706 = vadd.xlane.f32.xlu0 %v705
      %v707 = vpop.xlane.xlu0 %706
      %v708 = vsel %vm677, %v671, 0.0
      %709 = vadd.xlane.f32.xlu0 %v708
      %v710 = vpop.xlane.xlu0 %709
      %v711 = vsel %vm677, %v672, 0.0
      %712 = vadd.xlane.f32.xlu0 %v711
      %v713 = vpop.xlane.xlu0 %712
      %v714 = vsel %vm677, %v673, 0.0
      %715 = vadd.xlane.f32.xlu0 %v714
      %v716 = vpop.xlane.xlu0 %715
      %v717 = vsel %vm677, %v674, 0.0
      %718 = vadd.xlane.f32.xlu0 %v717
      %v719 = vpop.xlane.xlu0 %718
      %v720 = vsel %vm677, %v675, 0.0
      %721 = vadd.xlane.f32.xlu0 %v720
      %v722 = vpop.xlane.xlu0 %721
      %v723 = vsel %vm677, %v676, 0.0
      %724 = vadd.xlane.f32.xlu0 %v723
      %v725 = vpop.xlane.xlu0 %724
      %v726 = vrcp.pop 32.0
      %v727 = vmul.f32 %v680, %v726
      %v728 = vmul.f32 %v683, %v726
      %v729 = vmul.f32 %v686, %v726
      %v730 = vmul.f32 %v689, %v726
      %v731 = vmul.f32 %v692, %v726
      %v732 = vmul.f32 %v695, %v726
      %v733 = vmul.f32 %v698, %v726
      %v734 = vmul.f32 %v701, %v726
      %v735 = vmul.f32 %v704, %v726
      %v736 = vmul.f32 %v707, %v726
      %v737 = vmul.f32 %v710, %v726
      %v738 = vmul.f32 %v713, %v726
      %v739 = vmul.f32 %v716, %v726
      %v740 = vmul.f32 %v719, %v726
      %v741 = vmul.f32 %v722, %v726
      %v742 = vmul.f32 %v725, %v726
      %v743 = vsub.f32 %v661, %v727
      %v744 = vsub.f32 %v662, %v728
      %v745 = vsub.f32 %v663, %v729
      %v746 = vsub.f32 %v664, %v730
      %v747 = vsub.f32 %v665, %v731
      %v748 = vsub.f32 %v666, %v732
      %v749 = vsub.f32 %v667, %v733
      %v750 = vsub.f32 %v668, %v734
      %v751 = vsub.f32 %v669, %v735
      %v752 = vsub.f32 %v670, %v736
      %v753 = vsub.f32 %v671, %v737
      %v754 = vsub.f32 %v672, %v738
      %v755 = vsub.f32 %v673, %v739
      %v756 = vsub.f32 %v674, %v740
      %v757 = vsub.f32 %v675, %v741
      %v758 = vsub.f32 %v676, %v742
      %v759 = vmul.f32 %v743, %v743
      %v760 = vmul.f32 %v744, %v744
      %v761 = vmul.f32 %v745, %v745
      %v762 = vmul.f32 %v746, %v746
      %v763 = vmul.f32 %v747, %v747
      %v764 = vmul.f32 %v748, %v748
      %v765 = vmul.f32 %v749, %v749
      %v766 = vmul.f32 %v750, %v750
      %v767 = vmul.f32 %v751, %v751
      %v768 = vmul.f32 %v752, %v752
      %v769 = vmul.f32 %v753, %v753
      %v770 = vmul.f32 %v754, %v754
      %v771 = vmul.f32 %v755, %v755
      %v772 = vmul.f32 %v756, %v756
      %v773 = vmul.f32 %v757, %v757
      %v774 = vmul.f32 %v758, %v758
      %v775 = vsel %vm677, %v759, 0.0
      %776 = vadd.xlane.f32.xlu0 %v775
      %v777 = vpop.xlane.xlu0 %776
      %v778 = vsel %vm677, %v760, 0.0
      %779 = vadd.xlane.f32.xlu0 %v778
      %v780 = vpop.xlane.xlu0 %779
      %v781 = vsel %vm677, %v761, 0.0
      %782 = vadd.xlane.f32.xlu0 %v781
      %v783 = vpop.xlane.xlu0 %782
      %v784 = vsel %vm677, %v762, 0.0
      %785 = vadd.xlane.f32.xlu0 %v784
      %v786 = vpop.xlane.xlu0 %785
      %v787 = vsel %vm677, %v763, 0.0
      %788 = vadd.xlane.f32.xlu0 %v787
      %v789 = vpop.xlane.xlu0 %788
      %v790 = vsel %vm677, %v764, 0.0
      %791 = vadd.xlane.f32.xlu0 %v790
      %v792 = vpop.xlane.xlu0 %791
      %v793 = vsel %vm677, %v765, 0.0
      %794 = vadd.xlane.f32.xlu0 %v793
      %v795 = vpop.xlane.xlu0 %794
      %v796 = vsel %vm677, %v766, 0.0
      %797 = vadd.xlane.f32.xlu0 %v796
      %v798 = vpop.xlane.xlu0 %797
      %v799 = vsel %vm677, %v767, 0.0
      %800 = vadd.xlane.f32.xlu0 %v799
      %v801 = vpop.xlane.xlu0 %800
      %v802 = vsel %vm677, %v768, 0.0
      %803 = vadd.xlane.f32.xlu0 %v802
      %v804 = vpop.xlane.xlu0 %803
      %v805 = vsel %vm677, %v769, 0.0
      %806 = vadd.xlane.f32.xlu0 %v805
      %v807 = vpop.xlane.xlu0 %806
      %v808 = vsel %vm677, %v770, 0.0
      %809 = vadd.xlane.f32.xlu0 %v808
      %v810 = vpop.xlane.xlu0 %809
      %v811 = vsel %vm677, %v771, 0.0
      %812 = vadd.xlane.f32.xlu0 %v811
      %v813 = vpop.xlane.xlu0 %812
      %v814 = vsel %vm677, %v772, 0.0
      %815 = vadd.xlane.f32.xlu0 %v814
      %v816 = vpop.xlane.xlu0 %815
      %v817 = vsel %vm677, %v773, 0.0
      %818 = vadd.xlane.f32.xlu0 %v817
      %v819 = vpop.xlane.xlu0 %818
      %v820 = vsel %vm677, %v774, 0.0
      %821 = vadd.xlane.f32.xlu0 %v820
      %v822 = vpop.xlane.xlu0 %821
      %v823 = vmul.f32 %v777, %v726
      %v824 = vmul.f32 %v780, %v726
      %v825 = vmul.f32 %v783, %v726
      %v826 = vmul.f32 %v786, %v726
      %v827 = vmul.f32 %v789, %v726
      %v828 = vmul.f32 %v792, %v726
      %v829 = vmul.f32 %v795, %v726
      %v830 = vmul.f32 %v798, %v726
      %v831 = vmul.f32 %v801, %v726
      %v832 = vmul.f32 %v804, %v726
      %v833 = vmul.f32 %v807, %v726
      %v834 = vmul.f32 %v810, %v726
      %v835 = vmul.f32 %v813, %v726
      %v836 = vmul.f32 %v816, %v726
      %v837 = vmul.f32 %v819, %v726
      %v838 = vmul.f32 %v822, %v726
      %v839 = vadd.f32 %v823, 1e-05
      %v840 = vadd.f32 %v824, 1e-05
      %v841 = vadd.f32 %v825, 1e-05
      %v842 = vadd.f32 %v826, 1e-05
      %v843 = vadd.f32 %v827, 1e-05
      %v844 = vadd.f32 %v828, 1e-05
      %v845 = vadd.f32 %v829, 1e-05
      %v846 = vadd.f32 %v830, 1e-05
      %v847 = vadd.f32 %v831, 1e-05
      %v848 = vadd.f32 %v832, 1e-05
      %v849 = vadd.f32 %v833, 1e-05
      %v850 = vadd.f32 %v834, 1e-05
      %v851 = vadd.f32 %v835, 1e-05
      %v852 = vadd.f32 %v836, 1e-05
      %v853 = vadd.f32 %v837, 1e-05
      %v854 = vadd.f32 %v838, 1e-05
      %v855 = vrsqrt.pop %v839
      %v856 = vrsqrt.pop %v840
      %v857 = vrsqrt.pop %v841
      %v858 = vrsqrt.pop %v842
      %v859 = vrsqrt.pop %v843
      %v860 = vrsqrt.pop %v844
      %v861 = vrsqrt.pop %v845
      %v862 = vrsqrt.pop %v846
      %v863 = vrsqrt.pop %v847
      %v864 = vrsqrt.pop %v848
      %v865 = vrsqrt.pop %v849
      %v866 = vrsqrt.pop %v850
      %v867 = vrsqrt.pop %v851
      %v868 = vrsqrt.pop %v852
      %v869 = vrsqrt.pop %v853
      %v870 = vrsqrt.pop %v854
      %v871 = vmul.f32 %v743, %v855
      %v872 = vmul.f32 %v744, %v856
      %v873 = vmul.f32 %v745, %v857
      %v874 = vmul.f32 %v746, %v858
      %v875 = vmul.f32 %v747, %v859
      %v876 = vmul.f32 %v748, %v860
      %v877 = vmul.f32 %v749, %v861
      %v878 = vmul.f32 %v750, %v862
      %v879 = vmul.f32 %v751, %v863
      %v880 = vmul.f32 %v752, %v864
      %v881 = vmul.f32 %v753, %v865
      %v882 = vmul.f32 %v754, %v866
      %v883 = vmul.f32 %v755, %v867
      %v884 = vmul.f32 %v756, %v868
      %v885 = vmul.f32 %v757, %v869
      %v886 = vmul.f32 %v758, %v870
      %v887 = vld [vmem:[%s5] sm:$0x1]
      %v889 = vlaneseq
      %v890 = vshrl.u32 %v889, 7
      %v891 = vsub.s32 0, %v890
      %v892 = vrot.slane %v887, %v891
      %v894 = vmul.f32 %v871, %v892
      %v895 = vmul.f32 %v872, %v892
      %v896 = vmul.f32 %v873, %v892
      %v897 = vmul.f32 %v874, %v892
      %v898 = vmul.f32 %v875, %v892
      %v899 = vmul.f32 %v876, %v892
      %v900 = vmul.f32 %v877, %v892
      %v901 = vmul.f32 %v878, %v892
      %v902 = vmul.f32 %v879, %v892
      %v903 = vmul.f32 %v880, %v892
      %v904 = vmul.f32 %v881, %v892
      %v905 = vmul.f32 %v882, %v892
      %v906 = vmul.f32 %v883, %v892
      %v907 = vmul.f32 %v884, %v892
      %v908 = vmul.f32 %v885, %v892
      %v909 = vmul.f32 %v886, %v892
      %v910 = vld [vmem:[%s6] sm:$0x1]
      %v912 = vlaneseq
      %v913 = vshrl.u32 %v912, 7
      %v914 = vsub.s32 0, %v913
      %v915 = vrot.slane %v910, %v914
      %v917 = vadd.f32 %v894, %v915
      %v918 = vadd.f32 %v895, %v915
      %v919 = vadd.f32 %v896, %v915
      %v920 = vadd.f32 %v897, %v915
      %v921 = vadd.f32 %v898, %v915
      %v922 = vadd.f32 %v899, %v915
      %v923 = vadd.f32 %v900, %v915
      %v924 = vadd.f32 %v901, %v915
      %v925 = vadd.f32 %v902, %v915
      %v926 = vadd.f32 %v903, %v915
      %v927 = vadd.f32 %v904, %v915
      %v928 = vadd.f32 %v905, %v915
      %v929 = vadd.f32 %v906, %v915
      %v930 = vadd.f32 %v907, %v915
      %v931 = vadd.f32 %v908, %v915
      %v932 = vadd.f32 %v909, %v915
      %v933 = vld [vmem:[%s1] sm:$0xf]
      %v934 = vld [vmem:[%s1 + $0x4] sm:$0xf]
      %v935 = vld [vmem:[%s1 + $0x8] sm:$0xf]
      %v936 = vld [vmem:[%s1 + $0xc] sm:$0xf]
      %v937 = vld [vmem:[%s1 + $0x10] sm:$0xf]
      %v938 = vld [vmem:[%s1 + $0x14] sm:$0xf]
      %v939 = vld [vmem:[%s1 + $0x18] sm:$0xf]
      %v940 = vld [vmem:[%s1 + $0x1c] sm:$0xf]
      %v941 = vld [vmem:[%s1 + $0x20] sm:$0xf]
      %v942 = vld [vmem:[%s1 + $0x24] sm:$0xf]
      %v943 = vld [vmem:[%s1 + $0x28] sm:$0xf]
      %v944 = vld [vmem:[%s1 + $0x2c] sm:$0xf]
      %v945 = vld [vmem:[%s1 + $0x30] sm:$0xf]
      %v946 = vld [vmem:[%s1 + $0x34] sm:$0xf]
      %v947 = vld [vmem:[%s1 + $0x38] sm:$0xf]
      %v948 = vld [vmem:[%s1 + $0x3c] sm:$0xf]
      %v949 = vpack.c.bf16 %v918, %v917
      %v950 = vpack.c.bf16 %v920, %v919
      %v951 = vpack.c.bf16 %v922, %v921
      %v952 = vpack.c.bf16 %v924, %v923
      %v953 = vpack.c.bf16 %v926, %v925
      %v954 = vpack.c.bf16 %v928, %v927
      %v955 = vpack.c.bf16 %v930, %v929
      %v956 = vpack.c.bf16 %v932, %v931
      %v973 = vunpack.c.l.b16 %v933
      %v974 = vunpack.c.l.b16 %v934
      %v975 = vunpack.c.l.b16 %v935
      %v976 = vunpack.c.l.b16 %v936
      %v977 = vunpack.c.l.b16 %v937
      %v978 = vunpack.c.l.b16 %v938
      %v979 = vunpack.c.l.b16 %v939
      %v980 = vunpack.c.l.b16 %v940
      %v981 = vunpack.c.l.b16 %v941
      %v982 = vunpack.c.l.b16 %v942
      %v983 = vunpack.c.l.b16 %v943
      %v984 = vunpack.c.l.b16 %v944
      %v985 = vunpack.c.l.b16 %v945
      %v986 = vunpack.c.l.b16 %v946
      %v987 = vunpack.c.l.b16 %v947
      %v988 = vunpack.c.l.b16 %v948
      %v989 = vpack.c.b16 %v974, %v973
      %v990 = vpack.c.b16 %v976, %v975
      %v991 = vpack.c.b16 %v978, %v977
      %v992 = vpack.c.b16 %v980, %v979
      %v993 = vpack.c.b16 %v982, %v981
      %v994 = vpack.c.b16 %v984, %v983
      %v995 = vpack.c.b16 %v986, %v985
      %v996 = vpack.c.b16 %v988, %v987
      %1005 = vmatprep.subr.bf16.mxu0 0
      %1006 = vmatpush1.bf16.msra.mxu0 %v949
      %1007 = vmatprep.subr.bf16.mxu0 0
      %1008 = vmatpush1.bf16.msra.mxu0 %v950
      %1009 = vmatprep.subr.bf16.mxu0 0
      %1010 = vmatpush1.bf16.msra.mxu0 %v951
      %1011 = vmatprep.subr.bf16.mxu0 0
      %1012 = vmatpush1.bf16.msra.mxu0 %v952
      %1013 = vmatprep.subr.bf16.mxu0 0
      %1014 = vmatpush1.bf16.msra.mxu0 %v953
      %1015 = vmatprep.subr.bf16.mxu0 0
      %1016 = vmatpush1.bf16.msra.mxu0 %v954
      %1017 = vmatprep.subr.bf16.mxu0 0
      %1018 = vmatpush1.bf16.msra.mxu0 %v955
      %1019 = vmatprep.subr.bf16.mxu0 0
      %1020 = vmatpush1.bf16.msra.mxu0 %v956
      %1021 = vmatprep.subr.bf16.mxu0 0
      %1022 = vmatpush1.bf16.msra.mxu0 0
      %1023 = vmatprep.subr.bf16.mxu0 0
      %1024 = vmatpush1.bf16.msra.mxu0 0
      %1025 = vmatprep.subr.bf16.mxu0 0
      %1026 = vmatpush1.bf16.msra.mxu0 0
      %1027 = vmatprep.subr.bf16.mxu0 0
      %1028 = vmatpush1.bf16.msra.mxu0 0
      %1029 = vmatprep.subr.bf16.mxu0 0
      %1030 = vmatpush1.bf16.msra.mxu0 0
      %1031 = vmatprep.subr.bf16.mxu0 0
      %1032 = vmatpush1.bf16.msra.mxu0 0
      %1033 = vmatprep.subr.bf16.mxu0 0
      %1034 = vmatpush1.bf16.msra.mxu0 0
      %1035 = vmatprep.subr.bf16.mxu0 0
      %1036 = vmatpush1.bf16.msra.mxu0 0
      %1037 = vmatprep.mubr.bf16.mxu0 0
      %1038 = vmatmul.mubr.bf16.gmra.mrb[0].mxu0 %v989
      %v1039 = vpop.f32.mrb[0].mxu0
      %v1040 = vadd.f32 0.0, %v1039
      %v1041 = vpop.f32.mrb[0].mxu0
      %v1042 = vpop.f32.mrb[0].mxu0
      %v1043 = vadd.f32 0.0, %v1042
      %v1044 = vpop.f32.mrb[0].mxu0
      %1045 = vmatprep.mubr.bf16.mxu0 0
      %1046 = vmatmul.mubr.bf16.gmra.mrb[0].mxu0 %v990
      %v1047 = vpop.f32.mrb[0].mxu0
      %v1048 = vadd.f32 0.0, %v1047
      %v1049 = vpop.f32.mrb[0].mxu0
      %v1050 = vpop.f32.mrb[0].mxu0
      %v1051 = vadd.f32 0.0, %v1050
      %v1052 = vpop.f32.mrb[0].mxu0
      %1053 = vmatprep.mubr.bf16.mxu0 0
      %1054 = vmatmul.mubr.bf16.gmra.mrb[0].mxu0 %v991
      %v1055 = vpop.f32.mrb[0].mxu0
      %v1056 = vadd.f32 0.0, %v1055
      %v1057 = vpop.f32.mrb[0].mxu0
      %v1058 = vpop.f32.mrb[0].mxu0
      %v1059 = vadd.f32 0.0, %v1058
      %v1060 = vpop.f32.mrb[0].mxu0
      %1061 = vmatprep.mubr.bf16.mxu0 0
      %1062 = vmatmul.mubr.bf16.gmra.mrb[0].mxu0 %v992
      %v1063 = vpop.f32.mrb[0].mxu0
      %v1064 = vadd.f32 0.0, %v1063
      %v1065 = vpop.f32.mrb[0].mxu0
      %v1066 = vpop.f32.mrb[0].mxu0
      %v1067 = vadd.f32 0.0, %v1066
      %v1068 = vpop.f32.mrb[0].mxu0
      %1069 = vmatprep.mubr.bf16.mxu0 0
      %1070 = vmatmul.mubr.bf16.gmra.mrb[0].mxu0 %v993
      %v1071 = vpop.f32.mrb[0].mxu0
      %v1072 = vadd.f32 0.0, %v1071
      %v1073 = vpop.f32.mrb[0].mxu0
      %v1074 = vpop.f32.mrb[0].mxu0
      %v1075 = vadd.f32 0.0, %v1074
      %v1076 = vpop.f32.mrb[0].mxu0
      %1077 = vmatprep.mubr.bf16.mxu0 0
      %1078 = vmatmul.mubr.bf16.gmra.mrb[0].mxu0 %v994
      %v1079 = vpop.f32.mrb[0].mxu0
      %v1080 = vadd.f32 0.0, %v1079
      %v1081 = vpop.f32.mrb[0].mxu0
      %v1082 = vpop.f32.mrb[0].mxu0
      %v1083 = vadd.f32 0.0, %v1082
      %v1084 = vpop.f32.mrb[0].mxu0
      %1085 = vmatprep.mubr.bf16.mxu0 0
      %1086 = vmatmul.mubr.bf16.gmra.mrb[0].mxu0 %v995
      %v1087 = vpop.f32.mrb[0].mxu0
      %v1088 = vadd.f32 0.0, %v1087
      %v1089 = vpop.f32.mrb[0].mxu0
      %v1090 = vpop.f32.mrb[0].mxu0
      %v1091 = vadd.f32 0.0, %v1090
      %v1092 = vpop.f32.mrb[0].mxu0
      %1093 = vmatprep.mubr.bf16.mxu0 0
      %1094 = vmatmul.mubr.bf16.gmra.mrb[0].mxu0 %v996
      %v1095 = vpop.f32.mrb[0].mxu0
      %v1096 = vadd.f32 0.0, %v1095
      %v1097 = vpop.f32.mrb[0].mxu0
      %v1098 = vpop.f32.mrb[0].mxu0
      %v1099 = vadd.f32 0.0, %v1098
      %v1100 = vpop.f32.mrb[0].mxu0
      %1101 = vdwg.mxu0
      %v1102 = vpack.c.bf16 %v1043, %v1040
      %v1103 = vpack.c.bf16 %v1051, %v1048
      %v1104 = vpack.c.bf16 %v1059, %v1056
      %v1105 = vpack.c.bf16 %v1067, %v1064
      %v1106 = vpack.c.bf16 %v1075, %v1072
      %v1107 = vpack.c.bf16 %v1083, %v1080
      %v1108 = vpack.c.bf16 %v1091, %v1088
      %v1109 = vpack.c.bf16 %v1099, %v1096
      %v1110 = vld [vmem:[%s7] sm:$0xf]
      %v1111 = vld [vmem:[%s7 + $0x4] sm:$0xf]
      %v1112 = vld [vmem:[%s7 + $0x8] sm:$0xf]
      %v1113 = vld [vmem:[%s7 + $0xc] sm:$0xf]
      %v1114 = vld [vmem:[%s10] sm:$0x1]
      %v1116 = vlaneseq
      %v1117 = vshrl.u32 %v1116, 7
      %v1118 = vsub.s32 0, %v1117
      %v1119 = vrot.slane %v1114, %v1118
      %v1125 = vunpack.c.l.b16 %v1110
      %v1126 = vunpack.c.l.b16 %v1111
      %v1127 = vunpack.c.l.b16 %v1112
      %v1128 = vunpack.c.l.b16 %v1113
      %v1129 = vpack.c.b16 %v1126, %v1125
      %v1130 = vpack.c.b16 %v1128, %v1127
      %v1134 = vsel %vm677, %v1102, 0
      %v1137 = vsel %vm677, %v1103, 0
      %v1140 = vsel %vm677, %v1104, 0
      %v1143 = vsel %vm677, %v1105, 0
      %v1146 = vsel %vm677, %v1106, 0
      %v1149 = vsel %vm677, %v1107, 0
      %v1152 = vsel %vm677, %v1108, 0
      %v1155 = vsel %vm677, %v1109, 0
      %1157 = vmatprep.subr.bf16.mxu0 0
      %1158 = vmatpush1.bf16.msra.mxu0 %v1129
      %1159 = vmatprep.subr.bf16.mxu0 0
      %1160 = vmatpush1.bf16.msra.mxu0 %v1130
      %1161 = vmatprep.subr.bf16.mxu0 0
      %1162 = vmatpush1.bf16.msra.mxu0 0
      %1163 = vmatprep.subr.bf16.mxu0 0
      %1164 = vmatpush1.bf16.msra.mxu0 0
      %1165 = vmatprep.subr.bf16.mxu0 0
      %1166 = vmatpush1.bf16.msra.mxu0 0
      %1167 = vmatprep.subr.bf16.mxu0 0
      %1168 = vmatpush1.bf16.msra.mxu0 0
      %1169 = vmatprep.subr.bf16.mxu0 0
      %1170 = vmatpush1.bf16.msra.mxu0 0
      %1171 = vmatprep.subr.bf16.mxu0 0
      %1172 = vmatpush1.bf16.msra.mxu0 0
      %1173 = vmatprep.subr.bf16.mxu0 0
      %1174 = vmatpush1.bf16.msra.mxu0 0
      %1175 = vmatprep.subr.bf16.mxu0 0
      %1176 = vmatpush1.bf16.msra.mxu0 0
      %1177 = vmatprep.subr.bf16.mxu0 0
      %1178 = vmatpush1.bf16.msra.mxu0 0
      %1179 = vmatprep.subr.bf16.mxu0 0
      %1180 = vmatpush1.bf16.msra.mxu0 0
      %1181 = vmatprep.subr.bf16.mxu0 0
      %1182 = vmatpush1.bf16.msra.mxu0 0
      %1183 = vmatprep.subr.bf16.mxu0 0
      %1184 = vmatpush1.bf16.msra.mxu0 0
      %1185 = vmatprep.subr.bf16.mxu0 0
      %1186 = vmatpush1.bf16.msra.mxu0 0
      %1187 = vmatprep.subr.bf16.mxu0 0
      %1188 = vmatpush1.bf16.msra.mxu0 0
      %1189 = vmatprep.mubr.bf16.mxu0 0
      %1190 = vmatmul.mubr.bf16.gmra.mrb[0].mxu0 %v1134
      %v1191 = vpop.f32.mrb[0].mxu0
      %v1192 = vadd.f32 %v1119, %v1191
      %v1193 = vpop.f32.mrb[0].mxu0
      %v1194 = vpop.f32.mrb[0].mxu0
      %v1195 = vadd.f32 %v1119, %v1194
      %v1196 = vpop.f32.mrb[0].mxu0
      %1197 = vmatprep.mubr.bf16.mxu0 0
      %1198 = vmatmul.mubr.bf16.gmra.mrb[0].mxu0 %v1137
      %v1199 = vpop.f32.mrb[0].mxu0
      %v1200 = vadd.f32 %v1119, %v1199
      %v1201 = vpop.f32.mrb[0].mxu0
      %v1202 = vpop.f32.mrb[0].mxu0
      %v1203 = vadd.f32 %v1119, %v1202
      %v1204 = vpop.f32.mrb[0].mxu0
      %1205 = vmatprep.mubr.bf16.mxu0 0
      %1206 = vmatmul.mubr.bf16.gmra.mrb[0].mxu0 %v1140
      %v1207 = vpop.f32.mrb[0].mxu0
      %v1208 = vadd.f32 %v1119, %v1207
      %v1209 = vpop.f32.mrb[0].mxu0
      %v1210 = vpop.f32.mrb[0].mxu0
      %v1211 = vadd.f32 %v1119, %v1210
      %v1212 = vpop.f32.mrb[0].mxu0
      %1213 = vmatprep.mubr.bf16.mxu0 0
      %1214 = vmatmul.mubr.bf16.gmra.mrb[0].mxu0 %v1143
      %v1215 = vpop.f32.mrb[0].mxu0
      %v1216 = vadd.f32 %v1119, %v1215
      %v1217 = vpop.f32.mrb[0].mxu0
      %v1218 = vpop.f32.mrb[0].mxu0
      %v1219 = vadd.f32 %v1119, %v1218
      %v1220 = vpop.f32.mrb[0].mxu0
      %1221 = vmatprep.mubr.bf16.mxu0 0
      %1222 = vmatmul.mubr.bf16.gmra.mrb[0].mxu0 %v1146
      %v1223 = vpop.f32.mrb[0].mxu0
      %v1224 = vadd.f32 %v1119, %v1223
      %v1225 = vpop.f32.mrb[0].mxu0
      %v1226 = vpop.f32.mrb[0].mxu0
      %v1227 = vadd.f32 %v1119, %v1226
      %v1228 = vpop.f32.mrb[0].mxu0
      %1229 = vmatprep.mubr.bf16.mxu0 0
      %1230 = vmatmul.mubr.bf16.gmra.mrb[0].mxu0 %v1149
      %v1231 = vpop.f32.mrb[0].mxu0
      %v1232 = vadd.f32 %v1119, %v1231
      %v1233 = vpop.f32.mrb[0].mxu0
      %v1234 = vpop.f32.mrb[0].mxu0
      %v1235 = vadd.f32 %v1119, %v1234
      %v1236 = vpop.f32.mrb[0].mxu0
      %1237 = vmatprep.mubr.bf16.mxu0 0
      %1238 = vmatmul.mubr.bf16.gmra.mrb[0].mxu0 %v1152
      %v1239 = vpop.f32.mrb[0].mxu0
      %v1240 = vadd.f32 %v1119, %v1239
      %v1241 = vpop.f32.mrb[0].mxu0
      %v1242 = vpop.f32.mrb[0].mxu0
      %v1243 = vadd.f32 %v1119, %v1242
      %v1244 = vpop.f32.mrb[0].mxu0
      %1245 = vmatprep.mubr.bf16.mxu0 0
      %1246 = vmatmul.mubr.bf16.gmra.mrb[0].mxu0 %v1155
      %v1247 = vpop.f32.mrb[0].mxu0
      %v1248 = vadd.f32 %v1119, %v1247
      %v1249 = vpop.f32.mrb[0].mxu0
      %v1250 = vpop.f32.mrb[0].mxu0
      %v1251 = vadd.f32 %v1119, %v1250
      %v1252 = vpop.f32.mrb[0].mxu0
      %1253 = vdwg.mxu0
      %v1254 = vld [vmem:[%s8] sm:$0xf]
      %v1255 = vld [vmem:[%s8 + $0x4] sm:$0xf]
      %v1256 = vld [vmem:[%s8 + $0x8] sm:$0xf]
      %v1257 = vld [vmem:[%s8 + $0xc] sm:$0xf]
      %v1258 = vld [vmem:[%s11] sm:$0x1]
      %v1260 = vlaneseq
      %v1261 = vshrl.u32 %v1260, 7
      %v1262 = vsub.s32 0, %v1261
      %v1263 = vrot.slane %v1258, %v1262
      %v1269 = vunpack.c.l.b16 %v1254
      %v1270 = vunpack.c.l.b16 %v1255
      %v1271 = vunpack.c.l.b16 %v1256
      %v1272 = vunpack.c.l.b16 %v1257
      %v1273 = vpack.c.b16 %v1270, %v1269
      %v1274 = vpack.c.b16 %v1272, %v1271
      %1277 = vmatprep.subr.bf16.mxu0 0
      %1278 = vmatpush1.bf16.msra.mxu0 %v1273
      %1279 = vmatprep.subr.bf16.mxu0 0
      %1280 = vmatpush1.bf16.msra.mxu0 %v1274
      %1281 = vmatprep.subr.bf16.mxu0 0
      %1282 = vmatpush1.bf16.msra.mxu0 0
      %1283 = vmatprep.subr.bf16.mxu0 0
      %1284 = vmatpush1.bf16.msra.mxu0 0
      %1285 = vmatprep.subr.bf16.mxu0 0
      %1286 = vmatpush1.bf16.msra.mxu0 0
      %1287 = vmatprep.subr.bf16.mxu0 0
      %1288 = vmatpush1.bf16.msra.mxu0 0
      %1289 = vmatprep.subr.bf16.mxu0 0
      %1290 = vmatpush1.bf16.msra.mxu0 0
      %1291 = vmatprep.subr.bf16.mxu0 0
      %1292 = vmatpush1.bf16.msra.mxu0 0
      %1293 = vmatprep.subr.bf16.mxu0 0
      %1294 = vmatpush1.bf16.msra.mxu0 0
      %1295 = vmatprep.subr.bf16.mxu0 0
      %1296 = vmatpush1.bf16.msra.mxu0 0
      %1297 = vmatprep.subr.bf16.mxu0 0
      %1298 = vmatpush1.bf16.msra.mxu0 0
      %1299 = vmatprep.subr.bf16.mxu0 0
      %1300 = vmatpush1.bf16.msra.mxu0 0
      %1301 = vmatprep.subr.bf16.mxu0 0
      %1302 = vmatpush1.bf16.msra.mxu0 0
      %1303 = vmatprep.subr.bf16.mxu0 0
      %1304 = vmatpush1.bf16.msra.mxu0 0
      %1305 = vmatprep.subr.bf16.mxu0 0
      %1306 = vmatpush1.bf16.msra.mxu0 0
      %1307 = vmatprep.subr.bf16.mxu0 0
      %1308 = vmatpush1.bf16.msra.mxu0 0
      %1309 = vmatprep.mubr.bf16.mxu0 0
      %1310 = vmatmul.mubr.bf16.gmra.mrb[0].mxu0 %v1134
      %v1311 = vpop.f32.mrb[0].mxu0
      %v1312 = vadd.f32 %v1263, %v1311
      %v1313 = vpop.f32.mrb[0].mxu0
      %v1314 = vpop.f32.mrb[0].mxu0
      %v1315 = vadd.f32 %v1263, %v1314
      %v1316 = vpop.f32.mrb[0].mxu0
      %1317 = vmatprep.mubr.bf16.mxu0 0
      %1318 = vmatmul.mubr.bf16.gmra.mrb[0].mxu0 %v1137
      %v1319 = vpop.f32.mrb[0].mxu0
      %v1320 = vadd.f32 %v1263, %v1319
      %v1321 = vpop.f32.mrb[0].mxu0
      %v1322 = vpop.f32.mrb[0].mxu0
      %v1323 = vadd.f32 %v1263, %v1322
      %v1324 = vpop.f32.mrb[0].mxu0
      %1325 = vmatprep.mubr.bf16.mxu0 0
      %1326 = vmatmul.mubr.bf16.gmra.mrb[0].mxu0 %v1140
      %v1327 = vpop.f32.mrb[0].mxu0
      %v1328 = vadd.f32 %v1263, %v1327
      %v1329 = vpop.f32.mrb[0].mxu0
      %v1330 = vpop.f32.mrb[0].mxu0
      %v1331 = vadd.f32 %v1263, %v1330
      %v1332 = vpop.f32.mrb[0].mxu0
      %1333 = vmatprep.mubr.bf16.mxu0 0
      %1334 = vmatmul.mubr.bf16.gmra.mrb[0].mxu0 %v1143
      %v1335 = vpop.f32.mrb[0].mxu0
      %v1336 = vadd.f32 %v1263, %v1335
      %v1337 = vpop.f32.mrb[0].mxu0
      %v1338 = vpop.f32.mrb[0].mxu0
      %v1339 = vadd.f32 %v1263, %v1338
      %v1340 = vpop.f32.mrb[0].mxu0
      %1341 = vmatprep.mubr.bf16.mxu0 0
      %1342 = vmatmul.mubr.bf16.gmra.mrb[0].mxu0 %v1146
      %v1343 = vpop.f32.mrb[0].mxu0
      %v1344 = vadd.f32 %v1263, %v1343
      %v1345 = vpop.f32.mrb[0].mxu0
      %v1346 = vpop.f32.mrb[0].mxu0
      %v1347 = vadd.f32 %v1263, %v1346
      %v1348 = vpop.f32.mrb[0].mxu0
      %1349 = vmatprep.mubr.bf16.mxu0 0
      %1350 = vmatmul.mubr.bf16.gmra.mrb[0].mxu0 %v1149
      %v1351 = vpop.f32.mrb[0].mxu0
      %v1352 = vadd.f32 %v1263, %v1351
      %v1353 = vpop.f32.mrb[0].mxu0
      %v1354 = vpop.f32.mrb[0].mxu0
      %v1355 = vadd.f32 %v1263, %v1354
      %v1356 = vpop.f32.mrb[0].mxu0
      %1357 = vmatprep.mubr.bf16.mxu0 0
      %1358 = vmatmul.mubr.bf16.gmra.mrb[0].mxu0 %v1152
      %v1359 = vpop.f32.mrb[0].mxu0
      %v1360 = vadd.f32 %v1263, %v1359
      %v1361 = vpop.f32.mrb[0].mxu0
      %v1362 = vpop.f32.mrb[0].mxu0
      %v1363 = vadd.f32 %v1263, %v1362
      %v1364 = vpop.f32.mrb[0].mxu0
      %1365 = vmatprep.mubr.bf16.mxu0 0
      %1366 = vmatmul.mubr.bf16.gmra.mrb[0].mxu0 %v1155
      %v1367 = vpop.f32.mrb[0].mxu0
      %v1368 = vadd.f32 %v1263, %v1367
      %v1369 = vpop.f32.mrb[0].mxu0
      %v1370 = vpop.f32.mrb[0].mxu0
      %v1371 = vadd.f32 %v1263, %v1370
      %v1372 = vpop.f32.mrb[0].mxu0
      %1373 = vdwg.mxu0
      %v1374 = vld [vmem:[%s9] sm:$0xf]
      %v1375 = vld [vmem:[%s9 + $0x4] sm:$0xf]
      %v1376 = vld [vmem:[%s9 + $0x8] sm:$0xf]
      %v1377 = vld [vmem:[%s9 + $0xc] sm:$0xf]
      %v1378 = vld [vmem:[%s12] sm:$0x1]
      %v1380 = vlaneseq
      %v1381 = vshrl.u32 %v1380, 7
      %v1382 = vsub.s32 0, %v1381
      %v1383 = vrot.slane %v1378, %v1382
      %v1389 = vunpack.c.l.b16 %v1374
      %v1390 = vunpack.c.l.b16 %v1375
      %v1391 = vunpack.c.l.b16 %v1376
      %v1392 = vunpack.c.l.b16 %v1377
      %v1393 = vpack.c.b16 %v1390, %v1389
      %v1394 = vpack.c.b16 %v1392, %v1391
      %1397 = vmatprep.subr.bf16.mxu0 0
      %1398 = vmatpush1.bf16.msra.mxu0 %v1393
      %1399 = vmatprep.subr.bf16.mxu0 0
      %1400 = vmatpush1.bf16.msra.mxu0 %v1394
      %1401 = vmatprep.subr.bf16.mxu0 0
      %1402 = vmatpush1.bf16.msra.mxu0 0
      %1403 = vmatprep.subr.bf16.mxu0 0
      %1404 = vmatpush1.bf16.msra.mxu0 0
      %1405 = vmatprep.subr.bf16.mxu0 0
      %1406 = vmatpush1.bf16.msra.mxu0 0
      %1407 = vmatprep.subr.bf16.mxu0 0
      %1408 = vmatpush1.bf16.msra.mxu0 0
      %1409 = vmatprep.subr.bf16.mxu0 0
      %1410 = vmatpush1.bf16.msra.mxu0 0
      %1411 = vmatprep.subr.bf16.mxu0 0
      %1412 = vmatpush1.bf16.msra.mxu0 0
      %1413 = vmatprep.subr.bf16.mxu0 0
      %1414 = vmatpush1.bf16.msra.mxu0 0
      %1415 = vmatprep.subr.bf16.mxu0 0
      %1416 = vmatpush1.bf16.msra.mxu0 0
      %1417 = vmatprep.subr.bf16.mxu0 0
      %1418 = vmatpush1.bf16.msra.mxu0 0
      %1419 = vmatprep.subr.bf16.mxu0 0
      %1420 = vmatpush1.bf16.msra.mxu0 0
      %1421 = vmatprep.subr.bf16.mxu0 0
      %1422 = vmatpush1.bf16.msra.mxu0 0
      %1423 = vmatprep.subr.bf16.mxu0 0
      %1424 = vmatpush1.bf16.msra.mxu0 0
      %1425 = vmatprep.subr.bf16.mxu0 0
      %1426 = vmatpush1.bf16.msra.mxu0 0
      %1427 = vmatprep.subr.bf16.mxu0 0
      %1428 = vmatpush1.bf16.msra.mxu0 0
      %1429 = vmatprep.mubr.bf16.mxu0 0
      %1430 = vmatmul.mubr.bf16.gmra.mrb[0].mxu0 %v1134
      %v1431 = vpop.f32.mrb[0].mxu0
      %v1432 = vadd.f32 %v1383, %v1431
      %v1433 = vpop.f32.mrb[0].mxu0
      %v1434 = vpop.f32.mrb[0].mxu0
      %v1435 = vadd.f32 %v1383, %v1434
      %v1436 = vpop.f32.mrb[0].mxu0
      %1437 = vmatprep.mubr.bf16.mxu0 0
      %1438 = vmatmul.mubr.bf16.gmra.mrb[0].mxu0 %v1137
      %v1439 = vpop.f32.mrb[0].mxu0
      %v1440 = vadd.f32 %v1383, %v1439
      %v1441 = vpop.f32.mrb[0].mxu0
      %v1442 = vpop.f32.mrb[0].mxu0
      %v1443 = vadd.f32 %v1383, %v1442
      %v1444 = vpop.f32.mrb[0].mxu0
      %1445 = vmatprep.mubr.bf16.mxu0 0
      %1446 = vmatmul.mubr.bf16.gmra.mrb[0].mxu0 %v1140
      %v1447 = vpop.f32.mrb[0].mxu0
      %v1448 = vadd.f32 %v1383, %v1447
      %v1449 = vpop.f32.mrb[0].mxu0
      %v1450 = vpop.f32.mrb[0].mxu0
      %v1451 = vadd.f32 %v1383, %v1450
      %v1452 = vpop.f32.mrb[0].mxu0
      %1453 = vmatprep.mubr.bf16.mxu0 0
      %1454 = vmatmul.mubr.bf16.gmra.mrb[0].mxu0 %v1143
      %v1455 = vpop.f32.mrb[0].mxu0
      %v1456 = vadd.f32 %v1383, %v1455
      %v1457 = vpop.f32.mrb[0].mxu0
      %v1458 = vpop.f32.mrb[0].mxu0
      %v1459 = vadd.f32 %v1383, %v1458
      %v1460 = vpop.f32.mrb[0].mxu0
      %1461 = vmatprep.mubr.bf16.mxu0 0
      %1462 = vmatmul.mubr.bf16.gmra.mrb[0].mxu0 %v1146
      %v1463 = vpop.f32.mrb[0].mxu0
      %v1464 = vadd.f32 %v1383, %v1463
      %v1465 = vpop.f32.mrb[0].mxu0
      %v1466 = vpop.f32.mrb[0].mxu0
      %v1467 = vadd.f32 %v1383, %v1466
      %v1468 = vpop.f32.mrb[0].mxu0
      %1469 = vmatprep.mubr.bf16.mxu0 0
      %1470 = vmatmul.mubr.bf16.gmra.mrb[0].mxu0 %v1149
      %v1471 = vpop.f32.mrb[0].mxu0
      %v1472 = vadd.f32 %v1383, %v1471
      %v1473 = vpop.f32.mrb[0].mxu0
      %v1474 = vpop.f32.mrb[0].mxu0
      %v1475 = vadd.f32 %v1383, %v1474
      %v1476 = vpop.f32.mrb[0].mxu0
      %1477 = vmatprep.mubr.bf16.mxu0 0
      %1478 = vmatmul.mubr.bf16.gmra.mrb[0].mxu0 %v1152
      %v1479 = vpop.f32.mrb[0].mxu0
      %v1480 = vadd.f32 %v1383, %v1479
      %v1481 = vpop.f32.mrb[0].mxu0
      %v1482 = vpop.f32.mrb[0].mxu0
      %v1483 = vadd.f32 %v1383, %v1482
      %v1484 = vpop.f32.mrb[0].mxu0
      %1485 = vmatprep.mubr.bf16.mxu0 0
      %1486 = vmatmul.mubr.bf16.gmra.mrb[0].mxu0 %v1155
      %v1487 = vpop.f32.mrb[0].mxu0
      %v1488 = vadd.f32 %v1383, %v1487
      %v1489 = vpop.f32.mrb[0].mxu0
      %v1490 = vpop.f32.mrb[0].mxu0
      %v1491 = vadd.f32 %v1383, %v1490
      %v1492 = vpop.f32.mrb[0].mxu0
      %1493 = vdwg.mxu0
      %v1494 = vld [vmem:[%s4] sm:$0xff]
      %v1495 = vld [vmem:[%s4 + $0x8] sm:$0xff]
      %v1496 = vld [vmem:[%s4 + $0x10] sm:$0xff]
      %v1497 = vld [vmem:[%s4 + $0x18] sm:$0xff]
      %v1498 = vld [vmem:[%s4 + $0x20] sm:$0xff]
      %v1499 = vld [vmem:[%s4 + $0x28] sm:$0xff]
      %v1500 = vld [vmem:[%s4 + $0x30] sm:$0xff]
      %v1501 = vld [vmem:[%s4 + $0x38] sm:$0xff]
      %v1502 = vld [vmem:[%s4 + $0x40] sm:$0xff]
      %v1503 = vld [vmem:[%s4 + $0x48] sm:$0xff]
      %v1504 = vld [vmem:[%s4 + $0x50] sm:$0xff]
      %v1505 = vld [vmem:[%s4 + $0x58] sm:$0xff]
      %v1506 = vld [vmem:[%s4 + $0x60] sm:$0xff]
      %v1507 = vld [vmem:[%s4 + $0x68] sm:$0xff]
      %v1508 = vld [vmem:[%s4 + $0x70] sm:$0xff]
      %v1509 = vld [vmem:[%s4 + $0x78] sm:$0xff]
      %v1510 = vld [vmem:[%s4 + $0x80] sm:$0xff]
      %v1511 = vld [vmem:[%s4 + $0x88] sm:$0xff]
      %v1512 = vld [vmem:[%s4 + $0x90] sm:$0xff]
      %v1513 = vld [vmem:[%s4 + $0x98] sm:$0xff]
      %v1514 = vld [vmem:[%s4 + $0xa0] sm:$0xff]
      %v1515 = vld [vmem:[%s4 + $0xa8] sm:$0xff]
      %v1516 = vld [vmem:[%s4 + $0xb0] sm:$0xff]
      %v1517 = vld [vmem:[%s4 + $0xb8] sm:$0xff]
      %v1518 = vld [vmem:[%s4 + $0xc0] sm:$0xff]
      %v1519 = vld [vmem:[%s4 + $0xc8] sm:$0xff]
      %v1520 = vld [vmem:[%s4 + $0xd0] sm:$0xff]
      %v1521 = vld [vmem:[%s4 + $0xd8] sm:$0xff]
      %v1522 = vld [vmem:[%s4 + $0xe0] sm:$0xff]
      %v1523 = vld [vmem:[%s4 + $0xe8] sm:$0xff]
      %v1524 = vld [vmem:[%s4 + $0xf0] sm:$0xff]
      %v1525 = vld [vmem:[%s4 + $0xf8] sm:$0xff]
      %v1526 = vpack.c.bf16 %v1495, %v1494
      %v1527 = vpack.c.bf16 %v1497, %v1496
      %v1528 = vpack.c.bf16 %v1499, %v1498
      %v1529 = vpack.c.bf16 %v1501, %v1500
      %v1530 = vpack.c.bf16 %v1503, %v1502
      %v1531 = vpack.c.bf16 %v1505, %v1504
      %v1532 = vpack.c.bf16 %v1507, %v1506
      %v1533 = vpack.c.bf16 %v1509, %v1508
      %v1534 = vpack.c.bf16 %v1511, %v1510
      %v1535 = vpack.c.bf16 %v1513, %v1512
      %v1536 = vpack.c.bf16 %v1515, %v1514
      %v1537 = vpack.c.bf16 %v1517, %v1516
      %v1538 = vpack.c.bf16 %v1519, %v1518
      %v1539 = vpack.c.bf16 %v1521, %v1520
      %v1540 = vpack.c.bf16 %v1523, %v1522
      %v1541 = vpack.c.bf16 %v1525, %v1524
      %v1542 = vld [vmem:[%s3] sm:$0xff]
      %v1543 = vld [vmem:[%s3 + $0x8] sm:$0xff]
      %v1544 = vld [vmem:[%s3 + $0x10] sm:$0xff]
      %v1545 = vld [vmem:[%s3 + $0x18] sm:$0xff]
      %v1546 = vld [vmem:[%s3 + $0x20] sm:$0xff]
      %v1547 = vld [vmem:[%s3 + $0x28] sm:$0xff]
      %v1548 = vld [vmem:[%s3 + $0x30] sm:$0xff]
      %v1549 = vld [vmem:[%s3 + $0x38] sm:$0xff]
      %v1550 = vld [vmem:[%s3 + $0x40] sm:$0xff]
      %v1551 = vld [vmem:[%s3 + $0x48] sm:$0xff]
      %v1552 = vld [vmem:[%s3 + $0x50] sm:$0xff]
      %v1553 = vld [vmem:[%s3 + $0x58] sm:$0xff]
      %v1554 = vld [vmem:[%s3 + $0x60] sm:$0xff]
      %v1555 = vld [vmem:[%s3 + $0x68] sm:$0xff]
      %v1556 = vld [vmem:[%s3 + $0x70] sm:$0xff]
      %v1557 = vld [vmem:[%s3 + $0x78] sm:$0xff]
      %v1558 = vpack.c.bf16 %v1195, %v1192
      %v1559 = vpack.c.bf16 %v1203, %v1200
      %v1560 = vpack.c.bf16 %v1211, %v1208
      %v1561 = vpack.c.bf16 %v1219, %v1216
      %v1562 = vmul.f32 %v1312, %v1494
      %v1563 = vmul.f32 %v1315, %v1495
      %v1564 = vmul.f32 %v1320, %v1496
      %v1565 = vmul.f32 %v1323, %v1497
      %v1566 = vmul.f32 %v1328, %v1498
      %v1567 = vmul.f32 %v1331, %v1499
      %v1568 = vmul.f32 %v1336, %v1500
      %v1569 = vmul.f32 %v1339, %v1501
      %v1570 = vmul.f32 %v1312, %v1502
      %v1571 = vmul.f32 %v1315, %v1503
      %v1572 = vmul.f32 %v1320, %v1504
      %v1573 = vmul.f32 %v1323, %v1505
      %v1574 = vmul.f32 %v1328, %v1506
      %v1575 = vmul.f32 %v1331, %v1507
      %v1576 = vmul.f32 %v1336, %v1508
      %v1577 = vmul.f32 %v1339, %v1509
      %v1578 = vmul.f32 %v1312, %v1510
      %v1579 = vmul.f32 %v1315, %v1511
      %v1580 = vmul.f32 %v1320, %v1512
      %v1581 = vmul.f32 %v1323, %v1513
      %v1582 = vmul.f32 %v1328, %v1514
      %v1583 = vmul.f32 %v1331, %v1515
      %v1584 = vmul.f32 %v1336, %v1516
      %v1585 = vmul.f32 %v1339, %v1517
      %v1586 = vmul.f32 %v1312, %v1518
      %v1587 = vmul.f32 %v1315, %v1519
      %v1588 = vmul.f32 %v1320, %v1520
      %v1589 = vmul.f32 %v1323, %v1521
      %v1590 = vmul.f32 %v1328, %v1522
      %v1591 = vmul.f32 %v1331, %v1523
      %v1592 = vmul.f32 %v1336, %v1524
      %v1593 = vmul.f32 %v1339, %v1525
      %v1594 = vpack.c.bf16 %v1563, %v1562
      %v1595 = vpack.c.bf16 %v1565, %v1564
      %v1596 = vpack.c.bf16 %v1567, %v1566
      %v1597 = vpack.c.bf16 %v1569, %v1568
      %v1598 = vpack.c.bf16 %v1571, %v1570
      %v1599 = vpack.c.bf16 %v1573, %v1572
      %v1600 = vpack.c.bf16 %v1575, %v1574
      %v1601 = vpack.c.bf16 %v1577, %v1576
      %v1602 = vpack.c.bf16 %v1579, %v1578
      %v1603 = vpack.c.bf16 %v1581, %v1580
      %v1604 = vpack.c.bf16 %v1583, %v1582
      %v1605 = vpack.c.bf16 %v1585, %v1584
      %v1606 = vpack.c.bf16 %v1587, %v1586
      %v1607 = vpack.c.bf16 %v1589, %v1588
      %v1608 = vpack.c.bf16 %v1591, %v1590
      %v1609 = vpack.c.bf16 %v1593, %v1592
      %v1610 = vmul.f32 %v1432, %v1494
      %v1611 = vmul.f32 %v1435, %v1495
      %v1612 = vmul.f32 %v1440, %v1496
      %v1613 = vmul.f32 %v1443, %v1497
      %v1614 = vmul.f32 %v1448, %v1498
      %v1615 = vmul.f32 %v1451, %v1499
      %v1616 = vmul.f32 %v1456, %v1500
      %v1617 = vmul.f32 %v1459, %v1501
      %v1618 = vmul.f32 %v1432, %v1502
      %v1619 = vmul.f32 %v1435, %v1503
      %v1620 = vmul.f32 %v1440, %v1504
      %v1621 = vmul.f32 %v1443, %v1505
      %v1622 = vmul.f32 %v1448, %v1506
      %v1623 = vmul.f32 %v1451, %v1507
      %v1624 = vmul.f32 %v1456, %v1508
      %v1625 = vmul.f32 %v1459, %v1509
      %v1626 = vmul.f32 %v1432, %v1510
      %v1627 = vmul.f32 %v1435, %v1511
      %v1628 = vmul.f32 %v1440, %v1512
      %v1629 = vmul.f32 %v1443, %v1513
      %v1630 = vmul.f32 %v1448, %v1514
      %v1631 = vmul.f32 %v1451, %v1515
      %v1632 = vmul.f32 %v1456, %v1516
      %v1633 = vmul.f32 %v1459, %v1517
      %v1634 = vmul.f32 %v1432, %v1518
      %v1635 = vmul.f32 %v1435, %v1519
      %v1636 = vmul.f32 %v1440, %v1520
      %v1637 = vmul.f32 %v1443, %v1521
      %v1638 = vmul.f32 %v1448, %v1522
      %v1639 = vmul.f32 %v1451, %v1523
      %v1640 = vmul.f32 %v1456, %v1524
      %v1641 = vmul.f32 %v1459, %v1525
      %v1642 = vpack.c.bf16 %v1611, %v1610
      %v1643 = vpack.c.bf16 %v1613, %v1612
      %v1644 = vpack.c.bf16 %v1615, %v1614
      %v1645 = vpack.c.bf16 %v1617, %v1616
      %v1646 = vpack.c.bf16 %v1619, %v1618
      %v1647 = vpack.c.bf16 %v1621, %v1620
      %v1648 = vpack.c.bf16 %v1623, %v1622
      %v1649 = vpack.c.bf16 %v1625, %v1624
      %v1650 = vpack.c.bf16 %v1627, %v1626
      %v1651 = vpack.c.bf16 %v1629, %v1628
      %v1652 = vpack.c.bf16 %v1631, %v1630
      %v1653 = vpack.c.bf16 %v1633, %v1632
      %v1654 = vpack.c.bf16 %v1635, %v1634
      %v1655 = vpack.c.bf16 %v1637, %v1636
      %v1656 = vpack.c.bf16 %v1639, %v1638
      %v1657 = vpack.c.bf16 %v1641, %v1640
      %v1659 = vsel %vm677, %v1558, 0
      %v1662 = vsel %vm677, %v1559, 0
      %v1665 = vsel %vm677, %v1560, 0
      %v1668 = vsel %vm677, %v1561, 0
      %v1671 = vsel %vm677, %v1594, 0
      %v1674 = vsel %vm677, %v1595, 0
      %v1677 = vsel %vm677, %v1596, 0
      %v1680 = vsel %vm677, %v1597, 0
      %v1683 = vsel %vm677, %v1598, 0
      %v1686 = vsel %vm677, %v1599, 0
      %v1689 = vsel %vm677, %v1600, 0
      %v1692 = vsel %vm677, %v1601, 0
      %v1695 = vsel %vm677, %v1602, 0
      %v1698 = vsel %vm677, %v1603, 0
      %v1701 = vsel %vm677, %v1604, 0
      %v1704 = vsel %vm677, %v1605, 0
      %v1707 = vsel %vm677, %v1606, 0
      %v1710 = vsel %vm677, %v1607, 0
      %v1713 = vsel %vm677, %v1608, 0
      %v1716 = vsel %vm677, %v1609, 0
      %1718 = vmatprep.subr.bf16.mxu0 0
      %1719 = vmatpush1.bf16.xpose.msra.mxu0 %v1671
      %1720 = vmatprep.subr.bf16.mxu0 0
      %1721 = vmatpush1.bf16.xpose.msra.mxu0 %v1674
      %1722 = vmatprep.subr.bf16.mxu0 0
      %1723 = vmatpush1.bf16.xpose.msra.mxu0 %v1677
      %1724 = vmatprep.subr.bf16.mxu0 0
      %1725 = vmatpush1.bf16.xpose.msra.mxu0 %v1680
      %1726 = vmatprep.subr.bf16.mxu0 0
      %1727 = vmatpush1.bf16.xpose.msra.mxu0 %v1683
      %1728 = vmatprep.subr.bf16.mxu0 0
      %1729 = vmatpush1.bf16.xpose.msra.mxu0 %v1686
      %1730 = vmatprep.subr.bf16.mxu0 0
      %1731 = vmatpush1.bf16.xpose.msra.mxu0 %v1689
      %1732 = vmatprep.subr.bf16.mxu0 0
      %1733 = vmatpush1.bf16.xpose.msra.mxu0 %v1692
      %1734 = vmatprep.subr.bf16.mxu0 0
      %1735 = vmatpush1.bf16.xpose.msra.mxu0 %v1695
      %1736 = vmatprep.subr.bf16.mxu0 0
      %1737 = vmatpush1.bf16.xpose.msra.mxu0 %v1698
      %1738 = vmatprep.subr.bf16.mxu0 0
      %1739 = vmatpush1.bf16.xpose.msra.mxu0 %v1701
      %1740 = vmatprep.subr.bf16.mxu0 0
      %1741 = vmatpush1.bf16.xpose.msra.mxu0 %v1704
      %1742 = vmatprep.subr.bf16.mxu0 0
      %1743 = vmatpush1.bf16.xpose.msra.mxu0 %v1707
      %1744 = vmatprep.subr.bf16.mxu0 0
      %1745 = vmatpush1.bf16.xpose.msra.mxu0 %v1710
      %1746 = vmatprep.subr.bf16.mxu0 0
      %1747 = vmatpush1.bf16.xpose.msra.mxu0 %v1713
      %1748 = vmatprep.subr.bf16.mxu0 0
      %1749 = vmatpush1.bf16.xpose.msra.mxu0 %v1716
      %1750 = vmatprep.mubr.bf16.mxu0 0
      %1751 = vmatmul.mubr.bf16.gmra.mrb[0].mxu0 %v1659
      %v1752 = vpop.f32.mrb[0].mxu0
      %v1753 = vadd.f32 %v1542, %v1752
      %v1754 = vpop.f32.mrb[0].mxu0
      %v1755 = vadd.f32 %v1543, %v1754
      %v1756 = vpop.f32.mrb[0].mxu0
      %v1757 = vadd.f32 %v1544, %v1756
      %v1758 = vpop.f32.mrb[0].mxu0
      %v1759 = vadd.f32 %v1545, %v1758
      %1760 = vmatprep.mubr.bf16.mxu0 0
      %1761 = vmatmul.mubr.bf16.gmra.mrb[0].mxu0 %v1662
      %v1762 = vpop.f32.mrb[0].mxu0
      %v1763 = vadd.f32 %v1546, %v1762
      %v1764 = vpop.f32.mrb[0].mxu0
      %v1765 = vadd.f32 %v1547, %v1764
      %v1766 = vpop.f32.mrb[0].mxu0
      %v1767 = vadd.f32 %v1548, %v1766
      %v1768 = vpop.f32.mrb[0].mxu0
      %v1769 = vadd.f32 %v1549, %v1768
      %1770 = vmatprep.mubr.bf16.mxu0 0
      %1771 = vmatmul.mubr.bf16.gmra.mrb[0].mxu0 %v1665
      %v1772 = vpop.f32.mrb[0].mxu0
      %v1773 = vadd.f32 %v1550, %v1772
      %v1774 = vpop.f32.mrb[0].mxu0
      %v1775 = vadd.f32 %v1551, %v1774
      %v1776 = vpop.f32.mrb[0].mxu0
      %v1777 = vadd.f32 %v1552, %v1776
      %v1778 = vpop.f32.mrb[0].mxu0
      %v1779 = vadd.f32 %v1553, %v1778
      %1780 = vmatprep.mubr.bf16.mxu0 0
      %1781 = vmatmul.mubr.bf16.gmra.mrb[0].mxu0 %v1668
      %v1782 = vpop.f32.mrb[0].mxu0
      %v1783 = vadd.f32 %v1554, %v1782
      %v1784 = vpop.f32.mrb[0].mxu0
      %v1785 = vadd.f32 %v1555, %v1784
      %v1786 = vpop.f32.mrb[0].mxu0
      %v1787 = vadd.f32 %v1556, %v1786
      %v1788 = vpop.f32.mrb[0].mxu0
      %v1789 = vadd.f32 %v1557, %v1788
      %1790 = vdwg.mxu0
      %v1791 = vmax.f32 %v1753, %v1755
      %1792 = vmax.xlane.f32.xlu0 %v1791
      %v1793 = vpop.xlane.xlu0 %1792
      %v1794 = vmax.f32 %v1757, %v1759
      %1795 = vmax.xlane.f32.xlu0 %v1794
      %v1796 = vpop.xlane.xlu0 %1795
      %v1797 = vmax.f32 %v1763, %v1765
      %1798 = vmax.xlane.f32.xlu0 %v1797
      %v1799 = vpop.xlane.xlu0 %1798
      %v1800 = vmax.f32 %v1767, %v1769
      %1801 = vmax.xlane.f32.xlu0 %v1800
      %v1802 = vpop.xlane.xlu0 %1801
      %v1803 = vmax.f32 %v1773, %v1775
      %1804 = vmax.xlane.f32.xlu0 %v1803
      %v1805 = vpop.xlane.xlu0 %1804
      %v1806 = vmax.f32 %v1777, %v1779
      %1807 = vmax.xlane.f32.xlu0 %v1806
      %v1808 = vpop.xlane.xlu0 %1807
      %v1809 = vmax.f32 %v1783, %v1785
      %1810 = vmax.xlane.f32.xlu0 %v1809
      %v1811 = vpop.xlane.xlu0 %1810
      %v1812 = vmax.f32 %v1787, %v1789
      %1813 = vmax.xlane.f32.xlu0 %v1812
      %v1814 = vpop.xlane.xlu0 %1813
      %v1815 = vsub.f32 %v1753, %v1793
      %v1816 = vsub.f32 %v1755, %v1793
      %v1817 = vsub.f32 %v1757, %v1796
      %v1818 = vsub.f32 %v1759, %v1796
      %v1819 = vsub.f32 %v1763, %v1799
      %v1820 = vsub.f32 %v1765, %v1799
      %v1821 = vsub.f32 %v1767, %v1802
      %v1822 = vsub.f32 %v1769, %v1802
      %v1823 = vsub.f32 %v1773, %v1805
      %v1824 = vsub.f32 %v1775, %v1805
      %v1825 = vsub.f32 %v1777, %v1808
      %v1826 = vsub.f32 %v1779, %v1808
      %v1827 = vsub.f32 %v1783, %v1811
      %v1828 = vsub.f32 %v1785, %v1811
      %v1829 = vsub.f32 %v1787, %v1814
      %v1830 = vsub.f32 %v1789, %v1814
      %v1831 = vmul.f32 %v1815, 1.442695
      %v1832 = vpow.pop %v1831
      %v1833 = vmul.f32 %v1816, 1.442695
      %v1834 = vpow.pop %v1833
      %v1835 = vmul.f32 %v1817, 1.442695
      %v1836 = vpow.pop %v1835
      %v1837 = vmul.f32 %v1818, 1.442695
      %v1838 = vpow.pop %v1837
      %v1839 = vmul.f32 %v1819, 1.442695
      %v1840 = vpow.pop %v1839
      %v1841 = vmul.f32 %v1820, 1.442695
      %v1842 = vpow.pop %v1841
      %v1843 = vmul.f32 %v1821, 1.442695
      %v1844 = vpow.pop %v1843
      %v1845 = vmul.f32 %v1822, 1.442695
      %v1846 = vpow.pop %v1845
      %v1847 = vmul.f32 %v1823, 1.442695
      %v1848 = vpow.pop %v1847
      %v1849 = vmul.f32 %v1824, 1.442695
      %v1850 = vpow.pop %v1849
      %v1851 = vmul.f32 %v1825, 1.442695
      %v1852 = vpow.pop %v1851
      %v1853 = vmul.f32 %v1826, 1.442695
      %v1854 = vpow.pop %v1853
      %v1855 = vmul.f32 %v1827, 1.442695
      %v1856 = vpow.pop %v1855
      %v1857 = vmul.f32 %v1828, 1.442695
      %v1858 = vpow.pop %v1857
      %v1859 = vmul.f32 %v1829, 1.442695
      %v1860 = vpow.pop %v1859
      %v1861 = vmul.f32 %v1830, 1.442695
      %v1862 = vpow.pop %v1861
      %v1863 = vpack.c.bf16 %v1836, %v1832
      %v1864 = vpack.c.bf16 %v1838, %v1834
      %v1865 = vpack.c.bf16 %v1844, %v1840
      %v1866 = vpack.c.bf16 %v1846, %v1842
      %v1867 = vpack.c.bf16 %v1852, %v1848
      %v1868 = vpack.c.bf16 %v1854, %v1850
      %v1869 = vpack.c.bf16 %v1860, %v1856
      %v1870 = vpack.c.bf16 %v1862, %v1858
      %1871 = vmatprep.subr.bf16.mxu0 0
      %1872 = vmatpush1.bf16.msra.mxu0 %v1642
      %1873 = vmatprep.subr.bf16.mxu0 0
      %1874 = vmatpush1.bf16.msra.mxu0 %v1643
      %1875 = vmatprep.subr.bf16.mxu0 0
      %1876 = vmatpush1.bf16.msra.mxu0 %v1644
      %1877 = vmatprep.subr.bf16.mxu0 0
      %1878 = vmatpush1.bf16.msra.mxu0 %v1645
      %1879 = vmatprep.subr.bf16.mxu0 0
      %1880 = vmatpush1.bf16.msra.mxu0 %v1646
      %1881 = vmatprep.subr.bf16.mxu0 0
      %1882 = vmatpush1.bf16.msra.mxu0 %v1647
      %1883 = vmatprep.subr.bf16.mxu0 0
      %1884 = vmatpush1.bf16.msra.mxu0 %v1648
      %1885 = vmatprep.subr.bf16.mxu0 0
      %1886 = vmatpush1.bf16.msra.mxu0 %v1649
      %1887 = vmatprep.subr.bf16.mxu0 0
      %1888 = vmatpush1.bf16.msra.mxu0 %v1650
      %1889 = vmatprep.subr.bf16.mxu0 0
      %1890 = vmatpush1.bf16.msra.mxu0 %v1651
      %1891 = vmatprep.subr.bf16.mxu0 0
      %1892 = vmatpush1.bf16.msra.mxu0 %v1652
      %1893 = vmatprep.subr.bf16.mxu0 0
      %1894 = vmatpush1.bf16.msra.mxu0 %v1653
      %1895 = vmatprep.subr.bf16.mxu0 0
      %1896 = vmatpush1.bf16.msra.mxu0 %v1654
      %1897 = vmatprep.subr.bf16.mxu0 0
      %1898 = vmatpush1.bf16.msra.mxu0 %v1655
      %1899 = vmatprep.subr.bf16.mxu0 0
      %1900 = vmatpush1.bf16.msra.mxu0 %v1656
      %1901 = vmatprep.subr.bf16.mxu0 0
      %1902 = vmatpush1.bf16.msra.mxu0 %v1657
      %1903 = vmatprep.mubr.bf16.mxu0 %v1864
      %1904 = vmatmul.mubr.bf16.gmra.mrb[0].mxu0 %v1863
      %v1905 = vpop.f32.mrb[0].mxu0
      %v1906 = vadd.f32 0.0, %v1905
      %v1907 = vpop.f32.mrb[0].mxu0
      %v1908 = vpop.f32.mrb[0].mxu0
      %v1909 = vadd.f32 0.0, %v1908
      %v1910 = vpop.f32.mrb[0].mxu0
      %1911 = vmatprep.mubr.bf16.mxu0 %v1866
      %1912 = vmatmul.mubr.bf16.gmra.mrb[0].mxu0 %v1865
      %v1913 = vpop.f32.mrb[0].mxu0
      %v1914 = vadd.f32 0.0, %v1913
      %v1915 = vpop.f32.mrb[0].mxu0
      %v1916 = vpop.f32.mrb[0].mxu0
      %v1917 = vadd.f32 0.0, %v1916
      %v1918 = vpop.f32.mrb[0].mxu0
      %1919 = vmatprep.mubr.bf16.mxu0 %v1868
      %1920 = vmatmul.mubr.bf16.gmra.mrb[0].mxu0 %v1867
      %v1921 = vpop.f32.mrb[0].mxu0
      %v1922 = vadd.f32 0.0, %v1921
      %v1923 = vpop.f32.mrb[0].mxu0
      %v1924 = vpop.f32.mrb[0].mxu0
      %v1925 = vadd.f32 0.0, %v1924
      %v1926 = vpop.f32.mrb[0].mxu0
      %1927 = vmatprep.mubr.bf16.mxu0 %v1870
      %1928 = vmatmul.mubr.bf16.gmra.mrb[0].mxu0 %v1869
      %v1929 = vpop.f32.mrb[0].mxu0
      %v1930 = vadd.f32 0.0, %v1929
      %v1931 = vpop.f32.mrb[0].mxu0
      %v1932 = vpop.f32.mrb[0].mxu0
      %v1933 = vadd.f32 0.0, %v1932
      %v1934 = vpop.f32.mrb[0].mxu0
      %1935 = vdwg.mxu0
      %1936 = vmatprep.subr.bf16.mxu0 0
      %1937 = vmatpush1.bf16.msra.mxu0 %v1526
      %1938 = vmatprep.subr.bf16.mxu0 0
      %1939 = vmatpush1.bf16.msra.mxu0 %v1527
      %1940 = vmatprep.subr.bf16.mxu0 0
      %1941 = vmatpush1.bf16.msra.mxu0 %v1528
      %1942 = vmatprep.subr.bf16.mxu0 0
      %1943 = vmatpush1.bf16.msra.mxu0 %v1529
      %1944 = vmatprep.subr.bf16.mxu0 0
      %1945 = vmatpush1.bf16.msra.mxu0 %v1530
      %1946 = vmatprep.subr.bf16.mxu0 0
      %1947 = vmatpush1.bf16.msra.mxu0 %v1531
      %1948 = vmatprep.subr.bf16.mxu0 0
      %1949 = vmatpush1.bf16.msra.mxu0 %v1532
      %1950 = vmatprep.subr.bf16.mxu0 0
      %1951 = vmatpush1.bf16.msra.mxu0 %v1533
      %1952 = vmatprep.subr.bf16.mxu0 0
      %1953 = vmatpush1.bf16.msra.mxu0 %v1534
      %1954 = vmatprep.subr.bf16.mxu0 0
      %1955 = vmatpush1.bf16.msra.mxu0 %v1535
      %1956 = vmatprep.subr.bf16.mxu0 0
      %1957 = vmatpush1.bf16.msra.mxu0 %v1536
      %1958 = vmatprep.subr.bf16.mxu0 0
      %1959 = vmatpush1.bf16.msra.mxu0 %v1537
      %1960 = vmatprep.subr.bf16.mxu0 0
      %1961 = vmatpush1.bf16.msra.mxu0 %v1538
      %1962 = vmatprep.subr.bf16.mxu0 0
      %1963 = vmatpush1.bf16.msra.mxu0 %v1539
      %1964 = vmatprep.subr.bf16.mxu0 0
      %1965 = vmatpush1.bf16.msra.mxu0 %v1540
      %1966 = vmatprep.subr.bf16.mxu0 0
      %1967 = vmatpush1.bf16.msra.mxu0 %v1541
      %1968 = vmatprep.mubr.bf16.mxu0 %v1864
      %1969 = vmatmul.mubr.bf16.gmra.mrb[0].mxu0 %v1863
      %v1970 = vpop.f32.mrb[0].mxu0
      %v1971 = vadd.f32 0.0, %v1970
      %v1972 = vpop.f32.mrb[0].mxu0
      %v1973 = vpop.f32.mrb[0].mxu0
      %v1974 = vadd.f32 0.0, %v1973
      %v1975 = vpop.f32.mrb[0].mxu0
      %1976 = vmatprep.mubr.bf16.mxu0 %v1866
      %1977 = vmatmul.mubr.bf16.gmra.mrb[0].mxu0 %v1865
      %v1978 = vpop.f32.mrb[0].mxu0
      %v1979 = vadd.f32 0.0, %v1978
      %v1980 = vpop.f32.mrb[0].mxu0
      %v1981 = vpop.f32.mrb[0].mxu0
      %v1982 = vadd.f32 0.0, %v1981
      %v1983 = vpop.f32.mrb[0].mxu0
      %1984 = vmatprep.mubr.bf16.mxu0 %v1868
      %1985 = vmatmul.mubr.bf16.gmra.mrb[0].mxu0 %v1867
      %v1986 = vpop.f32.mrb[0].mxu0
      %v1987 = vadd.f32 0.0, %v1986
      %v1988 = vpop.f32.mrb[0].mxu0
      %v1989 = vpop.f32.mrb[0].mxu0
      %v1990 = vadd.f32 0.0, %v1989
      %v1991 = vpop.f32.mrb[0].mxu0
      %1992 = vmatprep.mubr.bf16.mxu0 %v1870
      %1993 = vmatmul.mubr.bf16.gmra.mrb[0].mxu0 %v1869
      %v1994 = vpop.f32.mrb[0].mxu0
      %v1995 = vadd.f32 0.0, %v1994
      %v1996 = vpop.f32.mrb[0].mxu0
      %v1997 = vpop.f32.mrb[0].mxu0
      %v1998 = vadd.f32 0.0, %v1997
      %v1999 = vpop.f32.mrb[0].mxu0
      %2000 = vdwg.mxu0
      %v2001 = vrcp.pop %v1971
      %v2002 = vrcp.pop %v1974
      %v2003 = vrcp.pop %v1979
      %v2004 = vrcp.pop %v1982
      %v2005 = vrcp.pop %v1987
      %v2006 = vrcp.pop %v1990
      %v2007 = vrcp.pop %v1995
      %v2008 = vrcp.pop %v1998
      %v2009 = vmul.f32 %v1906, %v2001
      %v2010 = vmul.f32 %v1909, %v2002
      %v2011 = vmul.f32 %v1914, %v2003
      %v2012 = vmul.f32 %v1917, %v2004
      %v2013 = vmul.f32 %v1922, %v2005
      %v2014 = vmul.f32 %v1925, %v2006
      %v2015 = vmul.f32 %v1930, %v2007
      %v2016 = vmul.f32 %v1933, %v2008
      %v2017 = vpack.c.bf16 %v1227, %v1224
      %v2018 = vpack.c.bf16 %v1235, %v1232
      %v2019 = vpack.c.bf16 %v1243, %v1240
      %v2020 = vpack.c.bf16 %v1251, %v1248
      %v2021 = vmul.f32 %v1344, %v1494
      %v2022 = vmul.f32 %v1347, %v1495
      %v2023 = vmul.f32 %v1352, %v1496
      %v2024 = vmul.f32 %v1355, %v1497
      %v2025 = vmul.f32 %v1360, %v1498
      %v2026 = vmul.f32 %v1363, %v1499
      %v2027 = vmul.f32 %v1368, %v1500
      %v2028 = vmul.f32 %v1371, %v1501
      %v2029 = vmul.f32 %v1344, %v1502
      %v2030 = vmul.f32 %v1347, %v1503
      %v2031 = vmul.f32 %v1352, %v1504
      %v2032 = vmul.f32 %v1355, %v1505
      %v2033 = vmul.f32 %v1360, %v1506
      %v2034 = vmul.f32 %v1363, %v1507
      %v2035 = vmul.f32 %v1368, %v1508
      %v2036 = vmul.f32 %v1371, %v1509
      %v2037 = vmul.f32 %v1344, %v1510
      %v2038 = vmul.f32 %v1347, %v1511
      %v2039 = vmul.f32 %v1352, %v1512
      %v2040 = vmul.f32 %v1355, %v1513
      %v2041 = vmul.f32 %v1360, %v1514
      %v2042 = vmul.f32 %v1363, %v1515
      %v2043 = vmul.f32 %v1368, %v1516
      %v2044 = vmul.f32 %v1371, %v1517
      %v2045 = vmul.f32 %v1344, %v1518
      %v2046 = vmul.f32 %v1347, %v1519
      %v2047 = vmul.f32 %v1352, %v1520
      %v2048 = vmul.f32 %v1355, %v1521
      %v2049 = vmul.f32 %v1360, %v1522
      %v2050 = vmul.f32 %v1363, %v1523
      %v2051 = vmul.f32 %v1368, %v1524
      %v2052 = vmul.f32 %v1371, %v1525
      %v2053 = vpack.c.bf16 %v2022, %v2021
      %v2054 = vpack.c.bf16 %v2024, %v2023
      %v2055 = vpack.c.bf16 %v2026, %v2025
      %v2056 = vpack.c.bf16 %v2028, %v2027
      %v2057 = vpack.c.bf16 %v2030, %v2029
      %v2058 = vpack.c.bf16 %v2032, %v2031
      %v2059 = vpack.c.bf16 %v2034, %v2033
      %v2060 = vpack.c.bf16 %v2036, %v2035
      %v2061 = vpack.c.bf16 %v2038, %v2037
      %v2062 = vpack.c.bf16 %v2040, %v2039
      %v2063 = vpack.c.bf16 %v2042, %v2041
      %v2064 = vpack.c.bf16 %v2044, %v2043
      %v2065 = vpack.c.bf16 %v2046, %v2045
      %v2066 = vpack.c.bf16 %v2048, %v2047
      %v2067 = vpack.c.bf16 %v2050, %v2049
      %v2068 = vpack.c.bf16 %v2052, %v2051
      %v2069 = vmul.f32 %v1464, %v1494
      %v2070 = vmul.f32 %v1467, %v1495
      %v2071 = vmul.f32 %v1472, %v1496
      %v2072 = vmul.f32 %v1475, %v1497
      %v2073 = vmul.f32 %v1480, %v1498
      %v2074 = vmul.f32 %v1483, %v1499
      %v2075 = vmul.f32 %v1488, %v1500
      %v2076 = vmul.f32 %v1491, %v1501
      %v2077 = vmul.f32 %v1464, %v1502
      %v2078 = vmul.f32 %v1467, %v1503
      %v2079 = vmul.f32 %v1472, %v1504
      %v2080 = vmul.f32 %v1475, %v1505
      %v2081 = vmul.f32 %v1480, %v1506
      %v2082 = vmul.f32 %v1483, %v1507
      %v2083 = vmul.f32 %v1488, %v1508
      %v2084 = vmul.f32 %v1491, %v1509
      %v2085 = vmul.f32 %v1464, %v1510
      %v2086 = vmul.f32 %v1467, %v1511
      %v2087 = vmul.f32 %v1472, %v1512
      %v2088 = vmul.f32 %v1475, %v1513
      %v2089 = vmul.f32 %v1480, %v1514
      %v2090 = vmul.f32 %v1483, %v1515
      %v2091 = vmul.f32 %v1488, %v1516
      %v2092 = vmul.f32 %v1491, %v1517
      %v2093 = vmul.f32 %v1464, %v1518
      %v2094 = vmul.f32 %v1467, %v1519
      %v2095 = vmul.f32 %v1472, %v1520
      %v2096 = vmul.f32 %v1475, %v1521
      %v2097 = vmul.f32 %v1480, %v1522
      %v2098 = vmul.f32 %v1483, %v1523
      %v2099 = vmul.f32 %v1488, %v1524
      %v2100 = vmul.f32 %v1491, %v1525
      %v2101 = vpack.c.bf16 %v2070, %v2069
      %v2102 = vpack.c.bf16 %v2072, %v2071
      %v2103 = vpack.c.bf16 %v2074, %v2073
      %v2104 = vpack.c.bf16 %v2076, %v2075
      %v2105 = vpack.c.bf16 %v2078, %v2077
      %v2106 = vpack.c.bf16 %v2080, %v2079
      %v2107 = vpack.c.bf16 %v2082, %v2081
      %v2108 = vpack.c.bf16 %v2084, %v2083
      %v2109 = vpack.c.bf16 %v2086, %v2085
      %v2110 = vpack.c.bf16 %v2088, %v2087
      %v2111 = vpack.c.bf16 %v2090, %v2089
      %v2112 = vpack.c.bf16 %v2092, %v2091
      %v2113 = vpack.c.bf16 %v2094, %v2093
      %v2114 = vpack.c.bf16 %v2096, %v2095
      %v2115 = vpack.c.bf16 %v2098, %v2097
      %v2116 = vpack.c.bf16 %v2100, %v2099
      %v2118 = vsel %vm677, %v2017, 0
      %v2121 = vsel %vm677, %v2018, 0
      %v2124 = vsel %vm677, %v2019, 0
      %v2127 = vsel %vm677, %v2020, 0
      %v2130 = vsel %vm677, %v2053, 0
      %v2133 = vsel %vm677, %v2054, 0
      %v2136 = vsel %vm677, %v2055, 0
      %v2139 = vsel %vm677, %v2056, 0
      %v2142 = vsel %vm677, %v2057, 0
      %v2145 = vsel %vm677, %v2058, 0
      %v2148 = vsel %vm677, %v2059, 0
      %v2151 = vsel %vm677, %v2060, 0
      %v2154 = vsel %vm677, %v2061, 0
      %v2157 = vsel %vm677, %v2062, 0
      %v2160 = vsel %vm677, %v2063, 0
      %v2163 = vsel %vm677, %v2064, 0
      %v2166 = vsel %vm677, %v2065, 0
      %v2169 = vsel %vm677, %v2066, 0
      %v2172 = vsel %vm677, %v2067, 0
      %v2175 = vsel %vm677, %v2068, 0
      %2177 = vmatprep.subr.bf16.mxu0 0
      %2178 = vmatpush1.bf16.xpose.msra.mxu0 %v2130
      %2179 = vmatprep.subr.bf16.mxu0 0
      %2180 = vmatpush1.bf16.xpose.msra.mxu0 %v2133
      %2181 = vmatprep.subr.bf16.mxu0 0
      %2182 = vmatpush1.bf16.xpose.msra.mxu0 %v2136
      %2183 = vmatprep.subr.bf16.mxu0 0
      %2184 = vmatpush1.bf16.xpose.msra.mxu0 %v2139
      %2185 = vmatprep.subr.bf16.mxu0 0
      %2186 = vmatpush1.bf16.xpose.msra.mxu0 %v2142
      %2187 = vmatprep.subr.bf16.mxu0 0
      %2188 = vmatpush1.bf16.xpose.msra.mxu0 %v2145
      %2189 = vmatprep.subr.bf16.mxu0 0
      %2190 = vmatpush1.bf16.xpose.msra.mxu0 %v2148
      %2191 = vmatprep.subr.bf16.mxu0 0
      %2192 = vmatpush1.bf16.xpose.msra.mxu0 %v2151
      %2193 = vmatprep.subr.bf16.mxu0 0
      %2194 = vmatpush1.bf16.xpose.msra.mxu0 %v2154
      %2195 = vmatprep.subr.bf16.mxu0 0
      %2196 = vmatpush1.bf16.xpose.msra.mxu0 %v2157
      %2197 = vmatprep.subr.bf16.mxu0 0
      %2198 = vmatpush1.bf16.xpose.msra.mxu0 %v2160
      %2199 = vmatprep.subr.bf16.mxu0 0
      %2200 = vmatpush1.bf16.xpose.msra.mxu0 %v2163
      %2201 = vmatprep.subr.bf16.mxu0 0
      %2202 = vmatpush1.bf16.xpose.msra.mxu0 %v2166
      %2203 = vmatprep.subr.bf16.mxu0 0
      %2204 = vmatpush1.bf16.xpose.msra.mxu0 %v2169
      %2205 = vmatprep.subr.bf16.mxu0 0
      %2206 = vmatpush1.bf16.xpose.msra.mxu0 %v2172
      %2207 = vmatprep.subr.bf16.mxu0 0
      %2208 = vmatpush1.bf16.xpose.msra.mxu0 %v2175
      %2209 = vmatprep.mubr.bf16.mxu0 0
      %2210 = vmatmul.mubr.bf16.gmra.mrb[0].mxu0 %v2118
      %v2211 = vpop.f32.mrb[0].mxu0
      %v2212 = vadd.f32 %v1542, %v2211
      %v2213 = vpop.f32.mrb[0].mxu0
      %v2214 = vadd.f32 %v1543, %v2213
      %v2215 = vpop.f32.mrb[0].mxu0
      %v2216 = vadd.f32 %v1544, %v2215
      %v2217 = vpop.f32.mrb[0].mxu0
      %v2218 = vadd.f32 %v1545, %v2217
      %2219 = vmatprep.mubr.bf16.mxu0 0
      %2220 = vmatmul.mubr.bf16.gmra.mrb[0].mxu0 %v2121
      %v2221 = vpop.f32.mrb[0].mxu0
      %v2222 = vadd.f32 %v1546, %v2221
      %v2223 = vpop.f32.mrb[0].mxu0
      %v2224 = vadd.f32 %v1547, %v2223
      %v2225 = vpop.f32.mrb[0].mxu0
      %v2226 = vadd.f32 %v1548, %v2225
      %v2227 = vpop.f32.mrb[0].mxu0
      %v2228 = vadd.f32 %v1549, %v2227
      %2229 = vmatprep.mubr.bf16.mxu0 0
      %2230 = vmatmul.mubr.bf16.gmra.mrb[0].mxu0 %v2124
      %v2231 = vpop.f32.mrb[0].mxu0
      %v2232 = vadd.f32 %v1550, %v2231
      %v2233 = vpop.f32.mrb[0].mxu0
      %v2234 = vadd.f32 %v1551, %v2233
      %v2235 = vpop.f32.mrb[0].mxu0
      %v2236 = vadd.f32 %v1552, %v2235
      %v2237 = vpop.f32.mrb[0].mxu0
      %v2238 = vadd.f32 %v1553, %v2237
      %2239 = vmatprep.mubr.bf16.mxu0 0
      %2240 = vmatmul.mubr.bf16.gmra.mrb[0].mxu0 %v2127
      %v2241 = vpop.f32.mrb[0].mxu0
      %v2242 = vadd.f32 %v1554, %v2241
      %v2243 = vpop.f32.mrb[0].mxu0
      %v2244 = vadd.f32 %v1555, %v2243
      %v2245 = vpop.f32.mrb[0].mxu0
      %v2246 = vadd.f32 %v1556, %v2245
      %v2247 = vpop.f32.mrb[0].mxu0
      %v2248 = vadd.f32 %v1557, %v2247
      %2249 = vdwg.mxu0
      %v2250 = vmax.f32 %v2212, %v2214
      %2251 = vmax.xlane.f32.xlu0 %v2250
      %v2252 = vpop.xlane.xlu0 %2251
      %v2253 = vmax.f32 %v2216, %v2218
      %2254 = vmax.xlane.f32.xlu0 %v2253
      %v2255 = vpop.xlane.xlu0 %2254
      %v2256 = vmax.f32 %v2222, %v2224
      %2257 = vmax.xlane.f32.xlu0 %v2256
      %v2258 = vpop.xlane.xlu0 %2257
      %v2259 = vmax.f32 %v2226, %v2228
      %2260 = vmax.xlane.f32.xlu0 %v2259
      %v2261 = vpop.xlane.xlu0 %2260
      %v2262 = vmax.f32 %v2232, %v2234
      %2263 = vmax.xlane.f32.xlu0 %v2262
      %v2264 = vpop.xlane.xlu0 %2263
      %v2265 = vmax.f32 %v2236, %v2238
      %2266 = vmax.xlane.f32.xlu0 %v2265
      %v2267 = vpop.xlane.xlu0 %2266
      %v2268 = vmax.f32 %v2242, %v2244
      %2269 = vmax.xlane.f32.xlu0 %v2268
      %v2270 = vpop.xlane.xlu0 %2269
      %v2271 = vmax.f32 %v2246, %v2248
      %2272 = vmax.xlane.f32.xlu0 %v2271
      %v2273 = vpop.xlane.xlu0 %2272
      %v2274 = vsub.f32 %v2212, %v2252
      %v2275 = vsub.f32 %v2214, %v2252
      %v2276 = vsub.f32 %v2216, %v2255
      %v2277 = vsub.f32 %v2218, %v2255
      %v2278 = vsub.f32 %v2222, %v2258
      %v2279 = vsub.f32 %v2224, %v2258
      %v2280 = vsub.f32 %v2226, %v2261
      %v2281 = vsub.f32 %v2228, %v2261
      %v2282 = vsub.f32 %v2232, %v2264
      %v2283 = vsub.f32 %v2234, %v2264
      %v2284 = vsub.f32 %v2236, %v2267
      %v2285 = vsub.f32 %v2238, %v2267
      %v2286 = vsub.f32 %v2242, %v2270
      %v2287 = vsub.f32 %v2244, %v2270
      %v2288 = vsub.f32 %v2246, %v2273
      %v2289 = vsub.f32 %v2248, %v2273
      %v2290 = vmul.f32 %v2274, 1.442695
      %v2291 = vpow.pop %v2290
      %v2292 = vmul.f32 %v2275, 1.442695
      %v2293 = vpow.pop %v2292
      %v2294 = vmul.f32 %v2276, 1.442695
      %v2295 = vpow.pop %v2294
      %v2296 = vmul.f32 %v2277, 1.442695
      %v2297 = vpow.pop %v2296
      %v2298 = vmul.f32 %v2278, 1.442695
      %v2299 = vpow.pop %v2298
      %v2300 = vmul.f32 %v2279, 1.442695
      %v2301 = vpow.pop %v2300
      %v2302 = vmul.f32 %v2280, 1.442695
      %v2303 = vpow.pop %v2302
      %v2304 = vmul.f32 %v2281, 1.442695
      %v2305 = vpow.pop %v2304
      %v2306 = vmul.f32 %v2282, 1.442695
      %v2307 = vpow.pop %v2306
      %v2308 = vmul.f32 %v2283, 1.442695
      %v2309 = vpow.pop %v2308
      %v2310 = vmul.f32 %v2284, 1.442695
      %v2311 = vpow.pop %v2310
      %v2312 = vmul.f32 %v2285, 1.442695
      %v2313 = vpow.pop %v2312
      %v2314 = vmul.f32 %v2286, 1.442695
      %v2315 = vpow.pop %v2314
      %v2316 = vmul.f32 %v2287, 1.442695
      %v2317 = vpow.pop %v2316
      %v2318 = vmul.f32 %v2288, 1.442695
      %v2319 = vpow.pop %v2318
      %v2320 = vmul.f32 %v2289, 1.442695
      %v2321 = vpow.pop %v2320
      %v2322 = vpack.c.bf16 %v2295, %v2291
      %v2323 = vpack.c.bf16 %v2297, %v2293
      %v2324 = vpack.c.bf16 %v2303, %v2299
      %v2325 = vpack.c.bf16 %v2305, %v2301
      %v2326 = vpack.c.bf16 %v2311, %v2307
      %v2327 = vpack.c.bf16 %v2313, %v2309
      %v2328 = vpack.c.bf16 %v2319, %v2315
      %v2329 = vpack.c.bf16 %v2321, %v2317
      %2330 = vmatprep.subr.bf16.mxu0 0
      %2331 = vmatpush1.bf16.msra.mxu0 %v2101
      %2332 = vmatprep.subr.bf16.mxu0 0
      %2333 = vmatpush1.bf16.msra.mxu0 %v2102
      %2334 = vmatprep.subr.bf16.mxu0 0
      %2335 = vmatpush1.bf16.msra.mxu0 %v2103
      %2336 = vmatprep.subr.bf16.mxu0 0
      %2337 = vmatpush1.bf16.msra.mxu0 %v2104
      %2338 = vmatprep.subr.bf16.mxu0 0
      %2339 = vmatpush1.bf16.msra.mxu0 %v2105
      %2340 = vmatprep.subr.bf16.mxu0 0
      %2341 = vmatpush1.bf16.msra.mxu0 %v2106
      %2342 = vmatprep.subr.bf16.mxu0 0
      %2343 = vmatpush1.bf16.msra.mxu0 %v2107
      %2344 = vmatprep.subr.bf16.mxu0 0
      %2345 = vmatpush1.bf16.msra.mxu0 %v2108
      %2346 = vmatprep.subr.bf16.mxu0 0
      %2347 = vmatpush1.bf16.msra.mxu0 %v2109
      %2348 = vmatprep.subr.bf16.mxu0 0
      %2349 = vmatpush1.bf16.msra.mxu0 %v2110
      %2350 = vmatprep.subr.bf16.mxu0 0
      %2351 = vmatpush1.bf16.msra.mxu0 %v2111
      %2352 = vmatprep.subr.bf16.mxu0 0
      %2353 = vmatpush1.bf16.msra.mxu0 %v2112
      %2354 = vmatprep.subr.bf16.mxu0 0
      %2355 = vmatpush1.bf16.msra.mxu0 %v2113
      %2356 = vmatprep.subr.bf16.mxu0 0
      %2357 = vmatpush1.bf16.msra.mxu0 %v2114
      %2358 = vmatprep.subr.bf16.mxu0 0
      %2359 = vmatpush1.bf16.msra.mxu0 %v2115
      %2360 = vmatprep.subr.bf16.mxu0 0
      %2361 = vmatpush1.bf16.msra.mxu0 %v2116
      %2362 = vmatprep.mubr.bf16.mxu0 %v2323
      %2363 = vmatmul.mubr.bf16.gmra.mrb[0].mxu0 %v2322
      %v2364 = vpop.f32.mrb[0].mxu0
      %v2365 = vadd.f32 0.0, %v2364
      %v2366 = vpop.f32.mrb[0].mxu0
      %v2367 = vpop.f32.mrb[0].mxu0
      %v2368 = vadd.f32 0.0, %v2367
      %v2369 = vpop.f32.mrb[0].mxu0
      %2370 = vmatprep.mubr.bf16.mxu0 %v2325
      %2371 = vmatmul.mubr.bf16.gmra.mrb[0].mxu0 %v2324
      %v2372 = vpop.f32.mrb[0].mxu0
      %v2373 = vadd.f32 0.0, %v2372
      %v2374 = vpop.f32.mrb[0].mxu0
      %v2375 = vpop.f32.mrb[0].mxu0
      %v2376 = vadd.f32 0.0, %v2375
      %v2377 = vpop.f32.mrb[0].mxu0
      %2378 = vmatprep.mubr.bf16.mxu0 %v2327
      %2379 = vmatmul.mubr.bf16.gmra.mrb[0].mxu0 %v2326
      %v2380 = vpop.f32.mrb[0].mxu0
      %v2381 = vadd.f32 0.0, %v2380
      %v2382 = vpop.f32.mrb[0].mxu0
      %v2383 = vpop.f32.mrb[0].mxu0
      %v2384 = vadd.f32 0.0, %v2383
      %v2385 = vpop.f32.mrb[0].mxu0
      %2386 = vmatprep.mubr.bf16.mxu0 %v2329
      %2387 = vmatmul.mubr.bf16.gmra.mrb[0].mxu0 %v2328
      %v2388 = vpop.f32.mrb[0].mxu0
      %v2389 = vadd.f32 0.0, %v2388
      %v2390 = vpop.f32.mrb[0].mxu0
      %v2391 = vpop.f32.mrb[0].mxu0
      %v2392 = vadd.f32 0.0, %v2391
      %v2393 = vpop.f32.mrb[0].mxu0
      %2394 = vdwg.mxu0
      %2395 = vmatprep.subr.bf16.mxu0 0
      %2396 = vmatpush1.bf16.msra.mxu0 %v1526
      %2397 = vmatprep.subr.bf16.mxu0 0
      %2398 = vmatpush1.bf16.msra.mxu0 %v1527
      %2399 = vmatprep.subr.bf16.mxu0 0
      %2400 = vmatpush1.bf16.msra.mxu0 %v1528
      %2401 = vmatprep.subr.bf16.mxu0 0
      %2402 = vmatpush1.bf16.msra.mxu0 %v1529
      %2403 = vmatprep.subr.bf16.mxu0 0
      %2404 = vmatpush1.bf16.msra.mxu0 %v1530
      %2405 = vmatprep.subr.bf16.mxu0 0
      %2406 = vmatpush1.bf16.msra.mxu0 %v1531
      %2407 = vmatprep.subr.bf16.mxu0 0
      %2408 = vmatpush1.bf16.msra.mxu0 %v1532
      %2409 = vmatprep.subr.bf16.mxu0 0
      %2410 = vmatpush1.bf16.msra.mxu0 %v1533
      %2411 = vmatprep.subr.bf16.mxu0 0
      %2412 = vmatpush1.bf16.msra.mxu0 %v1534
      %2413 = vmatprep.subr.bf16.mxu0 0
      %2414 = vmatpush1.bf16.msra.mxu0 %v1535
      %2415 = vmatprep.subr.bf16.mxu0 0
      %2416 = vmatpush1.bf16.msra.mxu0 %v1536
      %2417 = vmatprep.subr.bf16.mxu0 0
      %2418 = vmatpush1.bf16.msra.mxu0 %v1537
      %2419 = vmatprep.subr.bf16.mxu0 0
      %2420 = vmatpush1.bf16.msra.mxu0 %v1538
      %2421 = vmatprep.subr.bf16.mxu0 0
      %2422 = vmatpush1.bf16.msra.mxu0 %v1539
      %2423 = vmatprep.subr.bf16.mxu0 0
      %2424 = vmatpush1.bf16.msra.mxu0 %v1540
      %2425 = vmatprep.subr.bf16.mxu0 0
      %2426 = vmatpush1.bf16.msra.mxu0 %v1541
      %2427 = vmatprep.mubr.bf16.mxu0 %v2323
      %2428 = vmatmul.mubr.bf16.gmra.mrb[0].mxu0 %v2322
      %v2429 = vpop.f32.mrb[0].mxu0
      %v2430 = vadd.f32 0.0, %v2429
      %v2431 = vpop.f32.mrb[0].mxu0
      %v2432 = vpop.f32.mrb[0].mxu0
      %v2433 = vadd.f32 0.0, %v2432
      %v2434 = vpop.f32.mrb[0].mxu0
      %2435 = vmatprep.mubr.bf16.mxu0 %v2325
      %2436 = vmatmul.mubr.bf16.gmra.mrb[0].mxu0 %v2324
      %v2437 = vpop.f32.mrb[0].mxu0
      %v2438 = vadd.f32 0.0, %v2437
      %v2439 = vpop.f32.mrb[0].mxu0
      %v2440 = vpop.f32.mrb[0].mxu0
      %v2441 = vadd.f32 0.0, %v2440
      %v2442 = vpop.f32.mrb[0].mxu0
      %2443 = vmatprep.mubr.bf16.mxu0 %v2327
      %2444 = vmatmul.mubr.bf16.gmra.mrb[0].mxu0 %v2326
      %v2445 = vpop.f32.mrb[0].mxu0
      %v2446 = vadd.f32 0.0, %v2445
      %v2447 = vpop.f32.mrb[0].mxu0
      %v2448 = vpop.f32.mrb[0].mxu0
      %v2449 = vadd.f32 0.0, %v2448
      %v2450 = vpop.f32.mrb[0].mxu0
      %2451 = vmatprep.mubr.bf16.mxu0 %v2329
      %2452 = vmatmul.mubr.bf16.gmra.mrb[0].mxu0 %v2328
      %v2453 = vpop.f32.mrb[0].mxu0
      %v2454 = vadd.f32 0.0, %v2453
      %v2455 = vpop.f32.mrb[0].mxu0
      %v2456 = vpop.f32.mrb[0].mxu0
      %v2457 = vadd.f32 0.0, %v2456
      %v2458 = vpop.f32.mrb[0].mxu0
      %2459 = vdwg.mxu0
      %v2460 = vrcp.pop %v2430
      %v2461 = vrcp.pop %v2433
      %v2462 = vrcp.pop %v2438
      %v2463 = vrcp.pop %v2441
      %v2464 = vrcp.pop %v2446
      %v2465 = vrcp.pop %v2449
      %v2466 = vrcp.pop %v2454
      %v2467 = vrcp.pop %v2457
      %v2468 = vmul.f32 %v2365, %v2460
      %v2469 = vmul.f32 %v2368, %v2461
      %v2470 = vmul.f32 %v2373, %v2462
      %v2471 = vmul.f32 %v2376, %v2463
      %v2472 = vmul.f32 %v2381, %v2464
      %v2473 = vmul.f32 %v2384, %v2465
      %v2474 = vmul.f32 %v2389, %v2466
      %v2475 = vmul.f32 %v2392, %v2467
      %v2476 = vpack.c.bf16 %v2010, %v2009
      %v2477 = vpack.c.bf16 %v2012, %v2011
      %v2478 = vpack.c.bf16 %v2014, %v2013
      %v2479 = vpack.c.bf16 %v2016, %v2015
      %v2480 = vpack.c.bf16 %v2469, %v2468
      %v2481 = vpack.c.bf16 %v2471, %v2470
      %v2482 = vpack.c.bf16 %v2473, %v2472
      %v2483 = vpack.c.bf16 %v2475, %v2474
      %v2484 = vld [vmem:[%s13] sm:$0xf]
      %v2485 = vld [vmem:[%s13 + $0x4] sm:$0xf]
      %v2486 = vld [vmem:[%s13 + $0x8] sm:$0xf]
      %v2487 = vld [vmem:[%s13 + $0xc] sm:$0xf]
      %v2488 = vld [vmem:[%s14] sm:$0x1]
      %v2490 = vlaneseq
      %v2491 = vshrl.u32 %v2490, 7
      %v2492 = vsub.s32 0, %v2491
      %v2493 = vrot.slane %v2488, %v2492
      %v2499 = vunpack.c.l.b16 %v2484
      %v2500 = vunpack.c.l.b16 %v2485
      %v2501 = vunpack.c.l.b16 %v2486
      %v2502 = vunpack.c.l.b16 %v2487
      %v2503 = vpack.c.b16 %v2500, %v2499
      %v2504 = vpack.c.b16 %v2502, %v2501
      %v2508 = vsel %vm677, %v2476, 0
      %v2511 = vsel %vm677, %v2477, 0
      %v2514 = vsel %vm677, %v2478, 0
      %v2517 = vsel %vm677, %v2479, 0
      %v2520 = vsel %vm677, %v2480, 0
      %v2523 = vsel %vm677, %v2481, 0
      %v2526 = vsel %vm677, %v2482, 0
      %v2529 = vsel %vm677, %v2483, 0
      %2531 = vmatprep.subr.bf16.mxu0 0
      %2532 = vmatpush1.bf16.msra.mxu0 %v2503
      %2533 = vmatprep.subr.bf16.mxu0 0
      %2534 = vmatpush1.bf16.msra.mxu0 %v2504
      %2535 = vmatprep.subr.bf16.mxu0 0
      %2536 = vmatpush1.bf16.msra.mxu0 0
      %2537 = vmatprep.subr.bf16.mxu0 0
      %2538 = vmatpush1.bf16.msra.mxu0 0
      %2539 = vmatprep.subr.bf16.mxu0 0
      %2540 = vmatpush1.bf16.msra.mxu0 0
      %2541 = vmatprep.subr.bf16.mxu0 0
      %2542 = vmatpush1.bf16.msra.mxu0 0
      %2543 = vmatprep.subr.bf16.mxu0 0
      %2544 = vmatpush1.bf16.msra.mxu0 0
      %2545 = vmatprep.subr.bf16.mxu0 0
      %2546 = vmatpush1.bf16.msra.mxu0 0
      %2547 = vmatprep.subr.bf16.mxu0 0
      %2548 = vmatpush1.bf16.msra.mxu0 0
      %2549 = vmatprep.subr.bf16.mxu0 0
      %2550 = vmatpush1.bf16.msra.mxu0 0
      %2551 = vmatprep.subr.bf16.mxu0 0
      %2552 = vmatpush1.bf16.msra.mxu0 0
      %2553 = vmatprep.subr.bf16.mxu0 0
      %2554 = vmatpush1.bf16.msra.mxu0 0
      %2555 = vmatprep.subr.bf16.mxu0 0
      %2556 = vmatpush1.bf16.msra.mxu0 0
      %2557 = vmatprep.subr.bf16.mxu0 0
      %2558 = vmatpush1.bf16.msra.mxu0 0
      %2559 = vmatprep.subr.bf16.mxu0 0
      %2560 = vmatpush1.bf16.msra.mxu0 0
      %2561 = vmatprep.subr.bf16.mxu0 0
      %2562 = vmatpush1.bf16.msra.mxu0 0
      %2563 = vmatprep.mubr.bf16.mxu0 0
      %2564 = vmatmul.mubr.bf16.gmra.mrb[0].mxu0 %v2508
      %v2565 = vpop.f32.mrb[0].mxu0
      %v2566 = vadd.f32 %v2493, %v2565
      %v2567 = vpop.f32.mrb[0].mxu0
      %v2568 = vpop.f32.mrb[0].mxu0
      %v2569 = vadd.f32 %v2493, %v2568
      %v2570 = vpop.f32.mrb[0].mxu0
      %2571 = vmatprep.mubr.bf16.mxu0 0
      %2572 = vmatmul.mubr.bf16.gmra.mrb[0].mxu0 %v2511
      %v2573 = vpop.f32.mrb[0].mxu0
      %v2574 = vadd.f32 %v2493, %v2573
      %v2575 = vpop.f32.mrb[0].mxu0
      %v2576 = vpop.f32.mrb[0].mxu0
      %v2577 = vadd.f32 %v2493, %v2576
      %v2578 = vpop.f32.mrb[0].mxu0
      %2579 = vmatprep.mubr.bf16.mxu0 0
      %2580 = vmatmul.mubr.bf16.gmra.mrb[0].mxu0 %v2514
      %v2581 = vpop.f32.mrb[0].mxu0
      %v2582 = vadd.f32 %v2493, %v2581
      %v2583 = vpop.f32.mrb[0].mxu0
      %v2584 = vpop.f32.mrb[0].mxu0
      %v2585 = vadd.f32 %v2493, %v2584
      %v2586 = vpop.f32.mrb[0].mxu0
      %2587 = vmatprep.mubr.bf16.mxu0 0
      %2588 = vmatmul.mubr.bf16.gmra.mrb[0].mxu0 %v2517
      %v2589 = vpop.f32.mrb[0].mxu0
      %v2590 = vadd.f32 %v2493, %v2589
      %v2591 = vpop.f32.mrb[0].mxu0
      %v2592 = vpop.f32.mrb[0].mxu0
      %v2593 = vadd.f32 %v2493, %v2592
      %v2594 = vpop.f32.mrb[0].mxu0
      %2595 = vmatprep.mubr.bf16.mxu0 0
      %2596 = vmatmul.mubr.bf16.gmra.mrb[0].mxu0 %v2520
      %v2597 = vpop.f32.mrb[0].mxu0
      %v2598 = vadd.f32 %v2493, %v2597
      %v2599 = vpop.f32.mrb[0].mxu0
      %v2600 = vpop.f32.mrb[0].mxu0
      %v2601 = vadd.f32 %v2493, %v2600
      %v2602 = vpop.f32.mrb[0].mxu0
      %2603 = vmatprep.mubr.bf16.mxu0 0
      %2604 = vmatmul.mubr.bf16.gmra.mrb[0].mxu0 %v2523
      %v2605 = vpop.f32.mrb[0].mxu0
      %v2606 = vadd.f32 %v2493, %v2605
      %v2607 = vpop.f32.mrb[0].mxu0
      %v2608 = vpop.f32.mrb[0].mxu0
      %v2609 = vadd.f32 %v2493, %v2608
      %v2610 = vpop.f32.mrb[0].mxu0
      %2611 = vmatprep.mubr.bf16.mxu0 0
      %2612 = vmatmul.mubr.bf16.gmra.mrb[0].mxu0 %v2526
      %v2613 = vpop.f32.mrb[0].mxu0
      %v2614 = vadd.f32 %v2493, %v2613
      %v2615 = vpop.f32.mrb[0].mxu0
      %v2616 = vpop.f32.mrb[0].mxu0
      %v2617 = vadd.f32 %v2493, %v2616
      %v2618 = vpop.f32.mrb[0].mxu0
      %2619 = vmatprep.mubr.bf16.mxu0 0
      %2620 = vmatmul.mubr.bf16.gmra.mrb[0].mxu0 %v2529
      %v2621 = vpop.f32.mrb[0].mxu0
      %v2622 = vadd.f32 %v2493, %v2621
      %v2623 = vpop.f32.mrb[0].mxu0
      %v2624 = vpop.f32.mrb[0].mxu0
      %v2625 = vadd.f32 %v2493, %v2624
      %v2626 = vpop.f32.mrb[0].mxu0
      %2627 = vdwg.mxu0
      %v2628 = vld [vmem:[%s2] sm:$0xf]
      %v2629 = vld [vmem:[%s2 + $0x4] sm:$0xf]
      %v2630 = vld [vmem:[%s2 + $0x8] sm:$0xf]
      %v2631 = vld [vmem:[%s2 + $0xc] sm:$0xf]
      %v2632 = vld [vmem:[%s2 + $0x10] sm:$0xf]
      %v2633 = vld [vmem:[%s2 + $0x14] sm:$0xf]
      %v2634 = vld [vmem:[%s2 + $0x18] sm:$0xf]
      %v2635 = vld [vmem:[%s2 + $0x1c] sm:$0xf]
      %v2636 = vld [vmem:[%s2 + $0x20] sm:$0xf]
      %v2637 = vld [vmem:[%s2 + $0x24] sm:$0xf]
      %v2638 = vld [vmem:[%s2 + $0x28] sm:$0xf]
      %v2639 = vld [vmem:[%s2 + $0x2c] sm:$0xf]
      %v2640 = vld [vmem:[%s2 + $0x30] sm:$0xf]
      %v2641 = vld [vmem:[%s2 + $0x34] sm:$0xf]
      %v2642 = vld [vmem:[%s2 + $0x38] sm:$0xf]
      %v2643 = vld [vmem:[%s2 + $0x3c] sm:$0xf]
      %v2644 = vpack.c.bf16 %v2569, %v2566
      %v2645 = vpack.c.bf16 %v2577, %v2574
      %v2646 = vpack.c.bf16 %v2585, %v2582
      %v2647 = vpack.c.bf16 %v2593, %v2590
      %v2648 = vpack.c.bf16 %v2601, %v2598
      %v2649 = vpack.c.bf16 %v2609, %v2606
      %v2650 = vpack.c.bf16 %v2617, %v2614
      %v2651 = vpack.c.bf16 %v2625, %v2622
      %v2668 = vunpack.c.l.b16 %v2628
      %v2669 = vunpack.c.l.b16 %v2629
      %v2670 = vunpack.c.l.b16 %v2630
      %v2671 = vunpack.c.l.b16 %v2631
      %v2672 = vunpack.c.l.b16 %v2632
      %v2673 = vunpack.c.l.b16 %v2633
      %v2674 = vunpack.c.l.b16 %v2634
      %v2675 = vunpack.c.l.b16 %v2635
      %v2676 = vunpack.c.l.b16 %v2636
      %v2677 = vunpack.c.l.b16 %v2637
      %v2678 = vunpack.c.l.b16 %v2638
      %v2679 = vunpack.c.l.b16 %v2639
      %v2680 = vunpack.c.l.b16 %v2640
      %v2681 = vunpack.c.l.b16 %v2641
      %v2682 = vunpack.c.l.b16 %v2642
      %v2683 = vunpack.c.l.b16 %v2643
      %v2684 = vpack.c.b16 %v2669, %v2668
      %v2685 = vpack.c.b16 %v2671, %v2670
      %v2686 = vpack.c.b16 %v2673, %v2672
      %v2687 = vpack.c.b16 %v2675, %v2674
      %v2688 = vpack.c.b16 %v2677, %v2676
      %v2689 = vpack.c.b16 %v2679, %v2678
      %v2690 = vpack.c.b16 %v2681, %v2680
      %v2691 = vpack.c.b16 %v2683, %v2682
      %2700 = vmatprep.subr.bf16.mxu0 0
      %2701 = vmatpush1.bf16.msra.mxu0 %v2644
      %2702 = vmatprep.subr.bf16.mxu0 0
      %2703 = vmatpush1.bf16.msra.mxu0 %v2645
      %2704 = vmatprep.subr.bf16.mxu0 0
      %2705 = vmatpush1.bf16.msra.mxu0 %v2646
      %2706 = vmatprep.subr.bf16.mxu0 0
      %2707 = vmatpush1.bf16.msra.mxu0 %v2647
      %2708 = vmatprep.subr.bf16.mxu0 0
      %2709 = vmatpush1.bf16.msra.mxu0 %v2648
      %2710 = vmatprep.subr.bf16.mxu0 0
      %2711 = vmatpush1.bf16.msra.mxu0 %v2649
      %2712 = vmatprep.subr.bf16.mxu0 0
      %2713 = vmatpush1.bf16.msra.mxu0 %v2650
      %2714 = vmatprep.subr.bf16.mxu0 0
      %2715 = vmatpush1.bf16.msra.mxu0 %v2651
      %2716 = vmatprep.subr.bf16.mxu0 0
      %2717 = vmatpush1.bf16.msra.mxu0 0
      %2718 = vmatprep.subr.bf16.mxu0 0
      %2719 = vmatpush1.bf16.msra.mxu0 0
      %2720 = vmatprep.subr.bf16.mxu0 0
      %2721 = vmatpush1.bf16.msra.mxu0 0
      %2722 = vmatprep.subr.bf16.mxu0 0
      %2723 = vmatpush1.bf16.msra.mxu0 0
      %2724 = vmatprep.subr.bf16.mxu0 0
      %2725 = vmatpush1.bf16.msra.mxu0 0
      %2726 = vmatprep.subr.bf16.mxu0 0
      %2727 = vmatpush1.bf16.msra.mxu0 0
      %2728 = vmatprep.subr.bf16.mxu0 0
      %2729 = vmatpush1.bf16.msra.mxu0 0
      %2730 = vmatprep.subr.bf16.mxu0 0
      %2731 = vmatpush1.bf16.msra.mxu0 0
      %2732 = vmatprep.mubr.bf16.mxu0 0
      %2733 = vmatmul.mubr.bf16.gmra.mrb[0].mxu0 %v2684
      %v2734 = vpop.f32.mrb[0].mxu0
      %v2735 = vadd.f32 0.0, %v2734
      %v2736 = vpop.f32.mrb[0].mxu0
      %v2737 = vpop.f32.mrb[0].mxu0
      %v2738 = vadd.f32 0.0, %v2737
      %v2739 = vpop.f32.mrb[0].mxu0
      %2740 = vmatprep.mubr.bf16.mxu0 0
      %2741 = vmatmul.mubr.bf16.gmra.mrb[0].mxu0 %v2685
      %v2742 = vpop.f32.mrb[0].mxu0
      %v2743 = vadd.f32 0.0, %v2742
      %v2744 = vpop.f32.mrb[0].mxu0
      %v2745 = vpop.f32.mrb[0].mxu0
      %v2746 = vadd.f32 0.0, %v2745
      %v2747 = vpop.f32.mrb[0].mxu0
      %2748 = vmatprep.mubr.bf16.mxu0 0
      %2749 = vmatmul.mubr.bf16.gmra.mrb[0].mxu0 %v2686
      %v2750 = vpop.f32.mrb[0].mxu0
      %v2751 = vadd.f32 0.0, %v2750
      %v2752 = vpop.f32.mrb[0].mxu0
      %v2753 = vpop.f32.mrb[0].mxu0
      %v2754 = vadd.f32 0.0, %v2753
      %v2755 = vpop.f32.mrb[0].mxu0
      %2756 = vmatprep.mubr.bf16.mxu0 0
      %2757 = vmatmul.mubr.bf16.gmra.mrb[0].mxu0 %v2687
      %v2758 = vpop.f32.mrb[0].mxu0
      %v2759 = vadd.f32 0.0, %v2758
      %v2760 = vpop.f32.mrb[0].mxu0
      %v2761 = vpop.f32.mrb[0].mxu0
      %v2762 = vadd.f32 0.0, %v2761
      %v2763 = vpop.f32.mrb[0].mxu0
      %2764 = vmatprep.mubr.bf16.mxu0 0
      %2765 = vmatmul.mubr.bf16.gmra.mrb[0].mxu0 %v2688
      %v2766 = vpop.f32.mrb[0].mxu0
      %v2767 = vadd.f32 0.0, %v2766
      %v2768 = vpop.f32.mrb[0].mxu0
      %v2769 = vpop.f32.mrb[0].mxu0
      %v2770 = vadd.f32 0.0, %v2769
      %v2771 = vpop.f32.mrb[0].mxu0
      %2772 = vmatprep.mubr.bf16.mxu0 0
      %2773 = vmatmul.mubr.bf16.gmra.mrb[0].mxu0 %v2689
      %v2774 = vpop.f32.mrb[0].mxu0
      %v2775 = vadd.f32 0.0, %v2774
      %v2776 = vpop.f32.mrb[0].mxu0
      %v2777 = vpop.f32.mrb[0].mxu0
      %v2778 = vadd.f32 0.0, %v2777
      %v2779 = vpop.f32.mrb[0].mxu0
      %2780 = vmatprep.mubr.bf16.mxu0 0
      %2781 = vmatmul.mubr.bf16.gmra.mrb[0].mxu0 %v2690
      %v2782 = vpop.f32.mrb[0].mxu0
      %v2783 = vadd.f32 0.0, %v2782
      %v2784 = vpop.f32.mrb[0].mxu0
      %v2785 = vpop.f32.mrb[0].mxu0
      %v2786 = vadd.f32 0.0, %v2785
      %v2787 = vpop.f32.mrb[0].mxu0
      %2788 = vmatprep.mubr.bf16.mxu0 0
      %2789 = vmatmul.mubr.bf16.gmra.mrb[0].mxu0 %v2691
      %v2790 = vpop.f32.mrb[0].mxu0
      %v2791 = vadd.f32 0.0, %v2790
      %v2792 = vpop.f32.mrb[0].mxu0
      %v2793 = vpop.f32.mrb[0].mxu0
      %v2794 = vadd.f32 0.0, %v2793
      %v2795 = vpop.f32.mrb[0].mxu0
      %2796 = vdwg.mxu0
      %v2797 = vadd.f32 %v661, %v2735
      %v2798 = vadd.f32 %v662, %v2738
      %v2799 = vadd.f32 %v663, %v2743
      %v2800 = vadd.f32 %v664, %v2746
      %v2801 = vadd.f32 %v665, %v2751
      %v2802 = vadd.f32 %v666, %v2754
      %v2803 = vadd.f32 %v667, %v2759
      %v2804 = vadd.f32 %v668, %v2762
      %v2805 = vadd.f32 %v669, %v2767
      %v2806 = vadd.f32 %v670, %v2770
      %v2807 = vadd.f32 %v671, %v2775
      %v2808 = vadd.f32 %v672, %v2778
      %v2809 = vadd.f32 %v673, %v2783
      %v2810 = vadd.f32 %v674, %v2786
      %v2811 = vadd.f32 %v675, %v2791
      %v2812 = vadd.f32 %v676, %v2794
      %v2813 = vsel %vm677, %v2797, 0.0
      %2814 = vadd.xlane.f32.xlu0 %v2813
      %v2815 = vpop.xlane.xlu0 %2814
      %v2816 = vsel %vm677, %v2798, 0.0
      %2817 = vadd.xlane.f32.xlu0 %v2816
      %v2818 = vpop.xlane.xlu0 %2817
      %v2819 = vsel %vm677, %v2799, 0.0
      %2820 = vadd.xlane.f32.xlu0 %v2819
      %v2821 = vpop.xlane.xlu0 %2820
      %v2822 = vsel %vm677, %v2800, 0.0
      %2823 = vadd.xlane.f32.xlu0 %v2822
      %v2824 = vpop.xlane.xlu0 %2823
      %v2825 = vsel %vm677, %v2801, 0.0
      %2826 = vadd.xlane.f32.xlu0 %v2825
      %v2827 = vpop.xlane.xlu0 %2826
      %v2828 = vsel %vm677, %v2802, 0.0
      %2829 = vadd.xlane.f32.xlu0 %v2828
      %v2830 = vpop.xlane.xlu0 %2829
      %v2831 = vsel %vm677, %v2803, 0.0
      %2832 = vadd.xlane.f32.xlu0 %v2831
      %v2833 = vpop.xlane.xlu0 %2832
      %v2834 = vsel %vm677, %v2804, 0.0
      %2835 = vadd.xlane.f32.xlu0 %v2834
      %v2836 = vpop.xlane.xlu0 %2835
      %v2837 = vsel %vm677, %v2805, 0.0
      %2838 = vadd.xlane.f32.xlu0 %v2837
      %v2839 = vpop.xlane.xlu0 %2838
      %v2840 = vsel %vm677, %v2806, 0.0
      %2841 = vadd.xlane.f32.xlu0 %v2840
      %v2842 = vpop.xlane.xlu0 %2841
      %v2843 = vsel %vm677, %v2807, 0.0
      %2844 = vadd.xlane.f32.xlu0 %v2843
      %v2845 = vpop.xlane.xlu0 %2844
      %v2846 = vsel %vm677, %v2808, 0.0
      %2847 = vadd.xlane.f32.xlu0 %v2846
      %v2848 = vpop.xlane.xlu0 %2847
      %v2849 = vsel %vm677, %v2809, 0.0
      %2850 = vadd.xlane.f32.xlu0 %v2849
      %v2851 = vpop.xlane.xlu0 %2850
      %v2852 = vsel %vm677, %v2810, 0.0
      %2853 = vadd.xlane.f32.xlu0 %v2852
      %v2854 = vpop.xlane.xlu0 %2853
      %v2855 = vsel %vm677, %v2811, 0.0
      %2856 = vadd.xlane.f32.xlu0 %v2855
      %v2857 = vpop.xlane.xlu0 %2856
      %v2858 = vsel %vm677, %v2812, 0.0
      %2859 = vadd.xlane.f32.xlu0 %v2858
      %v2860 = vpop.xlane.xlu0 %2859
      %v2861 = vmul.f32 %v2815, %v726
      %v2862 = vmul.f32 %v2818, %v726
      %v2863 = vmul.f32 %v2821, %v726
      %v2864 = vmul.f32 %v2824, %v726
      %v2865 = vmul.f32 %v2827, %v726
      %v2866 = vmul.f32 %v2830, %v726
      %v2867 = vmul.f32 %v2833, %v726
      %v2868 = vmul.f32 %v2836, %v726
      %v2869 = vmul.f32 %v2839, %v726
      %v2870 = vmul.f32 %v2842, %v726
      %v2871 = vmul.f32 %v2845, %v726
      %v2872 = vmul.f32 %v2848, %v726
      %v2873 = vmul.f32 %v2851, %v726
      %v2874 = vmul.f32 %v2854, %v726
      %v2875 = vmul.f32 %v2857, %v726
      %v2876 = vmul.f32 %v2860, %v726
      %v2877 = vsub.f32 %v2797, %v2861
      %v2878 = vsub.f32 %v2798, %v2862
      %v2879 = vsub.f32 %v2799, %v2863
      %v2880 = vsub.f32 %v2800, %v2864
      %v2881 = vsub.f32 %v2801, %v2865
      %v2882 = vsub.f32 %v2802, %v2866
      %v2883 = vsub.f32 %v2803, %v2867
      %v2884 = vsub.f32 %v2804, %v2868
      %v2885 = vsub.f32 %v2805, %v2869
      %v2886 = vsub.f32 %v2806, %v2870
      %v2887 = vsub.f32 %v2807, %v2871
      %v2888 = vsub.f32 %v2808, %v2872
      %v2889 = vsub.f32 %v2809, %v2873
      %v2890 = vsub.f32 %v2810, %v2874
      %v2891 = vsub.f32 %v2811, %v2875
      %v2892 = vsub.f32 %v2812, %v2876
      %v2893 = vmul.f32 %v2877, %v2877
      %v2894 = vmul.f32 %v2878, %v2878
      %v2895 = vmul.f32 %v2879, %v2879
      %v2896 = vmul.f32 %v2880, %v2880
      %v2897 = vmul.f32 %v2881, %v2881
      %v2898 = vmul.f32 %v2882, %v2882
      %v2899 = vmul.f32 %v2883, %v2883
      %v2900 = vmul.f32 %v2884, %v2884
      %v2901 = vmul.f32 %v2885, %v2885
      %v2902 = vmul.f32 %v2886, %v2886
      %v2903 = vmul.f32 %v2887, %v2887
      %v2904 = vmul.f32 %v2888, %v2888
      %v2905 = vmul.f32 %v2889, %v2889
      %v2906 = vmul.f32 %v2890, %v2890
      %v2907 = vmul.f32 %v2891, %v2891
      %v2908 = vmul.f32 %v2892, %v2892
      %v2909 = vsel %vm677, %v2893, 0.0
      %2910 = vadd.xlane.f32.xlu0 %v2909
      %v2911 = vpop.xlane.xlu0 %2910
      %v2912 = vsel %vm677, %v2894, 0.0
      %2913 = vadd.xlane.f32.xlu0 %v2912
      %v2914 = vpop.xlane.xlu0 %2913
      %v2915 = vsel %vm677, %v2895, 0.0
      %2916 = vadd.xlane.f32.xlu0 %v2915
      %v2917 = vpop.xlane.xlu0 %2916
      %v2918 = vsel %vm677, %v2896, 0.0
      %2919 = vadd.xlane.f32.xlu0 %v2918
      %v2920 = vpop.xlane.xlu0 %2919
      %v2921 = vsel %vm677, %v2897, 0.0
      %2922 = vadd.xlane.f32.xlu0 %v2921
      %v2923 = vpop.xlane.xlu0 %2922
      %v2924 = vsel %vm677, %v2898, 0.0
      %2925 = vadd.xlane.f32.xlu0 %v2924
      %v2926 = vpop.xlane.xlu0 %2925
      %v2927 = vsel %vm677, %v2899, 0.0
      %2928 = vadd.xlane.f32.xlu0 %v2927
      %v2929 = vpop.xlane.xlu0 %2928
      %v2930 = vsel %vm677, %v2900, 0.0
      %2931 = vadd.xlane.f32.xlu0 %v2930
      %v2932 = vpop.xlane.xlu0 %2931
      %v2933 = vsel %vm677, %v2901, 0.0
      %2934 = vadd.xlane.f32.xlu0 %v2933
      %v2935 = vpop.xlane.xlu0 %2934
      %v2936 = vsel %vm677, %v2902, 0.0
      %2937 = vadd.xlane.f32.xlu0 %v2936
      %v2938 = vpop.xlane.xlu0 %2937
      %v2939 = vsel %vm677, %v2903, 0.0
      %2940 = vadd.xlane.f32.xlu0 %v2939
      %v2941 = vpop.xlane.xlu0 %2940
      %v2942 = vsel %vm677, %v2904, 0.0
      %2943 = vadd.xlane.f32.xlu0 %v2942
      %v2944 = vpop.xlane.xlu0 %2943
      %v2945 = vsel %vm677, %v2905, 0.0
      %2946 = vadd.xlane.f32.xlu0 %v2945
      %v2947 = vpop.xlane.xlu0 %2946
      %v2948 = vsel %vm677, %v2906, 0.0
      %2949 = vadd.xlane.f32.xlu0 %v2948
      %v2950 = vpop.xlane.xlu0 %2949
      %v2951 = vsel %vm677, %v2907, 0.0
      %2952 = vadd.xlane.f32.xlu0 %v2951
      %v2953 = vpop.xlane.xlu0 %2952
      %v2954 = vsel %vm677, %v2908, 0.0
      %2955 = vadd.xlane.f32.xlu0 %v2954
      %v2956 = vpop.xlane.xlu0 %2955
      %v2957 = vmul.f32 %v2911, %v726
      %v2958 = vmul.f32 %v2914, %v726
      %v2959 = vmul.f32 %v2917, %v726
      %v2960 = vmul.f32 %v2920, %v726
      %v2961 = vmul.f32 %v2923, %v726
      %v2962 = vmul.f32 %v2926, %v726
      %v2963 = vmul.f32 %v2929, %v726
      %v2964 = vmul.f32 %v2932, %v726
      %v2965 = vmul.f32 %v2935, %v726
      %v2966 = vmul.f32 %v2938, %v726
      %v2967 = vmul.f32 %v2941, %v726
      %v2968 = vmul.f32 %v2944, %v726
      %v2969 = vmul.f32 %v2947, %v726
      %v2970 = vmul.f32 %v2950, %v726
      %v2971 = vmul.f32 %v2953, %v726
      %v2972 = vmul.f32 %v2956, %v726
      %v2973 = vadd.f32 %v2957, 1e-05
      %v2974 = vadd.f32 %v2958, 1e-05
      %v2975 = vadd.f32 %v2959, 1e-05
      %v2976 = vadd.f32 %v2960, 1e-05
      %v2977 = vadd.f32 %v2961, 1e-05
      %v2978 = vadd.f32 %v2962, 1e-05
      %v2979 = vadd.f32 %v2963, 1e-05
      %v2980 = vadd.f32 %v2964, 1e-05
      %v2981 = vadd.f32 %v2965, 1e-05
      %v2982 = vadd.f32 %v2966, 1e-05
      %v2983 = vadd.f32 %v2967, 1e-05
      %v2984 = vadd.f32 %v2968, 1e-05
      %v2985 = vadd.f32 %v2969, 1e-05
      %v2986 = vadd.f32 %v2970, 1e-05
      %v2987 = vadd.f32 %v2971, 1e-05
      %v2988 = vadd.f32 %v2972, 1e-05
      %v2989 = vrsqrt.pop %v2973
      %v2990 = vrsqrt.pop %v2974
      %v2991 = vrsqrt.pop %v2975
      %v2992 = vrsqrt.pop %v2976
      %v2993 = vrsqrt.pop %v2977
      %v2994 = vrsqrt.pop %v2978
      %v2995 = vrsqrt.pop %v2979
      %v2996 = vrsqrt.pop %v2980
      %v2997 = vrsqrt.pop %v2981
      %v2998 = vrsqrt.pop %v2982
      %v2999 = vrsqrt.pop %v2983
      %v3000 = vrsqrt.pop %v2984
      %v3001 = vrsqrt.pop %v2985
      %v3002 = vrsqrt.pop %v2986
      %v3003 = vrsqrt.pop %v2987
      %v3004 = vrsqrt.pop %v2988
      %v3005 = vmul.f32 %v2877, %v2989
      %v3006 = vmul.f32 %v2878, %v2990
      %v3007 = vmul.f32 %v2879, %v2991
      %v3008 = vmul.f32 %v2880, %v2992
      %v3009 = vmul.f32 %v2881, %v2993
      %v3010 = vmul.f32 %v2882, %v2994
      %v3011 = vmul.f32 %v2883, %v2995
      %v3012 = vmul.f32 %v2884, %v2996
      %v3013 = vmul.f32 %v2885, %v2997
      %v3014 = vmul.f32 %v2886, %v2998
      %v3015 = vmul.f32 %v2887, %v2999
      %v3016 = vmul.f32 %v2888, %v3000
      %v3017 = vmul.f32 %v2889, %v3001
      %v3018 = vmul.f32 %v2890, %v3002
      %v3019 = vmul.f32 %v2891, %v3003
      %v3020 = vmul.f32 %v2892, %v3004
      %v3021 = vld [vmem:[%s15] sm:$0x1]
      %v3023 = vlaneseq
      %v3024 = vshrl.u32 %v3023, 7
      %v3025 = vsub.s32 0, %v3024
      %v3026 = vrot.slane %v3021, %v3025
      %v3028 = vmul.f32 %v3005, %v3026
      %v3029 = vmul.f32 %v3006, %v3026
      %v3030 = vmul.f32 %v3007, %v3026
      %v3031 = vmul.f32 %v3008, %v3026
      %v3032 = vmul.f32 %v3009, %v3026
      %v3033 = vmul.f32 %v3010, %v3026
      %v3034 = vmul.f32 %v3011, %v3026
      %v3035 = vmul.f32 %v3012, %v3026
      %v3036 = vmul.f32 %v3013, %v3026
      %v3037 = vmul.f32 %v3014, %v3026
      %v3038 = vmul.f32 %v3015, %v3026
      %v3039 = vmul.f32 %v3016, %v3026
      %v3040 = vmul.f32 %v3017, %v3026
      %v3041 = vmul.f32 %v3018, %v3026
      %v3042 = vmul.f32 %v3019, %v3026
      %v3043 = vmul.f32 %v3020, %v3026
      %v3044 = vld [vmem:[%s16] sm:$0x1]
      %v3046 = vlaneseq
      %v3047 = vshrl.u32 %v3046, 7
      %v3048 = vsub.s32 0, %v3047
      %v3049 = vrot.slane %v3044, %v3048
      %v3051 = vadd.f32 %v3028, %v3049
      %v3052 = vadd.f32 %v3029, %v3049
      %v3053 = vadd.f32 %v3030, %v3049
      %v3054 = vadd.f32 %v3031, %v3049
      %v3055 = vadd.f32 %v3032, %v3049
      %v3056 = vadd.f32 %v3033, %v3049
      %v3057 = vadd.f32 %v3034, %v3049
      %v3058 = vadd.f32 %v3035, %v3049
      %v3059 = vadd.f32 %v3036, %v3049
      %v3060 = vadd.f32 %v3037, %v3049
      %v3061 = vadd.f32 %v3038, %v3049
      %v3062 = vadd.f32 %v3039, %v3049
      %v3063 = vadd.f32 %v3040, %v3049
      %v3064 = vadd.f32 %v3041, %v3049
      %v3065 = vadd.f32 %v3042, %v3049
      %v3066 = vadd.f32 %v3043, %v3049
      %v3067 = vpack.c.bf16 %v3052, %v3051
      %v3068 = vpack.c.bf16 %v3054, %v3053
      %v3069 = vpack.c.bf16 %v3056, %v3055
      %v3070 = vpack.c.bf16 %v3058, %v3057
      %v3071 = vpack.c.bf16 %v3060, %v3059
      %v3072 = vpack.c.bf16 %v3062, %v3061
      %v3073 = vpack.c.bf16 %v3064, %v3063
      %v3074 = vpack.c.bf16 %v3066, %v3065
      %v3075 = vld [vmem:[%s17] sm:$0xf]
      %v3076 = vld [vmem:[%s17 + $0x4] sm:$0xf]
      %v3077 = vld [vmem:[%s17 + $0x8] sm:$0xf]
      %v3078 = vld [vmem:[%s17 + $0xc] sm:$0xf]
      %v3079 = vld [vmem:[%s18] sm:$0x1]
      %v3081 = vlaneseq
      %v3082 = vshrl.u32 %v3081, 7
      %v3083 = vsub.s32 0, %v3082
      %v3084 = vrot.slane %v3079, %v3083
      %v3090 = vunpack.c.l.b16 %v3075
      %v3091 = vunpack.c.l.b16 %v3076
      %v3092 = vunpack.c.l.b16 %v3077
      %v3093 = vunpack.c.l.b16 %v3078
      %v3094 = vpack.c.b16 %v3091, %v3090
      %v3095 = vpack.c.b16 %v3093, %v3092
      %v3099 = vsel %vm677, %v3067, 0
      %v3102 = vsel %vm677, %v3068, 0
      %v3105 = vsel %vm677, %v3069, 0
      %v3108 = vsel %vm677, %v3070, 0
      %v3111 = vsel %vm677, %v3071, 0
      %v3114 = vsel %vm677, %v3072, 0
      %v3117 = vsel %vm677, %v3073, 0
      %v3120 = vsel %vm677, %v3074, 0
      %3122 = vmatprep.subr.bf16.mxu0 0
      %3123 = vmatpush1.bf16.msra.mxu0 %v3094
      %3124 = vmatprep.subr.bf16.mxu0 0
      %3125 = vmatpush1.bf16.msra.mxu0 %v3095
      %3126 = vmatprep.subr.bf16.mxu0 0
      %3127 = vmatpush1.bf16.msra.mxu0 0
      %3128 = vmatprep.subr.bf16.mxu0 0
      %3129 = vmatpush1.bf16.msra.mxu0 0
      %3130 = vmatprep.subr.bf16.mxu0 0
      %3131 = vmatpush1.bf16.msra.mxu0 0
      %3132 = vmatprep.subr.bf16.mxu0 0
      %3133 = vmatpush1.bf16.msra.mxu0 0
      %3134 = vmatprep.subr.bf16.mxu0 0
      %3135 = vmatpush1.bf16.msra.mxu0 0
      %3136 = vmatprep.subr.bf16.mxu0 0
      %3137 = vmatpush1.bf16.msra.mxu0 0
      %3138 = vmatprep.subr.bf16.mxu0 0
      %3139 = vmatpush1.bf16.msra.mxu0 0
      %3140 = vmatprep.subr.bf16.mxu0 0
      %3141 = vmatpush1.bf16.msra.mxu0 0
      %3142 = vmatprep.subr.bf16.mxu0 0
      %3143 = vmatpush1.bf16.msra.mxu0 0
      %3144 = vmatprep.subr.bf16.mxu0 0
      %3145 = vmatpush1.bf16.msra.mxu0 0
      %3146 = vmatprep.subr.bf16.mxu0 0
      %3147 = vmatpush1.bf16.msra.mxu0 0
      %3148 = vmatprep.subr.bf16.mxu0 0
      %3149 = vmatpush1.bf16.msra.mxu0 0
      %3150 = vmatprep.subr.bf16.mxu0 0
      %3151 = vmatpush1.bf16.msra.mxu0 0
      %3152 = vmatprep.subr.bf16.mxu0 0
      %3153 = vmatpush1.bf16.msra.mxu0 0
      %3154 = vmatprep.mubr.bf16.mxu0 0
      %3155 = vmatmul.mubr.bf16.gmra.mrb[0].mxu0 %v3099
      %v3156 = vpop.f32.mrb[0].mxu0
      %v3157 = vadd.f32 %v3084, %v3156
      %v3158 = vpop.f32.mrb[0].mxu0
      %v3159 = vpop.f32.mrb[0].mxu0
      %v3160 = vadd.f32 %v3084, %v3159
      %v3161 = vpop.f32.mrb[0].mxu0
      %3162 = vmatprep.mubr.bf16.mxu0 0
      %3163 = vmatmul.mubr.bf16.gmra.mrb[0].mxu0 %v3102
      %v3164 = vpop.f32.mrb[0].mxu0
      %v3165 = vadd.f32 %v3084, %v3164
      %v3166 = vpop.f32.mrb[0].mxu0
      %v3167 = vpop.f32.mrb[0].mxu0
      %v3168 = vadd.f32 %v3084, %v3167
      %v3169 = vpop.f32.mrb[0].mxu0
      %3170 = vmatprep.mubr.bf16.mxu0 0
      %3171 = vmatmul.mubr.bf16.gmra.mrb[0].mxu0 %v3105
      %v3172 = vpop.f32.mrb[0].mxu0
      %v3173 = vadd.f32 %v3084, %v3172
      %v3174 = vpop.f32.mrb[0].mxu0
      %v3175 = vpop.f32.mrb[0].mxu0
      %v3176 = vadd.f32 %v3084, %v3175
      %v3177 = vpop.f32.mrb[0].mxu0
      %3178 = vmatprep.mubr.bf16.mxu0 0
      %3179 = vmatmul.mubr.bf16.gmra.mrb[0].mxu0 %v3108
      %v3180 = vpop.f32.mrb[0].mxu0
      %v3181 = vadd.f32 %v3084, %v3180
      %v3182 = vpop.f32.mrb[0].mxu0
      %v3183 = vpop.f32.mrb[0].mxu0
      %v3184 = vadd.f32 %v3084, %v3183
      %v3185 = vpop.f32.mrb[0].mxu0
      %3186 = vmatprep.mubr.bf16.mxu0 0
      %3187 = vmatmul.mubr.bf16.gmra.mrb[0].mxu0 %v3111
      %v3188 = vpop.f32.mrb[0].mxu0
      %v3189 = vadd.f32 %v3084, %v3188
      %v3190 = vpop.f32.mrb[0].mxu0
      %v3191 = vpop.f32.mrb[0].mxu0
      %v3192 = vadd.f32 %v3084, %v3191
      %v3193 = vpop.f32.mrb[0].mxu0
      %3194 = vmatprep.mubr.bf16.mxu0 0
      %3195 = vmatmul.mubr.bf16.gmra.mrb[0].mxu0 %v3114
      %v3196 = vpop.f32.mrb[0].mxu0
      %v3197 = vadd.f32 %v3084, %v3196
      %v3198 = vpop.f32.mrb[0].mxu0
      %v3199 = vpop.f32.mrb[0].mxu0
      %v3200 = vadd.f32 %v3084, %v3199
      %v3201 = vpop.f32.mrb[0].mxu0
      %3202 = vmatprep.mubr.bf16.mxu0 0
      %3203 = vmatmul.mubr.bf16.gmra.mrb[0].mxu0 %v3117
      %v3204 = vpop.f32.mrb[0].mxu0
      %v3205 = vadd.f32 %v3084, %v3204
      %v3206 = vpop.f32.mrb[0].mxu0
      %v3207 = vpop.f32.mrb[0].mxu0
      %v3208 = vadd.f32 %v3084, %v3207
      %v3209 = vpop.f32.mrb[0].mxu0
      %3210 = vmatprep.mubr.bf16.mxu0 0
      %3211 = vmatmul.mubr.bf16.gmra.mrb[0].mxu0 %v3120
      %v3212 = vpop.f32.mrb[0].mxu0
      %v3213 = vadd.f32 %v3084, %v3212
      %v3214 = vpop.f32.mrb[0].mxu0
      %v3215 = vpop.f32.mrb[0].mxu0
      %v3216 = vadd.f32 %v3084, %v3215
      %v3217 = vpop.f32.mrb[0].mxu0
      %3218 = vdwg.mxu0
      %v3219 = vmul.f32 %v3157, 0.70710677
      %v3220 = vmul.f32 %v3160, 0.70710677
      %v3221 = vmul.f32 %v3165, 0.70710677
      %v3222 = vmul.f32 %v3168, 0.70710677
      %v3223 = vmul.f32 %v3173, 0.70710677
      %v3224 = vmul.f32 %v3176, 0.70710677
      %v3225 = vmul.f32 %v3181, 0.70710677
      %v3226 = vmul.f32 %v3184, 0.70710677
      %v3227 = vmul.f32 %v3189, 0.70710677
      %v3228 = vmul.f32 %v3192, 0.70710677
      %v3229 = vmul.f32 %v3197, 0.70710677
      %v3230 = vmul.f32 %v3200, 0.70710677
      %v3231 = vmul.f32 %v3205, 0.70710677
      %v3232 = vmul.f32 %v3208, 0.70710677
      %v3233 = vmul.f32 %v3213, 0.70710677
      %v3234 = vmul.f32 %v3216, 0.70710677
      %v3235 = vand.u32 2147483647, %v3219
      %v3236 = vand.u32 2147483647, %v3220
      %v3237 = vand.u32 2147483647, %v3221
      %v3238 = vand.u32 2147483647, %v3222
      %v3239 = vand.u32 2147483647, %v3223
      %v3240 = vand.u32 2147483647, %v3224
      %v3241 = vand.u32 2147483647, %v3225
      %v3242 = vand.u32 2147483647, %v3226
      %v3243 = vand.u32 2147483647, %v3227
      %v3244 = vand.u32 2147483647, %v3228
      %v3245 = vand.u32 2147483647, %v3229
      %v3246 = vand.u32 2147483647, %v3230
      %v3247 = vand.u32 2147483647, %v3231
      %v3248 = vand.u32 2147483647, %v3232
      %v3249 = vand.u32 2147483647, %v3233
      %v3250 = vand.u32 2147483647, %v3234
      %v3251 = vmul.f32 %v3235, 0.3275911
      %v3252 = vmul.f32 %v3236, 0.3275911
      %v3253 = vmul.f32 %v3237, 0.3275911
      %v3254 = vmul.f32 %v3238, 0.3275911
      %v3255 = vmul.f32 %v3239, 0.3275911
      %v3256 = vmul.f32 %v3240, 0.3275911
      %v3257 = vmul.f32 %v3241, 0.3275911
      %v3258 = vmul.f32 %v3242, 0.3275911
      %v3259 = vmul.f32 %v3243, 0.3275911
      %v3260 = vmul.f32 %v3244, 0.3275911
      %v3261 = vmul.f32 %v3245, 0.3275911
      %v3262 = vmul.f32 %v3246, 0.3275911
      %v3263 = vmul.f32 %v3247, 0.3275911
      %v3264 = vmul.f32 %v3248, 0.3275911
      %v3265 = vmul.f32 %v3249, 0.3275911
      %v3266 = vmul.f32 %v3250, 0.3275911
      %v3267 = vadd.f32 %v3251, 1.0
      %v3268 = vadd.f32 %v3252, 1.0
      %v3269 = vadd.f32 %v3253, 1.0
      %v3270 = vadd.f32 %v3254, 1.0
      %v3271 = vadd.f32 %v3255, 1.0
      %v3272 = vadd.f32 %v3256, 1.0
      %v3273 = vadd.f32 %v3257, 1.0
      %v3274 = vadd.f32 %v3258, 1.0
      %v3275 = vadd.f32 %v3259, 1.0
      %v3276 = vadd.f32 %v3260, 1.0
      %v3277 = vadd.f32 %v3261, 1.0
      %v3278 = vadd.f32 %v3262, 1.0
      %v3279 = vadd.f32 %v3263, 1.0
      %v3280 = vadd.f32 %v3264, 1.0
      %v3281 = vadd.f32 %v3265, 1.0
      %v3282 = vadd.f32 %v3266, 1.0
      %v3283 = vrcp.pop %v3267
      %v3284 = vmul.f32 1.0, %v3283
      %v3285 = vrcp.pop %v3268
      %v3286 = vmul.f32 1.0, %v3285
      %v3287 = vrcp.pop %v3269
      %v3288 = vmul.f32 1.0, %v3287
      %v3289 = vrcp.pop %v3270
      %v3290 = vmul.f32 1.0, %v3289
      %v3291 = vrcp.pop %v3271
      %v3292 = vmul.f32 1.0, %v3291
      %v3293 = vrcp.pop %v3272
      %v3294 = vmul.f32 1.0, %v3293
      %v3295 = vrcp.pop %v3273
      %v3296 = vmul.f32 1.0, %v3295
      %v3297 = vrcp.pop %v3274
      %v3298 = vmul.f32 1.0, %v3297
      %v3299 = vrcp.pop %v3275
      %v3300 = vmul.f32 1.0, %v3299
      %v3301 = vrcp.pop %v3276
      %v3302 = vmul.f32 1.0, %v3301
      %v3303 = vrcp.pop %v3277
      %v3304 = vmul.f32 1.0, %v3303
      %v3305 = vrcp.pop %v3278
      %v3306 = vmul.f32 1.0, %v3305
      %v3307 = vrcp.pop %v3279
      %v3308 = vmul.f32 1.0, %v3307
      %v3309 = vrcp.pop %v3280
      %v3310 = vmul.f32 1.0, %v3309
      %v3311 = vrcp.pop %v3281
      %v3312 = vmul.f32 1.0, %v3311
      %v3313 = vrcp.pop %v3282
      %v3314 = vmul.f32 1.0, %v3313
      %v3315 = vmul.f32 %v3284, 1.0614054
      %v3316 = vmul.f32 %v3286, 1.0614054
      %v3317 = vmul.f32 %v3288, 1.0614054
      %v3318 = vmul.f32 %v3290, 1.0614054
      %v3319 = vmul.f32 %v3292, 1.0614054
      %v3320 = vmul.f32 %v3294, 1.0614054
      %v3321 = vmul.f32 %v3296, 1.0614054
      %v3322 = vmul.f32 %v3298, 1.0614054
      %v3323 = vmul.f32 %v3300, 1.0614054
      %v3324 = vmul.f32 %v3302, 1.0614054
      %v3325 = vmul.f32 %v3304, 1.0614054
      %v3326 = vmul.f32 %v3306, 1.0614054
      %v3327 = vmul.f32 %v3308, 1.0614054
      %v3328 = vmul.f32 %v3310, 1.0614054
      %v3329 = vmul.f32 %v3312, 1.0614054
      %v3330 = vmul.f32 %v3314, 1.0614054
      %v3331 = vadd.f32 %v3315, -1.4531521
      %v3332 = vadd.f32 %v3316, -1.4531521
      %v3333 = vadd.f32 %v3317, -1.4531521
      %v3334 = vadd.f32 %v3318, -1.4531521
      %v3335 = vadd.f32 %v3319, -1.4531521
      %v3336 = vadd.f32 %v3320, -1.4531521
      %v3337 = vadd.f32 %v3321, -1.4531521
      %v3338 = vadd.f32 %v3322, -1.4531521
      %v3339 = vadd.f32 %v3323, -1.4531521
      %v3340 = vadd.f32 %v3324, -1.4531521
      %v3341 = vadd.f32 %v3325, -1.4531521
      %v3342 = vadd.f32 %v3326, -1.4531521
      %v3343 = vadd.f32 %v3327, -1.4531521
      %v3344 = vadd.f32 %v3328, -1.4531521
      %v3345 = vadd.f32 %v3329, -1.4531521
      %v3346 = vadd.f32 %v3330, -1.4531521
      %v3347 = vmul.f32 %v3331, %v3284
      %v3348 = vmul.f32 %v3332, %v3286
      %v3349 = vmul.f32 %v3333, %v3288
      %v3350 = vmul.f32 %v3334, %v3290
      %v3351 = vmul.f32 %v3335, %v3292
      %v3352 = vmul.f32 %v3336, %v3294
      %v3353 = vmul.f32 %v3337, %v3296
      %v3354 = vmul.f32 %v3338, %v3298
      %v3355 = vmul.f32 %v3339, %v3300
      %v3356 = vmul.f32 %v3340, %v3302
      %v3357 = vmul.f32 %v3341, %v3304
      %v3358 = vmul.f32 %v3342, %v3306
      %v3359 = vmul.f32 %v3343, %v3308
      %v3360 = vmul.f32 %v3344, %v3310
      %v3361 = vmul.f32 %v3345, %v3312
      %v3362 = vmul.f32 %v3346, %v3314
      %v3363 = vadd.f32 %v3347, 1.4214138
      %v3364 = vadd.f32 %v3348, 1.4214138
      %v3365 = vadd.f32 %v3349, 1.4214138
      %v3366 = vadd.f32 %v3350, 1.4214138
      %v3367 = vadd.f32 %v3351, 1.4214138
      %v3368 = vadd.f32 %v3352, 1.4214138
      %v3369 = vadd.f32 %v3353, 1.4214138
      %v3370 = vadd.f32 %v3354, 1.4214138
      %v3371 = vadd.f32 %v3355, 1.4214138
      %v3372 = vadd.f32 %v3356, 1.4214138
      %v3373 = vadd.f32 %v3357, 1.4214138
      %v3374 = vadd.f32 %v3358, 1.4214138
      %v3375 = vadd.f32 %v3359, 1.4214138
      %v3376 = vadd.f32 %v3360, 1.4214138
      %v3377 = vadd.f32 %v3361, 1.4214138
      %v3378 = vadd.f32 %v3362, 1.4214138
      %v3379 = vmul.f32 %v3363, %v3284
      %v3380 = vmul.f32 %v3364, %v3286
      %v3381 = vmul.f32 %v3365, %v3288
      %v3382 = vmul.f32 %v3366, %v3290
      %v3383 = vmul.f32 %v3367, %v3292
      %v3384 = vmul.f32 %v3368, %v3294
      %v3385 = vmul.f32 %v3369, %v3296
      %v3386 = vmul.f32 %v3370, %v3298
      %v3387 = vmul.f32 %v3371, %v3300
      %v3388 = vmul.f32 %v3372, %v3302
      %v3389 = vmul.f32 %v3373, %v3304
      %v3390 = vmul.f32 %v3374, %v3306
      %v3391 = vmul.f32 %v3375, %v3308
      %v3392 = vmul.f32 %v3376, %v3310
      %v3393 = vmul.f32 %v3377, %v3312
      %v3394 = vmul.f32 %v3378, %v3314
      %v3395 = vadd.f32 %v3379, -0.28449672
      %v3396 = vadd.f32 %v3380, -0.28449672
      %v3397 = vadd.f32 %v3381, -0.28449672
      %v3398 = vadd.f32 %v3382, -0.28449672
      %v3399 = vadd.f32 %v3383, -0.28449672
      %v3400 = vadd.f32 %v3384, -0.28449672
      %v3401 = vadd.f32 %v3385, -0.28449672
      %v3402 = vadd.f32 %v3386, -0.28449672
      %v3403 = vadd.f32 %v3387, -0.28449672
      %v3404 = vadd.f32 %v3388, -0.28449672
      %v3405 = vadd.f32 %v3389, -0.28449672
      %v3406 = vadd.f32 %v3390, -0.28449672
      %v3407 = vadd.f32 %v3391, -0.28449672
      %v3408 = vadd.f32 %v3392, -0.28449672
      %v3409 = vadd.f32 %v3393, -0.28449672
      %v3410 = vadd.f32 %v3394, -0.28449672
      %v3411 = vmul.f32 %v3395, %v3284
      %v3412 = vmul.f32 %v3396, %v3286
      %v3413 = vmul.f32 %v3397, %v3288
      %v3414 = vmul.f32 %v3398, %v3290
      %v3415 = vmul.f32 %v3399, %v3292
      %v3416 = vmul.f32 %v3400, %v3294
      %v3417 = vmul.f32 %v3401, %v3296
      %v3418 = vmul.f32 %v3402, %v3298
      %v3419 = vmul.f32 %v3403, %v3300
      %v3420 = vmul.f32 %v3404, %v3302
      %v3421 = vmul.f32 %v3405, %v3304
      %v3422 = vmul.f32 %v3406, %v3306
      %v3423 = vmul.f32 %v3407, %v3308
      %v3424 = vmul.f32 %v3408, %v3310
      %v3425 = vmul.f32 %v3409, %v3312
      %v3426 = vmul.f32 %v3410, %v3314
      %v3427 = vadd.f32 %v3411, 0.2548296
      %v3428 = vadd.f32 %v3412, 0.2548296
      %v3429 = vadd.f32 %v3413, 0.2548296
      %v3430 = vadd.f32 %v3414, 0.2548296
      %v3431 = vadd.f32 %v3415, 0.2548296
      %v3432 = vadd.f32 %v3416, 0.2548296
      %v3433 = vadd.f32 %v3417, 0.2548296
      %v3434 = vadd.f32 %v3418, 0.2548296
      %v3435 = vadd.f32 %v3419, 0.2548296
      %v3436 = vadd.f32 %v3420, 0.2548296
      %v3437 = vadd.f32 %v3421, 0.2548296
      %v3438 = vadd.f32 %v3422, 0.2548296
      %v3439 = vadd.f32 %v3423, 0.2548296
      %v3440 = vadd.f32 %v3424, 0.2548296
      %v3441 = vadd.f32 %v3425, 0.2548296
      %v3442 = vadd.f32 %v3426, 0.2548296
      %v3443 = vmul.f32 %v3427, %v3284
      %v3444 = vmul.f32 %v3428, %v3286
      %v3445 = vmul.f32 %v3429, %v3288
      %v3446 = vmul.f32 %v3430, %v3290
      %v3447 = vmul.f32 %v3431, %v3292
      %v3448 = vmul.f32 %v3432, %v3294
      %v3449 = vmul.f32 %v3433, %v3296
      %v3450 = vmul.f32 %v3434, %v3298
      %v3451 = vmul.f32 %v3435, %v3300
      %v3452 = vmul.f32 %v3436, %v3302
      %v3453 = vmul.f32 %v3437, %v3304
      %v3454 = vmul.f32 %v3438, %v3306
      %v3455 = vmul.f32 %v3439, %v3308
      %v3456 = vmul.f32 %v3440, %v3310
      %v3457 = vmul.f32 %v3441, %v3312
      %v3458 = vmul.f32 %v3442, %v3314
      %v3459 = vsub.f32 0.0, %v3235
      %v3460 = vsub.f32 0.0, %v3236
      %v3461 = vsub.f32 0.0, %v3237
      %v3462 = vsub.f32 0.0, %v3238
      %v3463 = vsub.f32 0.0, %v3239
      %v3464 = vsub.f32 0.0, %v3240
      %v3465 = vsub.f32 0.0, %v3241
      %v3466 = vsub.f32 0.0, %v3242
      %v3467 = vsub.f32 0.0, %v3243
      %v3468 = vsub.f32 0.0, %v3244
      %v3469 = vsub.f32 0.0, %v3245
      %v3470 = vsub.f32 0.0, %v3246
      %v3471 = vsub.f32 0.0, %v3247
      %v3472 = vsub.f32 0.0, %v3248
      %v3473 = vsub.f32 0.0, %v3249
      %v3474 = vsub.f32 0.0, %v3250
      %v3475 = vmul.f32 %v3459, %v3235
      %v3476 = vmul.f32 %v3460, %v3236
      %v3477 = vmul.f32 %v3461, %v3237
      %v3478 = vmul.f32 %v3462, %v3238
      %v3479 = vmul.f32 %v3463, %v3239
      %v3480 = vmul.f32 %v3464, %v3240
      %v3481 = vmul.f32 %v3465, %v3241
      %v3482 = vmul.f32 %v3466, %v3242
      %v3483 = vmul.f32 %v3467, %v3243
      %v3484 = vmul.f32 %v3468, %v3244
      %v3485 = vmul.f32 %v3469, %v3245
      %v3486 = vmul.f32 %v3470, %v3246
      %v3487 = vmul.f32 %v3471, %v3247
      %v3488 = vmul.f32 %v3472, %v3248
      %v3489 = vmul.f32 %v3473, %v3249
      %v3490 = vmul.f32 %v3474, %v3250
      %v3491 = vmul.f32 %v3475, 1.442695
      %v3492 = vpow.pop %v3491
      %v3493 = vmul.f32 %v3476, 1.442695
      %v3494 = vpow.pop %v3493
      %v3495 = vmul.f32 %v3477, 1.442695
      %v3496 = vpow.pop %v3495
      %v3497 = vmul.f32 %v3478, 1.442695
      %v3498 = vpow.pop %v3497
      %v3499 = vmul.f32 %v3479, 1.442695
      %v3500 = vpow.pop %v3499
      %v3501 = vmul.f32 %v3480, 1.442695
      %v3502 = vpow.pop %v3501
      %v3503 = vmul.f32 %v3481, 1.442695
      %v3504 = vpow.pop %v3503
      %v3505 = vmul.f32 %v3482, 1.442695
      %v3506 = vpow.pop %v3505
      %v3507 = vmul.f32 %v3483, 1.442695
      %v3508 = vpow.pop %v3507
      %v3509 = vmul.f32 %v3484, 1.442695
      %v3510 = vpow.pop %v3509
      %v3511 = vmul.f32 %v3485, 1.442695
      %v3512 = vpow.pop %v3511
      %v3513 = vmul.f32 %v3486, 1.442695
      %v3514 = vpow.pop %v3513
      %v3515 = vmul.f32 %v3487, 1.442695
      %v3516 = vpow.pop %v3515
      %v3517 = vmul.f32 %v3488, 1.442695
      %v3518 = vpow.pop %v3517
      %v3519 = vmul.f32 %v3489, 1.442695
      %v3520 = vpow.pop %v3519
      %v3521 = vmul.f32 %v3490, 1.442695
      %v3522 = vpow.pop %v3521
      %v3523 = vmul.f32 %v3443, %v3492
      %v3524 = vmul.f32 %v3444, %v3494
      %v3525 = vmul.f32 %v3445, %v3496
      %v3526 = vmul.f32 %v3446, %v3498
      %v3527 = vmul.f32 %v3447, %v3500
      %v3528 = vmul.f32 %v3448, %v3502
      %v3529 = vmul.f32 %v3449, %v3504
      %v3530 = vmul.f32 %v3450, %v3506
      %v3531 = vmul.f32 %v3451, %v3508
      %v3532 = vmul.f32 %v3452, %v3510
      %v3533 = vmul.f32 %v3453, %v3512
      %v3534 = vmul.f32 %v3454, %v3514
      %v3535 = vmul.f32 %v3455, %v3516
      %v3536 = vmul.f32 %v3456, %v3518
      %v3537 = vmul.f32 %v3457, %v3520
      %v3538 = vmul.f32 %v3458, %v3522
      %v3539 = vsub.f32 1.0, %v3523
      %v3540 = vsub.f32 1.0, %v3524
      %v3541 = vsub.f32 1.0, %v3525
      %v3542 = vsub.f32 1.0, %v3526
      %v3543 = vsub.f32 1.0, %v3527
      %v3544 = vsub.f32 1.0, %v3528
      %v3545 = vsub.f32 1.0, %v3529
      %v3546 = vsub.f32 1.0, %v3530
      %v3547 = vsub.f32 1.0, %v3531
      %v3548 = vsub.f32 1.0, %v3532
      %v3549 = vsub.f32 1.0, %v3533
      %v3550 = vsub.f32 1.0, %v3534
      %v3551 = vsub.f32 1.0, %v3535
      %v3552 = vsub.f32 1.0, %v3536
      %v3553 = vsub.f32 1.0, %v3537
      %v3554 = vsub.f32 1.0, %v3538
      %vm3555 = vcmp.ge.f32.partialorder %v3219, 0.0
      %vm3556 = vcmp.ge.f32.partialorder %v3220, 0.0
      %vm3557 = vcmp.ge.f32.partialorder %v3221, 0.0
      %vm3558 = vcmp.ge.f32.partialorder %v3222, 0.0
      %vm3559 = vcmp.ge.f32.partialorder %v3223, 0.0
      %vm3560 = vcmp.ge.f32.partialorder %v3224, 0.0
      %vm3561 = vcmp.ge.f32.partialorder %v3225, 0.0
      %vm3562 = vcmp.ge.f32.partialorder %v3226, 0.0
      %vm3563 = vcmp.ge.f32.partialorder %v3227, 0.0
      %vm3564 = vcmp.ge.f32.partialorder %v3228, 0.0
      %vm3565 = vcmp.ge.f32.partialorder %v3229, 0.0
      %vm3566 = vcmp.ge.f32.partialorder %v3230, 0.0
      %vm3567 = vcmp.ge.f32.partialorder %v3231, 0.0
      %vm3568 = vcmp.ge.f32.partialorder %v3232, 0.0
      %vm3569 = vcmp.ge.f32.partialorder %v3233, 0.0
      %vm3570 = vcmp.ge.f32.partialorder %v3234, 0.0
      %v3571 = vsub.f32 0.0, %v3539
      %v3572 = vsub.f32 0.0, %v3540
      %v3573 = vsub.f32 0.0, %v3541
      %v3574 = vsub.f32 0.0, %v3542
      %v3575 = vsub.f32 0.0, %v3543
      %v3576 = vsub.f32 0.0, %v3544
      %v3577 = vsub.f32 0.0, %v3545
      %v3578 = vsub.f32 0.0, %v3546
      %v3579 = vsub.f32 0.0, %v3547
      %v3580 = vsub.f32 0.0, %v3548
      %v3581 = vsub.f32 0.0, %v3549
      %v3582 = vsub.f32 0.0, %v3550
      %v3583 = vsub.f32 0.0, %v3551
      %v3584 = vsub.f32 0.0, %v3552
      %v3585 = vsub.f32 0.0, %v3553
      %v3586 = vsub.f32 0.0, %v3554
      %v3587 = vsel %vm3555, %v3539, %v3571
      %v3588 = vsel %vm3556, %v3540, %v3572
      %v3589 = vsel %vm3557, %v3541, %v3573
      %v3590 = vsel %vm3558, %v3542, %v3574
      %v3591 = vsel %vm3559, %v3543, %v3575
      %v3592 = vsel %vm3560, %v3544, %v3576
      %v3593 = vsel %vm3561, %v3545, %v3577
      %v3594 = vsel %vm3562, %v3546, %v3578
      %v3595 = vsel %vm3563, %v3547, %v3579
      %v3596 = vsel %vm3564, %v3548, %v3580
      %v3597 = vsel %vm3565, %v3549, %v3581
      %v3598 = vsel %vm3566, %v3550, %v3582
      %v3599 = vsel %vm3567, %v3551, %v3583
      %v3600 = vsel %vm3568, %v3552, %v3584
      %v3601 = vsel %vm3569, %v3553, %v3585
      %v3602 = vsel %vm3570, %v3554, %v3586
      %v3603 = vmul.f32 %v3157, 0.5
      %v3604 = vmul.f32 %v3160, 0.5
      %v3605 = vmul.f32 %v3165, 0.5
      %v3606 = vmul.f32 %v3168, 0.5
      %v3607 = vmul.f32 %v3173, 0.5
      %v3608 = vmul.f32 %v3176, 0.5
      %v3609 = vmul.f32 %v3181, 0.5
      %v3610 = vmul.f32 %v3184, 0.5
      %v3611 = vmul.f32 %v3189, 0.5
      %v3612 = vmul.f32 %v3192, 0.5
      %v3613 = vmul.f32 %v3197, 0.5
      %v3614 = vmul.f32 %v3200, 0.5
      %v3615 = vmul.f32 %v3205, 0.5
      %v3616 = vmul.f32 %v3208, 0.5
      %v3617 = vmul.f32 %v3213, 0.5
      %v3618 = vmul.f32 %v3216, 0.5
      %v3619 = vadd.f32 %v3587, 1.0
      %v3620 = vadd.f32 %v3588, 1.0
      %v3621 = vadd.f32 %v3589, 1.0
      %v3622 = vadd.f32 %v3590, 1.0
      %v3623 = vadd.f32 %v3591, 1.0
      %v3624 = vadd.f32 %v3592, 1.0
      %v3625 = vadd.f32 %v3593, 1.0
      %v3626 = vadd.f32 %v3594, 1.0
      %v3627 = vadd.f32 %v3595, 1.0
      %v3628 = vadd.f32 %v3596, 1.0
      %v3629 = vadd.f32 %v3597, 1.0
      %v3630 = vadd.f32 %v3598, 1.0
      %v3631 = vadd.f32 %v3599, 1.0
      %v3632 = vadd.f32 %v3600, 1.0
      %v3633 = vadd.f32 %v3601, 1.0
      %v3634 = vadd.f32 %v3602, 1.0
      %v3635 = vmul.f32 %v3603, %v3619
      %v3636 = vmul.f32 %v3604, %v3620
      %v3637 = vmul.f32 %v3605, %v3621
      %v3638 = vmul.f32 %v3606, %v3622
      %v3639 = vmul.f32 %v3607, %v3623
      %v3640 = vmul.f32 %v3608, %v3624
      %v3641 = vmul.f32 %v3609, %v3625
      %v3642 = vmul.f32 %v3610, %v3626
      %v3643 = vmul.f32 %v3611, %v3627
      %v3644 = vmul.f32 %v3612, %v3628
      %v3645 = vmul.f32 %v3613, %v3629
      %v3646 = vmul.f32 %v3614, %v3630
      %v3647 = vmul.f32 %v3615, %v3631
      %v3648 = vmul.f32 %v3616, %v3632
      %v3649 = vmul.f32 %v3617, %v3633
      %v3650 = vmul.f32 %v3618, %v3634
      %v3651 = vpack.c.bf16 %v3636, %v3635
      %v3652 = vpack.c.bf16 %v3638, %v3637
      %v3653 = vpack.c.bf16 %v3640, %v3639
      %v3654 = vpack.c.bf16 %v3642, %v3641
      %v3655 = vpack.c.bf16 %v3644, %v3643
      %v3656 = vpack.c.bf16 %v3646, %v3645
      %v3657 = vpack.c.bf16 %v3648, %v3647
      %v3658 = vpack.c.bf16 %v3650, %v3649
      %v3659 = vld [vmem:[%s19] sm:$0xf]
      %v3660 = vld [vmem:[%s19 + $0x4] sm:$0xf]
      %v3661 = vld [vmem:[%s19 + $0x8] sm:$0xf]
      %v3662 = vld [vmem:[%s19 + $0xc] sm:$0xf]
      %v3663 = vld [vmem:[%s19 + $0x10] sm:$0xf]
      %v3664 = vld [vmem:[%s19 + $0x14] sm:$0xf]
      %v3665 = vld [vmem:[%s19 + $0x18] sm:$0xf]
      %v3666 = vld [vmem:[%s19 + $0x1c] sm:$0xf]
      %v3667 = vld [vmem:[%s19 + $0x20] sm:$0xf]
      %v3668 = vld [vmem:[%s19 + $0x24] sm:$0xf]
      %v3669 = vld [vmem:[%s19 + $0x28] sm:$0xf]
      %v3670 = vld [vmem:[%s19 + $0x2c] sm:$0xf]
      %v3671 = vld [vmem:[%s19 + $0x30] sm:$0xf]
      %v3672 = vld [vmem:[%s19 + $0x34] sm:$0xf]
      %v3673 = vld [vmem:[%s19 + $0x38] sm:$0xf]
      %v3674 = vld [vmem:[%s19 + $0x3c] sm:$0xf]
      %v3675 = vld [vmem:[%s20] sm:$0x1]
      %v3677 = vlaneseq
      %v3678 = vshrl.u32 %v3677, 7
      %v3679 = vsub.s32 0, %v3678
      %v3680 = vrot.slane %v3675, %v3679
      %v3698 = vunpack.c.l.b16 %v3659
      %v3699 = vunpack.c.l.b16 %v3660
      %v3700 = vunpack.c.l.b16 %v3661
      %v3701 = vunpack.c.l.b16 %v3662
      %v3702 = vunpack.c.l.b16 %v3663
      %v3703 = vunpack.c.l.b16 %v3664
      %v3704 = vunpack.c.l.b16 %v3665
      %v3705 = vunpack.c.l.b16 %v3666
      %v3706 = vunpack.c.l.b16 %v3667
      %v3707 = vunpack.c.l.b16 %v3668
      %v3708 = vunpack.c.l.b16 %v3669
      %v3709 = vunpack.c.l.b16 %v3670
      %v3710 = vunpack.c.l.b16 %v3671
      %v3711 = vunpack.c.l.b16 %v3672
      %v3712 = vunpack.c.l.b16 %v3673
      %v3713 = vunpack.c.l.b16 %v3674
      %v3714 = vpack.c.b16 %v3699, %v3698
      %v3715 = vpack.c.b16 %v3701, %v3700
      %v3716 = vpack.c.b16 %v3703, %v3702
      %v3717 = vpack.c.b16 %v3705, %v3704
      %v3718 = vpack.c.b16 %v3707, %v3706
      %v3719 = vpack.c.b16 %v3709, %v3708
      %v3720 = vpack.c.b16 %v3711, %v3710
      %v3721 = vpack.c.b16 %v3713, %v3712
      %3730 = vmatprep.subr.bf16.mxu0 0
      %3731 = vmatpush1.bf16.msra.mxu0 %v3714
      %3732 = vmatprep.subr.bf16.mxu0 0
      %3733 = vmatpush1.bf16.msra.mxu0 %v3715
      %3734 = vmatprep.subr.bf16.mxu0 0
      %3735 = vmatpush1.bf16.msra.mxu0 %v3716
      %3736 = vmatprep.subr.bf16.mxu0 0
      %3737 = vmatpush1.bf16.msra.mxu0 %v3717
      %3738 = vmatprep.subr.bf16.mxu0 0
      %3739 = vmatpush1.bf16.msra.mxu0 %v3718
      %3740 = vmatprep.subr.bf16.mxu0 0
      %3741 = vmatpush1.bf16.msra.mxu0 %v3719
      %3742 = vmatprep.subr.bf16.mxu0 0
      %3743 = vmatpush1.bf16.msra.mxu0 %v3720
      %3744 = vmatprep.subr.bf16.mxu0 0
      %3745 = vmatpush1.bf16.msra.mxu0 %v3721
      %3746 = vmatprep.subr.bf16.mxu0 0
      %3747 = vmatpush1.bf16.msra.mxu0 0
      %3748 = vmatprep.subr.bf16.mxu0 0
      %3749 = vmatpush1.bf16.msra.mxu0 0
      %3750 = vmatprep.subr.bf16.mxu0 0
      %3751 = vmatpush1.bf16.msra.mxu0 0
      %3752 = vmatprep.subr.bf16.mxu0 0
      %3753 = vmatpush1.bf16.msra.mxu0 0
      %3754 = vmatprep.subr.bf16.mxu0 0
      %3755 = vmatpush1.bf16.msra.mxu0 0
      %3756 = vmatprep.subr.bf16.mxu0 0
      %3757 = vmatpush1.bf16.msra.mxu0 0
      %3758 = vmatprep.subr.bf16.mxu0 0
      %3759 = vmatpush1.bf16.msra.mxu0 0
      %3760 = vmatprep.subr.bf16.mxu0 0
      %3761 = vmatpush1.bf16.msra.mxu0 0
      %3762 = vmatprep.mubr.bf16.mxu0 0
      %3763 = vmatmul.mubr.bf16.gmra.mrb[0].mxu0 %v3651
      %v3764 = vpop.f32.mrb[0].mxu0
      %v3765 = vadd.f32 %v3680, %v3764
      %v3766 = vpop.f32.mrb[0].mxu0
      %v3767 = vpop.f32.mrb[0].mxu0
      %v3768 = vadd.f32 %v3680, %v3767
      %v3769 = vpop.f32.mrb[0].mxu0
      %3770 = vmatprep.mubr.bf16.mxu0 0
      %3771 = vmatmul.mubr.bf16.gmra.mrb[0].mxu0 %v3652
      %v3772 = vpop.f32.mrb[0].mxu0
      %v3773 = vadd.f32 %v3680, %v3772
      %v3774 = vpop.f32.mrb[0].mxu0
      %v3775 = vpop.f32.mrb[0].mxu0
      %v3776 = vadd.f32 %v3680, %v3775
      %v3777 = vpop.f32.mrb[0].mxu0
      %3778 = vmatprep.mubr.bf16.mxu0 0
      %3779 = vmatmul.mubr.bf16.gmra.mrb[0].mxu0 %v3653
      %v3780 = vpop.f32.mrb[0].mxu0
      %v3781 = vadd.f32 %v3680, %v3780
      %v3782 = vpop.f32.mrb[0].mxu0
      %v3783 = vpop.f32.mrb[0].mxu0
      %v3784 = vadd.f32 %v3680, %v3783
      %v3785 = vpop.f32.mrb[0].mxu0
      %3786 = vmatprep.mubr.bf16.mxu0 0
      %3787 = vmatmul.mubr.bf16.gmra.mrb[0].mxu0 %v3654
      %v3788 = vpop.f32.mrb[0].mxu0
      %v3789 = vadd.f32 %v3680, %v3788
      %v3790 = vpop.f32.mrb[0].mxu0
      %v3791 = vpop.f32.mrb[0].mxu0
      %v3792 = vadd.f32 %v3680, %v3791
      %v3793 = vpop.f32.mrb[0].mxu0
      %3794 = vmatprep.mubr.bf16.mxu0 0
      %3795 = vmatmul.mubr.bf16.gmra.mrb[0].mxu0 %v3655
      %v3796 = vpop.f32.mrb[0].mxu0
      %v3797 = vadd.f32 %v3680, %v3796
      %v3798 = vpop.f32.mrb[0].mxu0
      %v3799 = vpop.f32.mrb[0].mxu0
      %v3800 = vadd.f32 %v3680, %v3799
      %v3801 = vpop.f32.mrb[0].mxu0
      %3802 = vmatprep.mubr.bf16.mxu0 0
      %3803 = vmatmul.mubr.bf16.gmra.mrb[0].mxu0 %v3656
      %v3804 = vpop.f32.mrb[0].mxu0
      %v3805 = vadd.f32 %v3680, %v3804
      %v3806 = vpop.f32.mrb[0].mxu0
      %v3807 = vpop.f32.mrb[0].mxu0
      %v3808 = vadd.f32 %v3680, %v3807
      %v3809 = vpop.f32.mrb[0].mxu0
      %3810 = vmatprep.mubr.bf16.mxu0 0
      %3811 = vmatmul.mubr.bf16.gmra.mrb[0].mxu0 %v3657
      %v3812 = vpop.f32.mrb[0].mxu0
      %v3813 = vadd.f32 %v3680, %v3812
      %v3814 = vpop.f32.mrb[0].mxu0
      %v3815 = vpop.f32.mrb[0].mxu0
      %v3816 = vadd.f32 %v3680, %v3815
      %v3817 = vpop.f32.mrb[0].mxu0
      %3818 = vmatprep.mubr.bf16.mxu0 0
      %3819 = vmatmul.mubr.bf16.gmra.mrb[0].mxu0 %v3658
      %v3820 = vpop.f32.mrb[0].mxu0
      %v3821 = vadd.f32 %v3680, %v3820
      %v3822 = vpop.f32.mrb[0].mxu0
      %v3823 = vpop.f32.mrb[0].mxu0
      %v3824 = vadd.f32 %v3680, %v3823
      %v3825 = vpop.f32.mrb[0].mxu0
      %3826 = vdwg.mxu0
      %v3827 = vadd.f32 %v2797, %v3765
      %v3828 = vadd.f32 %v2798, %v3768
      %v3829 = vadd.f32 %v2799, %v3773
      %v3830 = vadd.f32 %v2800, %v3776
      %v3831 = vadd.f32 %v2801, %v3781
      %v3832 = vadd.f32 %v2802, %v3784
      %v3833 = vadd.f32 %v2803, %v3789
      %v3834 = vadd.f32 %v2804, %v3792
      %v3835 = vadd.f32 %v2805, %v3797
      %v3836 = vadd.f32 %v2806, %v3800
      %v3837 = vadd.f32 %v2807, %v3805
      %v3838 = vadd.f32 %v2808, %v3808
      %v3839 = vadd.f32 %v2809, %v3813
      %v3840 = vadd.f32 %v2810, %v3816
      %v3841 = vadd.f32 %v2811, %v3821
      %v3842 = vadd.f32 %v2812, %v3824
      %3843 = vst.msk [vmem:[%s658] sm:$0xff] %vm677, %v3827
      %3844 = vst.msk [vmem:[%s658 + $0x8] sm:$0xff] %vm677, %v3828
      %3845 = vst.msk [vmem:[%s658 + $0x10] sm:$0xff] %vm677, %v3829
      %3846 = vst.msk [vmem:[%s658 + $0x18] sm:$0xff] %vm677, %v3830
      %3847 = vst.msk [vmem:[%s658 + $0x20] sm:$0xff] %vm677, %v3831
      %3848 = vst.msk [vmem:[%s658 + $0x28] sm:$0xff] %vm677, %v3832
      %3849 = vst.msk [vmem:[%s658 + $0x30] sm:$0xff] %vm677, %v3833
      %3850 = vst.msk [vmem:[%s658 + $0x38] sm:$0xff] %vm677, %v3834
      %3851 = vst.msk [vmem:[%s658 + $0x40] sm:$0xff] %vm677, %v3835
      %3852 = vst.msk [vmem:[%s658 + $0x48] sm:$0xff] %vm677, %v3836
      %3853 = vst.msk [vmem:[%s658 + $0x50] sm:$0xff] %vm677, %v3837
      %3854 = vst.msk [vmem:[%s658 + $0x58] sm:$0xff] %vm677, %v3838
      %3855 = vst.msk [vmem:[%s658 + $0x60] sm:$0xff] %vm677, %v3839
      %3856 = vst.msk [vmem:[%s658 + $0x68] sm:$0xff] %vm677, %v3840
      %3857 = vst.msk [vmem:[%s658 + $0x70] sm:$0xff] %vm677, %v3841
      %3858 = vst.msk [vmem:[%s658 + $0x78] sm:$0xff] %vm677, %v3842
      %s3859 = smul.u32 16, %s32
      %p3860 = scmp.lt.s32.totalorder %s3859, 31
      %s3861 = scalar_select %p3860, %s3859, 31
      %s3862 = smul.addr %s3861, 8
      %s3863 = scalar_lea.vmem %s21, %s3862
      // Predicated region
      $region105: #{forward.1} parent=103 // pred_check
        %p3864 = pneg %p496
      $region106: #{forward.1} parent=103 // pred_check_branch
        %3866 = sbr.rel (%p3864) target = $region108
      $region107: #{forward.1} parent=103 // pred_region
        %s3867 = smul.u32 16, %s32
      $region108: #{forward.1} parent=103 // pred_fallthru
        _
    $region104: #{forward.1} parent=5 // pred_fallthru
      _
    %p3868 = scmp.le.s32.totalorder 2, %s27
    // Predicated region
    $region109: #{forward.1} parent=5 // pred_check
      %p3869 = pneg %p3868
    $region110: #{forward.1} parent=5 // pred_check_branch
      %3871 = sbr.rel (%p3869) target = $region112
    $region111: #{forward.1} parent=5 // pred_region
      %s3872 = ssub.s32 %s27, 2
      // Predicated region
      $region113: #{forward.1} parent=111 // pred_check
        %p3873 = pneg %p502
      $region114: #{forward.1} parent=111 // pred_check_branch
        %3875 = sbr.rel (%p3873) target = $region116
      $region115: #{forward.1} parent=111 // pred_region
        %s3876 = smul.u32 16, %s33
        %p3877 = scmp.lt.s32.totalorder %s3876, 31
        %s3878 = scalar_select %p3877, %s3876, 31
        %s3879 = smul.addr %s3878, 8
        %s3880 = scalar_lea.vmem %s21, %s3879
      $region116: #{forward.1} parent=111 // pred_fallthru
        _
    $region112: #{forward.1} parent=5 // pred_fallthru
      _
  $region6: #{forward.1} parent=0 // loop_footer
    %s31 = sadd.s32 1, %s27
  $region7: #{forward.1} parent=0 // loop_footer_branch
    %26 = sbr.rel target = $region3
  $region8: #{forward.1} parent=0 // loop_exit
    _

</llo_original>
